<compile_context>
chip_gen: v7x
topology: tpu7x:2x2x1
jax: 0.10.0
libtpu: 0.0.40
codegen_flags: <defaults>
</compile_context>

<pallas_src>
import jax
import jax.numpy as jnp
import numpy as np
from jax.experimental import pallas as pl
from jax.experimental.pallas import tpu as pltpu


# -----------------------------------------------------------------------------
# Transposed-conv (k=4, s=2, p=1) sub-pixel decomposition
# -----------------------------------------------------------------------------
# Output pixel (2p+ry, 2q+rx) depends only on input pixels (p+ty-1, q+tx-1) for
# taps ty, tx in {0,1,2} of the zero-padded (pad=1) input, through kernel taps
# (ky, kx) given by the maps below (taps not listed contribute zero):
#   ry=0: {ty=0 -> ky=3, ty=1 -> ky=1}     ry=1: {ty=1 -> ky=2, ty=2 -> ky=0}
_K_OF_TAP = ({0: 3, 1: 1}, {1: 2, 2: 0})


def _fold_deconv_weight(w):
    """PyTorch ConvTranspose2d weight (Cin, Cout, 4, 4) -> (9*Cin, 4*Cout).

    Row index:    (ty*3 + tx)*Cin + ci   (matches the kernel's 3x3 im2col order)
    Column index: (ry*2 + rx)*Cout + co  (output sub-pixel phase, then channel)
    """
    Cin, Cout = w.shape[0], w.shape[1]
    zero = jnp.zeros((Cin, Cout), w.dtype)
    cols = []
    for ry in range(2):
        for rx in range(2):
            rows = []
            for ty in range(3):
                for tx in range(3):
                    ky = _K_OF_TAP[ry].get(ty)
                    kx = _K_OF_TAP[rx].get(tx)
                    rows.append(zero if (ky is None or kx is None)
                                else w[:, :, ky, kx])
            cols.append(jnp.concatenate(rows, axis=0))        # (9*Cin, Cout)
    return jnp.concatenate(cols, axis=1)                      # (9*Cin, 4*Cout)


def _depth_to_space(y):
    """(N, H, W, 4*C) phase-packed [(ry, rx, c) channels] -> (N, 2H, 2W, C)."""
    N, H, W, C4 = y.shape
    C = C4 // 4
    y = y.reshape(N, H, W, 2, 2, C)
    y = jnp.transpose(y, (0, 1, 3, 2, 4, 5))
    return y.reshape(N, 2 * H, 2 * W, C)


# -----------------------------------------------------------------------------
# Pallas kernels
# -----------------------------------------------------------------------------
def _deconv_core(x_ref, wm_ref, b4_ref, xpad_ref):
    """LeakyReLU(0.02) -> zero-pad in VMEM -> im2col -> one MXU matmul -> + bias.

    Returns r: (H*W, 4*Cout) f32 with columns ordered (ry, rx, co).
    """
    _, H, W, Cin = x_ref.shape

    # In-kernel zero padding (no wrapper-side jnp.pad HBM pass).
    xpad_ref[...] = jnp.zeros_like(xpad_ref)
    x = x_ref[0].astype(jnp.float32)
    act = jnp.where(x > 0, x, 0.02 * x)                       # fused LeakyReLU(0.02)
    xpad_ref[1:H + 1, 1:W + 1, :] = act.astype(xpad_ref.dtype)

    # im2col over the 3x3 padded footprint -> a single big-K matmul (bf16 on MXU).
    xpad = xpad_ref[...]
    patches = jnp.concatenate(
        [xpad[ty:ty + H, tx:tx + W, :].reshape(H * W, Cin)
         for ty in range(3) for tx in range(3)], axis=-1)     # (H*W, 9*Cin) bf16
    r = jnp.dot(patches, wm_ref[...],
                preferred_element_type=jnp.float32)            # (H*W, 4*Cout) f32
    return r + b4_ref[...].astype(jnp.float32)


def _deconv_block_kernel(x_ref, wm_ref, b4_ref, out_ref, xpad_ref):
    """One DeconvBlock: LeakyReLU -> ConvTranspose2d(4,2,1) + bias (phase-packed out)."""
    _, H, W, _ = x_ref.shape
    r = _deconv_core(x_ref, wm_ref, b4_ref, xpad_ref)
    out_ref[0] = r.reshape(H, W, -1).astype(out_ref.dtype)


def _deconv_final_kernel(x_ref, wm_ref, b4_ref, w1_ref, b1_ref, out_ref, xpad_ref):
    """Last DeconvBlock with the 1x1-conv segmentation head fused in."""
    _, H, W, _ = x_ref.shape
    r = _deconv_core(x_ref, wm_ref, b4_ref, xpad_ref)          # deconv output (+bias)
    # 1x1 conv head applied directly on the phase-packed layout: kron(I4, W1).
    r = jnp.dot(r, w1_ref[...], preferred_element_type=jnp.float32)
    r = r + b1_ref[...]
    out_ref[0] = r.reshape(H, W, -1).astype(out_ref.dtype)


# -----------------------------------------------------------------------------
# pallas_call wrappers
# -----------------------------------------------------------------------------
def _deconv_block_call(x, wm, b4):
    N, H, W, Cin = x.shape
    C4 = wm.shape[1]                                           # 4 * Cout
    packed = pl.pallas_call(
        _deconv_block_kernel,
        out_shape=jax.ShapeDtypeStruct((N, H, W, C4), jnp.bfloat16),
        grid=(N,),
        in_specs=[
            pl.BlockSpec((1, H, W, Cin), lambda b: (b, 0, 0, 0)),
            pl.BlockSpec((9 * Cin, C4), lambda b: (0, 0)),
            pl.BlockSpec((1, C4), lambda b: (0, 0)),
        ],
        out_specs=pl.BlockSpec((1, H, W, C4), lambda b: (b, 0, 0, 0)),
        scratch_shapes=[pltpu.VMEM((H + 2, W + 2, Cin), jnp.bfloat16)],
        compiler_params=pltpu.CompilerParams(
            dimension_semantics=("parallel",)),
    )(x, wm, b4)
    return _depth_to_space(packed)


def _deconv_final_call(x, wm, b4, w1k, b1t):
    N, H, W, Cin = x.shape
    C4 = wm.shape[1]                                           # 4 * C_last
    Co4 = w1k.shape[1]                                         # 4 * (n_cls + 1)
    packed = pl.pallas_call(
        _deconv_final_kernel,
        out_shape=jax.ShapeDtypeStruct((N, H, W, Co4), jnp.float32),
        grid=(N,),
        in_specs=[
            pl.BlockSpec((1, H, W, Cin), lambda b: (b, 0, 0, 0)),
            pl.BlockSpec((9 * Cin, C4), lambda b: (0, 0)),
            pl.BlockSpec((1, C4), lambda b: (0, 0)),
            pl.BlockSpec((C4, Co4), lambda b: (0, 0)),
            pl.BlockSpec((1, Co4), lambda b: (0, 0)),
        ],
        out_specs=pl.BlockSpec((1, H, W, Co4), lambda b: (b, 0, 0, 0)),
        scratch_shapes=[pltpu.VMEM((H + 2, W + 2, Cin), jnp.bfloat16)],
        compiler_params=pltpu.CompilerParams(
            dimension_semantics=("parallel",)),
    )(x, wm, b4, w1k, b1t)
    return _depth_to_space(packed)


@jax.jit
def segd_forward(x_nchw, params):
    """segd forward pass.  NCHW in, NCHW out: (N, n_cls+1, H*2^u, W*2^u)."""
    dws, dbs = params["deconv_w"], params["deconv_b"]
    if len(dws) == 0:
        # TODO(synk): up_scale == 0 (bare 1x1-conv head, no DeconvBlock) not implemented.
        raise NotImplementedError("segd with up_scale == 0 is not implemented")

    x = jnp.transpose(x_nchw, (0, 2, 3, 1))                    # NCHW -> NHWC

    w1 = params["head_w"][:, :, 0, 0].T.astype(jnp.float32)    # (C_last, n_cls+1)
    b1 = params["head_b"].astype(jnp.float32)

    for i, (w, b) in enumerate(zip(dws, dbs)):
        wm = _fold_deconv_weight(w).astype(jnp.bfloat16)       # (9*Cin, 4*Cout)
        b4 = jnp.tile(b, 4)[None, :].astype(jnp.float32)       # (1, 4*Cout)
        if i + 1 < len(dws):
            x = _deconv_block_call(x, wm, b4)
        else:
            w1k = jnp.kron(jnp.eye(4, dtype=jnp.float32), w1)  # (4*C_last, 4*(n_cls+1))
            b1t = jnp.tile(b1, 4)[None, :]                     # (1, 4*(n_cls+1))
            x = _deconv_final_call(x, wm, b4, w1k, b1t)

    return jnp.transpose(x, (0, 3, 1, 2))                      # NHWC -> NCHW


# -----------------------------------------------------------------------------
# Pure-JAX reference (for a correctness sanity check)
# -----------------------------------------------------------------------------
def _ref_forward(x_nchw, params):
    x = jnp.transpose(x_nchw, (0, 2, 3, 1)).astype(jnp.float32)
    for w, b in zip(params["deconv_w"], params["deconv_b"]):
        x = jnp.where(x > 0, x, 0.02 * x)                      # LeakyReLU(0.02)
        # ConvTranspose2d(k=4, s=2, p=1) == dilated conv with flipped kernel.
        w_hwio = jnp.flip(jnp.transpose(w, (2, 3, 0, 1)), axis=(0, 1))
        x = jax.lax.conv_general_dilated(
            x, w_hwio, window_strides=(1, 1), padding=[(2, 2), (2, 2)],
            lhs_dilation=(2, 2),
            dimension_numbers=("NHWC", "HWIO", "NHWC"),
            precision=jax.lax.Precision.HIGHEST) + b
    w1 = params["head_w"][:, :, 0, 0].T
    x = jnp.dot(x, w1, precision=jax.lax.Precision.HIGHEST) + params["head_b"]
    return jnp.transpose(x, (0, 3, 1, 2))


# -----------------------------------------------------------------------------
# Main
# -----------------------------------------------------------------------------
if __name__ == "__main__":
    N, H, W = 2, 8, 8
    n_cls, up_scale, init_channel = 4, 2, 64

    key = jax.random.PRNGKey(0)
    keys = jax.random.split(key, 3 + 2 * up_scale)

    x = jax.random.normal(keys[0], (N, init_channel, H, W), jnp.float32)

    # PyTorch layouts: deconv weight (Cin, Cout, 4, 4); head weight (n_cls+1, C, 1, 1).
    deconv_w, deconv_b = [], []
    c = init_channel
    for i in range(up_scale):
        co = c // 2
        deconv_w.append(
            0.1 * jax.random.normal(keys[1 + 2 * i], (c, co, 4, 4), jnp.float32))
        deconv_b.append(
            0.1 * jax.random.normal(keys[2 + 2 * i], (co,), jnp.float32))
        c = co
    head_w = 0.1 * jax.random.normal(
        keys[1 + 2 * up_scale], (n_cls + 1, c, 1, 1), jnp.float32)
    head_b = 0.1 * jax.random.normal(
        keys[2 + 2 * up_scale], (n_cls + 1,), jnp.float32)

    params = {"deconv_w": deconv_w, "deconv_b": deconv_b,
              "head_w": head_w, "head_b": head_b}

    out = jax.block_until_ready(segd_forward(x, params))
    assert out.shape == (N, n_cls + 1, H * 2 ** up_scale, W * 2 ** up_scale), out.shape

    ref = jax.block_until_ready(_ref_forward(x, params))
    # bf16 activations / bf16 MXU operands in the kernel vs. f32-HIGHEST reference.
    np.testing.assert_allclose(np.asarray(out), np.asarray(ref),
                               rtol=5e-2, atol=5e-2)

    print("KERNEL_OK")
</pallas_src>

<mosaic_0001>
module attributes {stable_mosaic.version = 11 : i64} {
  func.func @_deconv_block_kernel(%arg0: i32, %arg1: memref<1x8x8x64xf32, #tpu.memory_space<vmem>>, %arg2: memref<576x128xbf16, #tpu.memory_space<vmem>>, %arg3: memref<1x128xf32, #tpu.memory_space<vmem>>, %arg4: memref<1x8x8x128xbf16, #tpu.memory_space<vmem>>, %arg5: memref<10x10x64xbf16, #tpu.memory_space<vmem>>) attributes {dimension_semantics = [#tpu.dimension_semantics<parallel>], iteration_bounds = array<i64: 2>, scalar_prefetch = 0 : i64, scratch_operands = 1 : i64, tpu.core_type = #tpu.core_type<tc>, window_params = [{transform_indices = @transform_0, window_bounds = array<i64: 1, 8, 8, 64>}, {pipeline_mode = #tpu.pipeline_mode<synchronous>, transform_indices = @transform_1, window_bounds = array<i64: 576, 128>}, {pipeline_mode = #tpu.pipeline_mode<synchronous>, transform_indices = @transform_2, window_bounds = array<i64: 1, 128>}, {transform_indices = @transform_3, window_bounds = array<i64: 1, 8, 8, 128>}]} {
    %cst = arith.constant 0.000000e+00 : bf16
    %0 = vector.broadcast %cst : bf16 to vector<10x10x64xbf16>
    %c0 = arith.constant 0 : index
    %c0_0 = arith.constant 0 : index
    %c0_1 = arith.constant 0 : index
    %1 = vector.load %arg5[%c0, %c0_0, %c0_1] : memref<10x10x64xbf16, #tpu.memory_space<vmem>>, vector<10x10x64xbf16>
    tpu.vector_store %arg5[%c0, %c0_0, %c0_1], %0 {strides = array<i32>} : memref<10x10x64xbf16, #tpu.memory_space<vmem>>, vector<10x10x64xbf16>,
    %c0_2 = arith.constant 0 : index
    %c0_3 = arith.constant 0 : index
    %c0_4 = arith.constant 0 : index
    %c0_5 = arith.constant 0 : index
    %2 = vector.load %arg1[%c0_2, %c0_3, %c0_4, %c0_5] : memref<1x8x8x64xf32, #tpu.memory_space<vmem>>, vector<1x8x8x64xf32>
    %3 = vector.shape_cast %2 : vector<1x8x8x64xf32> to vector<8x8x64xf32>
    %cst_6 = arith.constant 0.000000e+00 : f32
    %4 = vector.broadcast %cst_6 : f32 to vector<8x8x64xf32>
    %5 = arith.cmpf ogt, %3, %4 : vector<8x8x64xf32>
    %cst_7 = arith.constant 2.000000e-02 : f32
    %6 = vector.broadcast %cst_7 : f32 to vector<8x8x64xf32>
    %7 = arith.mulf %6, %3 : vector<8x8x64xf32>
    %8 = arith.select %5, %3, %7 : vector<8x8x64xi1>, vector<8x8x64xf32>
    %9 = arith.truncf %8 : vector<8x8x64xf32> to vector<8x8x64xbf16>
    %c1 = arith.constant 1 : index
    %c1_8 = arith.constant 1 : index
    %c0_9 = arith.constant 0 : index
    %10 = vector.load %arg5[%c1, %c1_8, %c0_9] : memref<10x10x64xbf16, #tpu.memory_space<vmem>>, vector<8x8x64xbf16>
    tpu.vector_store %arg5[%c1, %c1_8, %c0_9], %9 {strides = array<i32>} : memref<10x10x64xbf16, #tpu.memory_space<vmem>>, vector<8x8x64xbf16>,
    %c0_10 = arith.constant 0 : index
    %c0_11 = arith.constant 0 : index
    %c0_12 = arith.constant 0 : index
    %11 = vector.load %arg5[%c0_10, %c0_11, %c0_12] : memref<10x10x64xbf16, #tpu.memory_space<vmem>>, vector<10x10x64xbf16>
    %12 = vector.extract_strided_slice %11 {offsets = [0, 0, 0], sizes = [8, 8, 64], strides = [1, 1, 1]} : vector<10x10x64xbf16> to vector<8x8x64xbf16>
    %13 = vector.shape_cast %12 : vector<8x8x64xbf16> to vector<64x64xbf16>
    %14 = vector.extract_strided_slice %11 {offsets = [0, 1, 0], sizes = [8, 8, 64], strides = [1, 1, 1]} : vector<10x10x64xbf16> to vector<8x8x64xbf16>
    %15 = vector.shape_cast %14 : vector<8x8x64xbf16> to vector<64x64xbf16>
    %16 = vector.extract_strided_slice %11 {offsets = [0, 2, 0], sizes = [8, 8, 64], strides = [1, 1, 1]} : vector<10x10x64xbf16> to vector<8x8x64xbf16>
    %17 = vector.shape_cast %16 : vector<8x8x64xbf16> to vector<64x64xbf16>
    %18 = vector.extract_strided_slice %11 {offsets = [1, 0, 0], sizes = [8, 8, 64], strides = [1, 1, 1]} : vector<10x10x64xbf16> to vector<8x8x64xbf16>
    %19 = vector.shape_cast %18 : vector<8x8x64xbf16> to vector<64x64xbf16>
    %20 = vector.extract_strided_slice %11 {offsets = [1, 1, 0], sizes = [8, 8, 64], strides = [1, 1, 1]} : vector<10x10x64xbf16> to vector<8x8x64xbf16>
    %21 = vector.shape_cast %20 : vector<8x8x64xbf16> to vector<64x64xbf16>
    %22 = vector.extract_strided_slice %11 {offsets = [1, 2, 0], sizes = [8, 8, 64], strides = [1, 1, 1]} : vector<10x10x64xbf16> to vector<8x8x64xbf16>
    %23 = vector.shape_cast %22 : vector<8x8x64xbf16> to vector<64x64xbf16>
    %24 = vector.extract_strided_slice %11 {offsets = [2, 0, 0], sizes = [8, 8, 64], strides = [1, 1, 1]} : vector<10x10x64xbf16> to vector<8x8x64xbf16>
    %25 = vector.shape_cast %24 : vector<8x8x64xbf16> to vector<64x64xbf16>
    %26 = vector.extract_strided_slice %11 {offsets = [2, 1, 0], sizes = [8, 8, 64], strides = [1, 1, 1]} : vector<10x10x64xbf16> to vector<8x8x64xbf16>
    %27 = vector.shape_cast %26 : vector<8x8x64xbf16> to vector<64x64xbf16>
    %28 = vector.extract_strided_slice %11 {offsets = [2, 2, 0], sizes = [8, 8, 64], strides = [1, 1, 1]} : vector<10x10x64xbf16> to vector<8x8x64xbf16>
    %29 = vector.shape_cast %28 : vector<8x8x64xbf16> to vector<64x64xbf16>
    %30 = tpu.concatenate %13, %15, %17, %19, %21, %23, %25, %27, %29 in 1 : vector<64x64xbf16>, vector<64x64xbf16>, vector<64x64xbf16>, vector<64x64xbf16>, vector<64x64xbf16>, vector<64x64xbf16>, vector<64x64xbf16>, vector<64x64xbf16>, vector<64x64xbf16> -> vector<64x576xbf16>
    %c0_13 = arith.constant 0 : index
    %c0_14 = arith.constant 0 : index
    %31 = vector.load %arg2[%c0_13, %c0_14] : memref<576x128xbf16, #tpu.memory_space<vmem>>, vector<576x128xbf16>
    %cst_15 = arith.constant dense<0.000000e+00> : vector<64x128xf32>
    %32 = tpu.matmul %30, %31, %cst_15 {dimension_numbers = #tpu.dot_dimension_numbers<[1], [0], [0], [1], [0, 0, 1, 1], [], []>} : vector<64x576xbf16>, vector<576x128xbf16>, vector<64x128xf32> -> vector<64x128xf32>
    %c0_16 = arith.constant 0 : index
    %c0_17 = arith.constant 0 : index
    %33 = vector.load %arg3[%c0_16, %c0_17] : memref<1x128xf32, #tpu.memory_space<vmem>>, vector<1x128xf32>
    %34 = vector.broadcast %33 : vector<1x128xf32> to vector<64x128xf32>
    %35 = arith.addf %32, %34 : vector<64x128xf32>
    %36 = vector.shape_cast %35 : vector<64x128xf32> to vector<8x8x128xf32>
    %37 = arith.truncf %36 : vector<8x8x128xf32> to vector<8x8x128xbf16>
    %c0_18 = arith.constant 0 : index
    %c0_19 = arith.constant 0 : index
    %c0_20 = arith.constant 0 : index
    %c0_21 = arith.constant 0 : index
    %38 = vector.load %arg4[%c0_18, %c0_19, %c0_20, %c0_21] : memref<1x8x8x128xbf16, #tpu.memory_space<vmem>>, vector<1x8x8x128xbf16>
    %39 = vector.shape_cast %38 : vector<1x8x8x128xbf16> to vector<8x8x128xbf16>
    %40 = vector.shape_cast %37 : vector<8x8x128xbf16> to vector<1x8x8x128xbf16>
    tpu.vector_store %arg4[%c0_18, %c0_19, %c0_20, %c0_21], %40 {strides = array<i32>} : memref<1x8x8x128xbf16, #tpu.memory_space<vmem>>, vector<1x8x8x128xbf16>,
    return
  }
  func.func @transform_0(%arg0: i32) -> (i32, i32, i32, i32) {
    %c0_i32 = arith.constant 0 : i32
    %c0_i32_0 = arith.constant 0 : i32
    %c0_i32_1 = arith.constant 0 : i32
    %c0_i32_2 = arith.constant 0 : i32
    return %arg0, %c0_i32, %c0_i32_0, %c0_i32_1 : i32, i32, i32, i32
  }
  func.func @transform_1(%arg0: i32) -> (i32, i32) {
    %c0_i32 = arith.constant 0 : i32
    %c0_i32_0 = arith.constant 0 : i32
    %c0_i32_1 = arith.constant 0 : i32
    return %c0_i32, %c0_i32_0 : i32, i32
  }
  func.func @transform_2(%arg0: i32) -> (i32, i32) {
    %c0_i32 = arith.constant 0 : i32
    %c0_i32_0 = arith.constant 0 : i32
    %c0_i32_1 = arith.constant 0 : i32
    return %c0_i32, %c0_i32_0 : i32, i32
  }
  func.func @transform_3(%arg0: i32) -> (i32, i32, i32, i32) {
    %c0_i32 = arith.constant 0 : i32
    %c0_i32_0 = arith.constant 0 : i32
    %c0_i32_1 = arith.constant 0 : i32
    %c0_i32_2 = arith.constant 0 : i32
    return %arg0, %c0_i32, %c0_i32_0, %c0_i32_1 : i32, i32, i32, i32
  }
}

module attributes {stable_mosaic.version = 11 : i64} {
  func.func @_deconv_final_kernel(%arg0: i32, %arg1: memref<1x16x16x32xbf16, #tpu.memory_space<vmem>>, %arg2: memref<288x64xbf16, #tpu.memory_space<vmem>>, %arg3: memref<1x64xf32, #tpu.memory_space<vmem>>, %arg4: memref<64x20xf32, #tpu.memory_space<vmem>>, %arg5: memref<1x20xf32, #tpu.memory_space<vmem>>, %arg6: memref<1x16x16x20xf32, #tpu.memory_space<vmem>>, %arg7: memref<18x18x32xbf16, #tpu.memory_space<vmem>>) attributes {dimension_semantics = [#tpu.dimension_semantics<parallel>], iteration_bounds = array<i64: 2>, scalar_prefetch = 0 : i64, scratch_operands = 1 : i64, tpu.core_type = #tpu.core_type<tc>, window_params = [{transform_indices = @transform_0, window_bounds = array<i64: 1, 16, 16, 32>}, {pipeline_mode = #tpu.pipeline_mode<synchronous>, transform_indices = @transform_1, window_bounds = array<i64: 288, 64>}, {pipeline_mode = #tpu.pipeline_mode<synchronous>, transform_indices = @transform_2, window_bounds = array<i64: 1, 64>}, {pipeline_mode = #tpu.pipeline_mode<synchronous>, transform_indices = @transform_3, window_bounds = array<i64: 64, 20>}, {pipeline_mode = #tpu.pipeline_mode<synchronous>, transform_indices = @transform_4, window_bounds = array<i64: 1, 20>}, {transform_indices = @transform_5, window_bounds = array<i64: 1, 16, 16, 20>}]} {
    %cst = arith.constant 0.000000e+00 : bf16
    %0 = vector.broadcast %cst : bf16 to vector<18x18x32xbf16>
    %c0 = arith.constant 0 : index
    %c0_0 = arith.constant 0 : index
    %c0_1 = arith.constant 0 : index
    %1 = vector.load %arg7[%c0, %c0_0, %c0_1] : memref<18x18x32xbf16, #tpu.memory_space<vmem>>, vector<18x18x32xbf16>
    tpu.vector_store %arg7[%c0, %c0_0, %c0_1], %0 {strides = array<i32>} : memref<18x18x32xbf16, #tpu.memory_space<vmem>>, vector<18x18x32xbf16>,
    %c0_2 = arith.constant 0 : index
    %c0_3 = arith.constant 0 : index
    %c0_4 = arith.constant 0 : index
    %c0_5 = arith.constant 0 : index
    %2 = vector.load %arg1[%c0_2, %c0_3, %c0_4, %c0_5] : memref<1x16x16x32xbf16, #tpu.memory_space<vmem>>, vector<1x16x16x32xbf16>
    %3 = vector.shape_cast %2 : vector<1x16x16x32xbf16> to vector<16x16x32xbf16>
    %4 = arith.extf %3 : vector<16x16x32xbf16> to vector<16x16x32xf32>
    %cst_6 = arith.constant 0.000000e+00 : f32
    %5 = vector.broadcast %cst_6 : f32 to vector<16x16x32xf32>
    %6 = arith.cmpf ogt, %4, %5 : vector<16x16x32xf32>
    %cst_7 = arith.constant 2.000000e-02 : f32
    %7 = vector.broadcast %cst_7 : f32 to vector<16x16x32xf32>
    %8 = arith.mulf %7, %4 : vector<16x16x32xf32>
    %9 = arith.select %6, %4, %8 : vector<16x16x32xi1>, vector<16x16x32xf32>
    %10 = arith.truncf %9 : vector<16x16x32xf32> to vector<16x16x32xbf16>
    %c1 = arith.constant 1 : index
    %c1_8 = arith.constant 1 : index
    %c0_9 = arith.constant 0 : index
    %11 = vector.load %arg7[%c1, %c1_8, %c0_9] : memref<18x18x32xbf16, #tpu.memory_space<vmem>>, vector<16x16x32xbf16>
    tpu.vector_store %arg7[%c1, %c1_8, %c0_9], %10 {strides = array<i32>} : memref<18x18x32xbf16, #tpu.memory_space<vmem>>, vector<16x16x32xbf16>,
    %c0_10 = arith.constant 0 : index
    %c0_11 = arith.constant 0 : index
    %c0_12 = arith.constant 0 : index
    %12 = vector.load %arg7[%c0_10, %c0_11, %c0_12] : memref<18x18x32xbf16, #tpu.memory_space<vmem>>, vector<18x18x32xbf16>
    %13 = vector.extract_strided_slice %12 {offsets = [0, 0, 0], sizes = [16, 16, 32], strides = [1, 1, 1]} : vector<18x18x32xbf16> to vector<16x16x32xbf16>
    %14 = vector.shape_cast %13 : vector<16x16x32xbf16> to vector<256x32xbf16>
    %15 = vector.extract_strided_slice %12 {offsets = [0, 1, 0], sizes = [16, 16, 32], strides = [1, 1, 1]} : vector<18x18x32xbf16> to vector<16x16x32xbf16>
    %16 = vector.shape_cast %15 : vector<16x16x32xbf16> to vector<256x32xbf16>
    %17 = vector.extract_strided_slice %12 {offsets = [0, 2, 0], sizes = [16, 16, 32], strides = [1, 1, 1]} : vector<18x18x32xbf16> to vector<16x16x32xbf16>
    %18 = vector.shape_cast %17 : vector<16x16x32xbf16> to vector<256x32xbf16>
    %19 = vector.extract_strided_slice %12 {offsets = [1, 0, 0], sizes = [16, 16, 32], strides = [1, 1, 1]} : vector<18x18x32xbf16> to vector<16x16x32xbf16>
    %20 = vector.shape_cast %19 : vector<16x16x32xbf16> to vector<256x32xbf16>
    %21 = vector.extract_strided_slice %12 {offsets = [1, 1, 0], sizes = [16, 16, 32], strides = [1, 1, 1]} : vector<18x18x32xbf16> to vector<16x16x32xbf16>
    %22 = vector.shape_cast %21 : vector<16x16x32xbf16> to vector<256x32xbf16>
    %23 = vector.extract_strided_slice %12 {offsets = [1, 2, 0], sizes = [16, 16, 32], strides = [1, 1, 1]} : vector<18x18x32xbf16> to vector<16x16x32xbf16>
    %24 = vector.shape_cast %23 : vector<16x16x32xbf16> to vector<256x32xbf16>
    %25 = vector.extract_strided_slice %12 {offsets = [2, 0, 0], sizes = [16, 16, 32], strides = [1, 1, 1]} : vector<18x18x32xbf16> to vector<16x16x32xbf16>
    %26 = vector.shape_cast %25 : vector<16x16x32xbf16> to vector<256x32xbf16>
    %27 = vector.extract_strided_slice %12 {offsets = [2, 1, 0], sizes = [16, 16, 32], strides = [1, 1, 1]} : vector<18x18x32xbf16> to vector<16x16x32xbf16>
    %28 = vector.shape_cast %27 : vector<16x16x32xbf16> to vector<256x32xbf16>
    %29 = vector.extract_strided_slice %12 {offsets = [2, 2, 0], sizes = [16, 16, 32], strides = [1, 1, 1]} : vector<18x18x32xbf16> to vector<16x16x32xbf16>
    %30 = vector.shape_cast %29 : vector<16x16x32xbf16> to vector<256x32xbf16>
    %31 = tpu.concatenate %14, %16, %18, %20, %22, %24, %26, %28, %30 in 1 : vector<256x32xbf16>, vector<256x32xbf16>, vector<256x32xbf16>, vector<256x32xbf16>, vector<256x32xbf16>, vector<256x32xbf16>, vector<256x32xbf16>, vector<256x32xbf16>, vector<256x32xbf16> -> vector<256x288xbf16>
    %c0_13 = arith.constant 0 : index
    %c0_14 = arith.constant 0 : index
    %32 = vector.load %arg2[%c0_13, %c0_14] : memref<288x64xbf16, #tpu.memory_space<vmem>>, vector<288x64xbf16>
    %cst_15 = arith.constant dense<0.000000e+00> : vector<256x64xf32>
    %33 = tpu.matmul %31, %32, %cst_15 {dimension_numbers = #tpu.dot_dimension_numbers<[1], [0], [0], [1], [0, 0, 1, 1], [], []>} : vector<256x288xbf16>, vector<288x64xbf16>, vector<256x64xf32> -> vector<256x64xf32>
    %c0_16 = arith.constant 0 : index
    %c0_17 = arith.constant 0 : index
    %34 = vector.load %arg3[%c0_16, %c0_17] : memref<1x64xf32, #tpu.memory_space<vmem>>, vector<1x64xf32>
    %35 = vector.broadcast %34 : vector<1x64xf32> to vector<256x64xf32>
    %36 = arith.addf %33, %35 : vector<256x64xf32>
    %c0_18 = arith.constant 0 : index
    %c0_19 = arith.constant 0 : index
    %37 = vector.load %arg4[%c0_18, %c0_19] : memref<64x20xf32, #tpu.memory_space<vmem>>, vector<64x20xf32>
    %cst_20 = arith.constant dense<0.000000e+00> : vector<256x20xf32>
    %38 = tpu.matmul %36, %37, %cst_20 {dimension_numbers = #tpu.dot_dimension_numbers<[1], [0], [0], [1], [0, 0, 1, 1], [], []>} : vector<256x64xf32>, vector<64x20xf32>, vector<256x20xf32> -> vector<256x20xf32>
    %c0_21 = arith.constant 0 : index
    %c0_22 = arith.constant 0 : index
    %39 = vector.load %arg5[%c0_21, %c0_22] : memref<1x20xf32, #tpu.memory_space<vmem>>, vector<1x20xf32>
    %40 = vector.broadcast %39 : vector<1x20xf32> to vector<256x20xf32>
    %41 = arith.addf %38, %40 : vector<256x20xf32>
    %42 = vector.shape_cast %41 : vector<256x20xf32> to vector<16x16x20xf32>
    %c0_23 = arith.constant 0 : index
    %c0_24 = arith.constant 0 : index
    %c0_25 = arith.constant 0 : index
    %c0_26 = arith.constant 0 : index
    %43 = vector.load %arg6[%c0_23, %c0_24, %c0_25, %c0_26] : memref<1x16x16x20xf32, #tpu.memory_space<vmem>>, vector<1x16x16x20xf32>
    %44 = vector.shape_cast %43 : vector<1x16x16x20xf32> to vector<16x16x20xf32>
    %45 = vector.shape_cast %42 : vector<16x16x20xf32> to vector<1x16x16x20xf32>
    tpu.vector_store %arg6[%c0_23, %c0_24, %c0_25, %c0_26], %45 {strides = array<i32>} : memref<1x16x16x20xf32, #tpu.memory_space<vmem>>, vector<1x16x16x20xf32>,
    return
  }
  func.func @transform_0(%arg0: i32) -> (i32, i32, i32, i32) {
    %c0_i32 = arith.constant 0 : i32
    %c0_i32_0 = arith.constant 0 : i32
    %c0_i32_1 = arith.constant 0 : i32
    %c0_i32_2 = arith.constant 0 : i32
    return %arg0, %c0_i32, %c0_i32_0, %c0_i32_1 : i32, i32, i32, i32
  }
  func.func @transform_1(%arg0: i32) -> (i32, i32) {
    %c0_i32 = arith.constant 0 : i32
    %c0_i32_0 = arith.constant 0 : i32
    %c0_i32_1 = arith.constant 0 : i32
    return %c0_i32, %c0_i32_0 : i32, i32
  }
  func.func @transform_2(%arg0: i32) -> (i32, i32) {
    %c0_i32 = arith.constant 0 : i32
    %c0_i32_0 = arith.constant 0 : i32
    %c0_i32_1 = arith.constant 0 : i32
    return %c0_i32, %c0_i32_0 : i32, i32
  }
  func.func @transform_3(%arg0: i32) -> (i32, i32) {
    %c0_i32 = arith.constant 0 : i32
    %c0_i32_0 = arith.constant 0 : i32
    %c0_i32_1 = arith.constant 0 : i32
    return %c0_i32, %c0_i32_0 : i32, i32
  }
  func.func @transform_4(%arg0: i32) -> (i32, i32) {
    %c0_i32 = arith.constant 0 : i32
    %c0_i32_0 = arith.constant 0 : i32
    %c0_i32_1 = arith.constant 0 : i32
    return %c0_i32, %c0_i32_0 : i32, i32
  }
  func.func @transform_5(%arg0: i32) -> (i32, i32, i32, i32) {
    %c0_i32 = arith.constant 0 : i32
    %c0_i32_0 = arith.constant 0 : i32
    %c0_i32_1 = arith.constant 0 : i32
    %c0_i32_2 = arith.constant 0 : i32
    return %arg0, %c0_i32, %c0_i32_0, %c0_i32_1 : i32, i32, i32, i32
  }
}

</mosaic_0001>

<llo_original>
// kernel: tile.24
$region0: #{tile.24}
  %s0 = inlined_call_operand.vmem [shape: f32[4,16], index: 0, kind: input, shape index: {}]
  %s1 = inlined_call_operand.vmem [shape: f32[1,64], index: 1, kind: output, shape index: {}]
  $region1: #{tile.24} parent=0
    #allocation0 [shape = 'u8[4096]{0}', space=vmem, size = 0x1000, scoped, tag = 'scoped mem for output reshape']
    #allocation1 [shape = 'u8[4096]{0}', space=vmem, size = 0x1000, scoped, tag = 'scoped mem for input reshape']
    %s3 = sshllo.u32 0, 4
    %v4 = vld [vmem:[%s0] sm:%s3]
    %5 = vst [vmem:[#allocation1] sm:%s3] %v4
    %v6 = vld [vmem:[#allocation1] sm:$0x1]
    %vm7 = vcmask 130048
    %8 = vst.msk [vmem:[#allocation0] sm:$0x1] %vm7, %v6
    %s9 = scalar_lea.vmem [#allocation1], 3
    %v10 = vld [vmem:[%s9] sm:$0x1]
    %11 = vrot.lane.b32.xlu0 %v10, 48
    %v12 = vpop.permute.xlu0 %11
    %vm13 = vcmask 523648
    %14 = vst.msk [vmem:[#allocation0] sm:$0x1] %vm13, %v12
    %s15 = scalar_lea.vmem [#allocation1], 2
    %v16 = vld [vmem:[%s15] sm:$0x1]
    %17 = vrot.lane.b32.xlu0 %v16, 32
    %v18 = vpop.permute.xlu0 %17
    %vm19 = vcmask 392448
    %20 = vst.msk [vmem:[#allocation0] sm:$0x1] %vm19, %v18
    %s21 = scalar_lea.vmem [#allocation1], 1
    %v22 = vld [vmem:[%s21] sm:$0x1]
    %23 = vrot.lane.b32.xlu0 %v22, 16
    %v24 = vpop.permute.xlu0 %23
    %vm25 = vcmask 261248
    %26 = vst.msk [vmem:[#allocation0] sm:$0x1] %vm25, %v24
    %s28 = sshllo.u32 0, 1
    %v30 = vld [vmem:[#allocation0] sm:%s28]
    %s31 = sshllo.u32 0, 1
    %32 = vst [vmem:[%s1] sm:%s31] %v30

// kernel: tile.19
$region0: #{tile.19}
  %s0 = inlined_call_operand.vmem [shape: f32[4,32], index: 0, kind: input, shape index: {}]
  %s1 = inlined_call_operand.vmem [shape: f32[1,128], index: 1, kind: output, shape index: {}]
  $region1: #{tile.19} parent=0
    #allocation0 [shape = 'u8[4096]{0}', space=vmem, size = 0x1000, scoped, tag = 'scoped mem for output reshape']
    #allocation1 [shape = 'u8[4096]{0}', space=vmem, size = 0x1000, scoped, tag = 'scoped mem for input reshape']
    %s3 = sshllo.u32 0, 4
    %v4 = vld [vmem:[%s0] sm:%s3]
    %5 = vst [vmem:[#allocation1] sm:%s3] %v4
    %v6 = vld [vmem:[#allocation1] sm:$0x1]
    %vm7 = vcmask 261120
    %8 = vst.msk [vmem:[#allocation0] sm:$0x1] %vm7, %v6
    %s9 = scalar_lea.vmem [#allocation1], 3
    %v10 = vld [vmem:[%s9] sm:$0x1]
    %11 = vrot.lane.b32.xlu0 %v10, 96
    %v12 = vpop.permute.xlu0 %11
    %vm13 = vcmask 1048320
    %14 = vst.msk [vmem:[#allocation0] sm:$0x1] %vm13, %v12
    %s15 = scalar_lea.vmem [#allocation1], 2
    %v16 = vld [vmem:[%s15] sm:$0x1]
    %17 = vrot.lane.b32.xlu0 %v16, 64
    %v18 = vpop.permute.xlu0 %17
    %vm19 = vcmask 785920
    %20 = vst.msk [vmem:[#allocation0] sm:$0x1] %vm19, %v18
    %s21 = scalar_lea.vmem [#allocation1], 1
    %v22 = vld [vmem:[%s21] sm:$0x1]
    %23 = vrot.lane.b32.xlu0 %v22, 32
    %v24 = vpop.permute.xlu0 %23
    %vm25 = vcmask 523520
    %26 = vst.msk [vmem:[#allocation0] sm:$0x1] %vm25, %v24
    %s28 = sshllo.u32 0, 1
    %v30 = vld [vmem:[#allocation0] sm:%s28]
    %s31 = sshllo.u32 0, 1
    %32 = vst [vmem:[%s1] sm:%s31] %v30

// kernel: tile.18
$region0: #{tile.18}
  #allocation2 [shape = 's32[1]{0}', space=sflag, size = 0x4, scoped, tag = 'scoped memory for tile.18']
  %s0 = inlined_call_operand.hbm [shape: f32[32], index: 0, kind: input, shape index: {}]
  %s1 = inlined_call_operand.vmem [shape: f32[4,32], index: 1, kind: output, shape index: {}]
  $region1: #{tile.18} parent=0
    #allocation0 [shape = 'u8[512]{0}', space=vmem, size = 0x400, scoped, tag = 'operand span for operand 0']
    #allocation1 [shape = 's32[1]{0}', space=sflag, size = 0x4, scoped, tag = 'scoped memory for tile.18']
    %2 = vsyncpa [#allocation1], 0
    // Predicated region
    $region2: #{tile.18} parent=1 // pred_check
      _
    $region3: #{tile.18} parent=1 // pred_check_branch
      %4 = sbr.rel (0) target = $region5
    $region4: #{tile.18} parent=1 // pred_region
      %s6 = ssub.s32 16, 16
      %7 = vsyncadd [#allocation1], %s6
      %s9 = sshll.u32 [#allocation0], 4
      %s10 = int_to_ptr.vmem [resolvable:$true] %s9
      %12 = dma.hbm_to_vmem [thread:$0]  %s0, 16, %s10, [#allocation1]
    $region5: #{tile.18} parent=1 // pred_fallthru
      _
    // Predicated region
    $region6: #{tile.18} parent=1 // pred_check
      _
    $region7: #{tile.18} parent=1 // pred_check_branch
      %14 = sbr.rel (0) target = $region9
    $region8: #{tile.18} parent=1 // pred_region
      %15 = dma.done [#allocation1], 16
    $region9: #{tile.18} parent=1 // pred_fallthru
      _
    %v16 = vld [vmem:[#allocation0] ss:$0 sm:$0xff]
    %17 = vst [vmem:[%s1] sm:$0xf] %v16
    %18 = vsyncpa [#allocation1], 1

// kernel: tile.23
$region0: #{tile.23}
  #allocation2 [shape = 's32[1]{0}', space=sflag, size = 0x4, scoped, tag = 'scoped memory for tile.23']
  %s0 = inlined_call_operand.hbm [shape: f32[16], index: 0, kind: input, shape index: {}]
  %s1 = inlined_call_operand.vmem [shape: f32[4,16], index: 1, kind: output, shape index: {}]
  $region1: #{tile.23} parent=0
    #allocation0 [shape = 'u8[512]{0}', space=vmem, size = 0x400, scoped, tag = 'operand span for operand 0']
    #allocation1 [shape = 's32[1]{0}', space=sflag, size = 0x4, scoped, tag = 'scoped memory for tile.23']
    %2 = vsyncpa [#allocation1], 0
    // Predicated region
    $region2: #{tile.23} parent=1 // pred_check
      _
    $region3: #{tile.23} parent=1 // pred_check_branch
      %4 = sbr.rel (0) target = $region5
    $region4: #{tile.23} parent=1 // pred_region
      %s6 = ssub.s32 16, 16
      %7 = vsyncadd [#allocation1], %s6
      %s9 = sshll.u32 [#allocation0], 4
      %s10 = int_to_ptr.vmem [resolvable:$true] %s9
      %12 = dma.hbm_to_vmem [thread:$0]  %s0, 16, %s10, [#allocation1]
    $region5: #{tile.23} parent=1 // pred_fallthru
      _
    // Predicated region
    $region6: #{tile.23} parent=1 // pred_check
      _
    $region7: #{tile.23} parent=1 // pred_check_branch
      %14 = sbr.rel (0) target = $region9
    $region8: #{tile.23} parent=1 // pred_region
      %15 = dma.done [#allocation1], 16
    $region9: #{tile.23} parent=1 // pred_fallthru
      _
    %v16 = vld [vmem:[#allocation0] ss:$0 sm:$0xff]
    %17 = vst [vmem:[%s1] sm:$0xf] %v16
    %18 = vsyncpa [#allocation1], 1

// kernel: tile.29
$region0: #{tile.29}
  %s0 = inlined_call_operand.vmem [shape: f32[4,5], index: 0, kind: input, shape index: {}]
  %s1 = inlined_call_operand.vmem [shape: f32[1,20], index: 1, kind: output, shape index: {}]
  $region1: #{tile.29} parent=0
    #allocation0 [shape = 'u8[4096]{0}', space=vmem, size = 0x1000, scoped, tag = 'scoped mem for output reshape']
    #allocation1 [shape = 'u8[4096]{0}', space=vmem, size = 0x1000, scoped, tag = 'scoped mem for input reshape']
    %s3 = sshllo.u32 0, 4
    %v4 = vld [vmem:[%s0] sm:%s3]
    %5 = vst [vmem:[#allocation1] sm:%s3] %v4
    %v6 = vld [vmem:[#allocation1] sm:$0x1]
    %vm7 = vcmask 39936
    %8 = vst.msk [vmem:[#allocation0] sm:$0x1] %vm7, %v6
    %s9 = scalar_lea.vmem [#allocation1], 3
    %v10 = vld [vmem:[%s9] sm:$0x1]
    %11 = vrot.lane.b32.xlu0 %v10, 15
    %v12 = vpop.permute.xlu0 %11
    %vm13 = vcmask 162936
    %14 = vst.msk [vmem:[#allocation0] sm:$0x1] %vm13, %v12
    %s15 = scalar_lea.vmem [#allocation1], 2
    %v16 = vld [vmem:[%s15] sm:$0x1]
    %17 = vrot.lane.b32.xlu0 %v16, 10
    %v18 = vpop.permute.xlu0 %17
    %vm19 = vcmask 121936
    %20 = vst.msk [vmem:[#allocation0] sm:$0x1] %vm19, %v18
    %s21 = scalar_lea.vmem [#allocation1], 1
    %v22 = vld [vmem:[%s21] sm:$0x1]
    %23 = vrot.lane.b32.xlu0 %v22, 5
    %v24 = vpop.permute.xlu0 %23
    %vm25 = vcmask 80936
    %26 = vst.msk [vmem:[#allocation0] sm:$0x1] %vm25, %v24
    %s28 = sshllo.u32 0, 1
    %v30 = vld [vmem:[#allocation0] sm:%s28]
    %s31 = sshllo.u32 0, 1
    %32 = vst [vmem:[%s1] sm:%s31] %v30

// kernel: tile.28
$region0: #{tile.28}
  #allocation0 [shape = 's32[1]{0}', space=sflag, size = 0x4, scoped, tag = 'scoped memory for tile.28']
  %s0 = inlined_call_operand.vmem [shape: f32[5], index: 0, kind: input, shape index: {}]
  %s1 = inlined_call_operand.vmem [shape: f32[4,5], index: 1, kind: output, shape index: {}]
  // Predicated region
  $region2: #{tile.28} parent=0 // pred_check
    _
  $region3: #{tile.28} parent=0 // pred_check_branch
    %3 = sbr.rel (0) target = $region5
  $region4: #{tile.28} parent=0 // pred_region
    _
  $region5: #{tile.28} parent=0 // pred_fallthru
    _
  %v4 = vld [vmem:[%s0] ss:$0 sm:$0xff]
  %5 = vst [vmem:[%s1] sm:$0xf] %v4

// kernel: segd_forward.2
$region0: #{segd_forward.2}
  #allocation0 [shape = 'u32[]', space=smem, size = 0x4, offset = 0x4, fixed_abs, tag = 'smem constant byte address 0x4 - core index']
  #allocation1 [shape = 'u32[144,128]{1,0:T(1,128)}', space=vmem, size = 0x12000, scoped, tag = 'internal scratch']
  #allocation2 [shape = 'bf16[10,10,64]{2,1,0:T(8,128)(2,1)}', space=vmem, size = 0xa000, scoped, tag = 'scratch operand']
  %s0 = inlined_call_operand.vmem [shape: f32[2,8,8,64], index: 0, kind: input, shape index: {}]
  %s1 = inlined_call_operand.vmem [shape: bf16[576,128], index: 1, kind: input, shape index: {}]
  %s2 = inlined_call_operand.vmem [shape: f32[1,128], index: 2, kind: input, shape index: {}]
  %s3 = inlined_call_operand.vmem [shape: bf16[2,8,8,128], index: 3, kind: output, shape index: {}]
  %s4 = sld [smem:[#allocation0]]
  $region45: #{segd_forward.2} parent=0
    _
  %s6 = ssub.s32 1, %s4
  %s7 = scalar_select 0, %s6, %s4
  loop: start=0, step=1, limit=4
  $region2: #{segd_forward.2} parent=0 // loop_pre_header
    _
  $region3: #{segd_forward.2} parent=0 // loop_header
    %s9 = sphi 0, %s13
    %p10 = scmp.ge.s32.totalorder %s9, 4
    %s19 = sphi 0, %s21
    %s22 = sphi 0, %s19
    %s23 = sphi 0, %s22
    %s39 = sphi 0, %s23
    %s43 = sphi 0, %s43
    %s45 = sphi 0, %s43
    %s46 = sphi 0, %s45
    %s60 = sphi 0, %s46
    %s64 = sphi 0, %s64
    %s66 = sphi 0, %s64
    %s67 = sphi 0, %s66
    %s81 = sphi 0, %s67
    %s87 = sphi 0, %s89
    %s90 = sphi 0, %s87
    %s91 = sphi 0, %s90
    %s107 = sphi 0, %s91
  $region4: #{segd_forward.2} parent=0 // loop_header_branch
    %12 = sbr.rel (%p10) target = $region8
  $region5: #{segd_forward.2} parent=0 // loop_body
    %s14 = ssub.s32 %s9, 1
    %s15 = ssub.s32 %s9, 2
    %s16 = sadd.s32 %s9, 1
    %s17 = ssub.s32 %s9, %s16
    %p18 = scmp.eq.s32.totalorder %s17, 0
    %s20 = sadd.s32 %s19, 1
    %s21 = scalar_select %p18, %s19, %s20
    %p24 = pneg %p18
    %p25 = scmp.eq.s32.totalorder %s9, 1
    %p26 = por %p24, %p25
    %p27 = scmp.ne.s32.totalorder %s19, %s22
    %p28 = scmp.eq.s32.totalorder %s9, 0
    %p29 = por %p27, %p28
    %p30 = scmp.ne.s32.totalorder %s19, %s22
    %p31 = scmp.eq.s32.totalorder %s14, 1
    %p32 = por %p30, %p31
    %p33 = scmp.ne.s32.totalorder %s22, %s23
    %p34 = scmp.eq.s32.totalorder %s14, 0
    %p35 = por %p33, %p34
    %p36 = scmp.ne.s32.totalorder %s22, %s23
    %p37 = scmp.eq.s32.totalorder %s15, 1
    %p38 = por %p36, %p37
    %p40 = scmp.ne.s32.totalorder %s23, %s39
    %p41 = scmp.eq.s32.totalorder %s15, 0
    %p42 = por %p40, %p41
    %s44 = sadd.s32 %s43, 1
    %p47 = scmp.eq.s32.totalorder %s9, 1
    %p48 = scmp.ne.s32.totalorder %s43, %s45
    %p49 = scmp.eq.s32.totalorder %s9, 0
    %p50 = por %p48, %p49
    %p51 = scmp.ne.s32.totalorder %s43, %s45
    %p52 = scmp.eq.s32.totalorder %s14, 1
    %p53 = por %p51, %p52
    %p54 = scmp.ne.s32.totalorder %s45, %s46
    %p55 = scmp.eq.s32.totalorder %s14, 0
    %p56 = por %p54, %p55
    %p57 = scmp.ne.s32.totalorder %s45, %s46
    %p58 = scmp.eq.s32.totalorder %s15, 1
    %p59 = por %p57, %p58
    %p61 = scmp.ne.s32.totalorder %s46, %s60
    %p62 = scmp.eq.s32.totalorder %s15, 0
    %p63 = por %p61, %p62
    %s65 = sadd.s32 %s64, 1
    %p68 = scmp.eq.s32.totalorder %s9, 1
    %p69 = scmp.ne.s32.totalorder %s64, %s66
    %p70 = scmp.eq.s32.totalorder %s9, 0
    %p71 = por %p69, %p70
    %p72 = scmp.ne.s32.totalorder %s64, %s66
    %p73 = scmp.eq.s32.totalorder %s14, 1
    %p74 = por %p72, %p73
    %p75 = scmp.ne.s32.totalorder %s66, %s67
    %p76 = scmp.eq.s32.totalorder %s14, 0
    %p77 = por %p75, %p76
    %p78 = scmp.ne.s32.totalorder %s66, %s67
    %p79 = scmp.eq.s32.totalorder %s15, 1
    %p80 = por %p78, %p79
    %p82 = scmp.ne.s32.totalorder %s67, %s81
    %p83 = scmp.eq.s32.totalorder %s15, 0
    %p84 = por %p82, %p83
    %s85 = ssub.s32 %s9, %s16
    %p86 = scmp.eq.s32.totalorder %s85, 0
    %s88 = sadd.s32 %s87, 1
    %s89 = scalar_select %p86, %s87, %s88
    %p92 = pneg %p86
    %p93 = scmp.eq.s32.totalorder %s9, 1
    %p94 = por %p92, %p93
    %p95 = scmp.ne.s32.totalorder %s87, %s90
    %p96 = scmp.eq.s32.totalorder %s9, 0
    %p97 = por %p95, %p96
    %p98 = scmp.ne.s32.totalorder %s87, %s90
    %p99 = scmp.eq.s32.totalorder %s14, 1
    %p100 = por %p98, %p99
    %p101 = scmp.ne.s32.totalorder %s90, %s91
    %p102 = scmp.eq.s32.totalorder %s14, 0
    %p103 = por %p101, %p102
    %p104 = scmp.ne.s32.totalorder %s90, %s91
    %p105 = scmp.eq.s32.totalorder %s15, 1
    %p106 = por %p104, %p105
    %p108 = scmp.ne.s32.totalorder %s91, %s107
    %p109 = scmp.eq.s32.totalorder %s15, 0
    %p110 = por %p108, %p109
    %p111 = scmp.le.s32.totalorder 1, %s9
    %p112 = scmp.lt.s32.totalorder %s9, 3
    %p113 = pnand %p111, %p112
    %p114 = pneg %p113
    // Predicated region
    $region9: #{segd_forward.2} parent=5 // pred_check
      _
    $region10: #{segd_forward.2} parent=5 // pred_check_branch
      %116 = sbr.rel (%p113) target = $region12
    $region11: #{segd_forward.2} parent=5 // pred_region
      %s117 = ssub.s32 %s9, 1
      // Predicated region
      $region13: #{segd_forward.2} parent=11 // pred_check
        %p118 = pneg %p56
      $region14: #{segd_forward.2} parent=11 // pred_check_branch
        %120 = sbr.rel (%p118) target = $region16
      $region15: #{segd_forward.2} parent=11 // pred_region
        _
      $region16: #{segd_forward.2} parent=11 // pred_fallthru
        _
      // Predicated region
      $region17: #{segd_forward.2} parent=11 // pred_check
        %p121 = pneg %p77
      $region18: #{segd_forward.2} parent=11 // pred_check_branch
        %123 = sbr.rel (%p121) target = $region20
      $region19: #{segd_forward.2} parent=11 // pred_region
        _
      $region20: #{segd_forward.2} parent=11 // pred_fallthru
        _
    $region12: #{segd_forward.2} parent=5 // pred_fallthru
      _
    %p124 = scmp.lt.s32.totalorder %s9, 2
    // Predicated region
    $region21: #{segd_forward.2} parent=5 // pred_check
      %p125 = pneg %p124
    $region22: #{segd_forward.2} parent=5 // pred_check_branch
      %127 = sbr.rel (%p125) target = $region24
    $region23: #{segd_forward.2} parent=5 // pred_region
      // Predicated region
      $region25: #{segd_forward.2} parent=23 // pred_check
        %p128 = pneg %p29
      $region26: #{segd_forward.2} parent=23 // pred_check_branch
        %130 = sbr.rel (%p128) target = $region28
      $region27: #{segd_forward.2} parent=23 // pred_region
        %p131 = scmp.lt.s32.totalorder %s9, 1
        %s132 = scalar_select %p131, %s9, 1
        %s133 = smul.addr %s132, 8
        %s134 = smul.addr %s133, 8
        %s135 = scalar_lea.vmem %s0, %s134
      $region28: #{segd_forward.2} parent=23 // pred_fallthru
        _
    $region24: #{segd_forward.2} parent=5 // pred_fallthru
      _
    %p136 = scmp.le.s32.totalorder 1, %s9
    %p137 = scmp.lt.s32.totalorder %s9, 3
    %p138 = pnand %p136, %p137
    %p139 = pneg %p138
    // Predicated region
    $region29: #{segd_forward.2} parent=5 // pred_check
      _
    $region30: #{segd_forward.2} parent=5 // pred_check_branch
      %141 = sbr.rel (%p138) target = $region32
    $region31: #{segd_forward.2} parent=5 // pred_region
      %s142 = ssub.s32 %s9, 1
      %p143 = scmp.lt.s32.totalorder %s14, 1
      %s144 = scalar_select %p143, %s14, 1
      %s145 = smul.addr %s144, 8
      %s146 = smul.addr %s145, 8
      %s147 = scalar_lea.vmem %s0, %s146
      %p148 = pneg %p35
      %p149 = pneg %p32
      %p150 = pneg %p56
      %p151 = pneg %p53
      %p152 = pneg %p77
      %p153 = pneg %p74
      %p154 = pneg %p103
      %p155 = pneg %p100
      %p156 = scmp.lt.s32.totalorder %s14, 1
      %s157 = scalar_select %p156, %s14, 1
      %s158 = smul.addr %s157, 8
      %s159 = smul.addr %s158, 4
      %s160 = scalar_lea.vmem %s3, %s159
      %p161 = scmp.lt.s32.totalorder %s14, 1
      %s162 = scalar_select %p161, %s14, 1
      %s163 = smul.addr %s162, 8
      %s164 = smul.addr %s163, 8
      %s165 = scalar_lea.vmem %s0, %s164
      %p166 = scmp.lt.s32.totalorder %s14, 1
      %s167 = scalar_select %p166, %s14, 1
      %s168 = smul.addr %s167, 8
      %s169 = smul.addr %s168, 4
      %s170 = scalar_lea.vmem %s3, %s169
      %vm172 = vcmask 519168
      %173 = vst.msk [vmem:[#allocation2] sm:$0xf] %vm172, 0
      %vm174 = vcmask 516096
      %175 = vst.msk [vmem:[#allocation2 + $0x4] sm:$0x1] %vm174, 0
      %176 = vst.msk [vmem:[#allocation2 + $0x8] sm:$0xf] %vm172, 0
      %177 = vst.msk [vmem:[#allocation2 + $0xc] sm:$0x1] %vm174, 0
      %178 = vst.msk [vmem:[#allocation2 + $0x10] sm:$0xf] %vm172, 0
      %179 = vst.msk [vmem:[#allocation2 + $0x14] sm:$0x1] %vm174, 0
      %180 = vst.msk [vmem:[#allocation2 + $0x18] sm:$0xf] %vm172, 0
      %181 = vst.msk [vmem:[#allocation2 + $0x1c] sm:$0x1] %vm174, 0
      %182 = vst.msk [vmem:[#allocation2 + $0x20] sm:$0xf] %vm172, 0
      %183 = vst.msk [vmem:[#allocation2 + $0x24] sm:$0x1] %vm174, 0
      %184 = vst.msk [vmem:[#allocation2 + $0x28] sm:$0xf] %vm172, 0
      %185 = vst.msk [vmem:[#allocation2 + $0x2c] sm:$0x1] %vm174, 0
      %186 = vst.msk [vmem:[#allocation2 + $0x30] sm:$0xf] %vm172, 0
      %187 = vst.msk [vmem:[#allocation2 + $0x34] sm:$0x1] %vm174, 0
      %188 = vst.msk [vmem:[#allocation2 + $0x38] sm:$0xf] %vm172, 0
      %189 = vst.msk [vmem:[#allocation2 + $0x3c] sm:$0x1] %vm174, 0
      %190 = vst.msk [vmem:[#allocation2 + $0x40] sm:$0xf] %vm172, 0
      %191 = vst.msk [vmem:[#allocation2 + $0x44] sm:$0x1] %vm174, 0
      %192 = vst.msk [vmem:[#allocation2 + $0x48] sm:$0xf] %vm172, 0
      %193 = vst.msk [vmem:[#allocation2 + $0x4c] sm:$0x1] %vm174, 0
      %v194 = vld [vmem:[%s165] sm:$0xff]
      %v195 = vld [vmem:[%s165 + $0x8] sm:$0xff]
      %v196 = vld [vmem:[%s165 + $0x10] sm:$0xff]
      %v197 = vld [vmem:[%s165 + $0x18] sm:$0xff]
      %v198 = vld [vmem:[%s165 + $0x20] sm:$0xff]
      %v199 = vld [vmem:[%s165 + $0x28] sm:$0xff]
      %v200 = vld [vmem:[%s165 + $0x30] sm:$0xff]
      %v201 = vld [vmem:[%s165 + $0x38] sm:$0xff]
      %vm202 = vcmp.gt.f32.partialorder %v194, 0.0
      %vm203 = vcmp.gt.f32.partialorder %v195, 0.0
      %vm204 = vcmp.gt.f32.partialorder %v196, 0.0
      %vm205 = vcmp.gt.f32.partialorder %v197, 0.0
      %vm206 = vcmp.gt.f32.partialorder %v198, 0.0
      %vm207 = vcmp.gt.f32.partialorder %v199, 0.0
      %vm208 = vcmp.gt.f32.partialorder %v200, 0.0
      %vm209 = vcmp.gt.f32.partialorder %v201, 0.0
      %v210 = vmul.f32 %v194, 0.02
      %v211 = vmul.f32 %v195, 0.02
      %v212 = vmul.f32 %v196, 0.02
      %v213 = vmul.f32 %v197, 0.02
      %v214 = vmul.f32 %v198, 0.02
      %v215 = vmul.f32 %v199, 0.02
      %v216 = vmul.f32 %v200, 0.02
      %v217 = vmul.f32 %v201, 0.02
      %v218 = vsel %vm202, %v194, %v210
      %v219 = vsel %vm203, %v195, %v211
      %v220 = vsel %vm204, %v196, %v212
      %v221 = vsel %vm205, %v197, %v213
      %v222 = vsel %vm206, %v198, %v214
      %v223 = vsel %vm207, %v199, %v215
      %v224 = vsel %vm208, %v200, %v216
      %v225 = vsel %vm209, %v201, %v217
      %v226 = vpack.c.bf16 %v218, %v218
      %v227 = vpack.c.bf16 %v219, %v219
      %v228 = vpack.c.bf16 %v220, %v220
      %v229 = vpack.c.bf16 %v221, %v221
      %v230 = vpack.c.bf16 %v222, %v222
      %v231 = vpack.c.bf16 %v223, %v223
      %v232 = vpack.c.bf16 %v224, %v224
      %v233 = vpack.c.bf16 %v225, %v225
      %v242 = vunpack.c.l.b16 %v226
      %v243 = vunpack.c.l.b16 %v227
      %v244 = vunpack.c.l.b16 %v228
      %v245 = vunpack.c.l.b16 %v229
      %v246 = vunpack.c.l.b16 %v230
      %v247 = vunpack.c.l.b16 %v231
      %v248 = vunpack.c.l.b16 %v232
      %v249 = vunpack.c.l.b16 %v233
      %v250 = vpack.c.b16 %v242, %v242
      %v251 = vpack.c.b16 %v243, %v243
      %v252 = vpack.c.b16 %v244, %v244
      %v253 = vpack.c.b16 %v245, %v245
      %v254 = vpack.c.b16 %v246, %v246
      %v255 = vpack.c.b16 %v247, %v247
      %v256 = vpack.c.b16 %v248, %v248
      %v257 = vpack.c.b16 %v249, %v249
      %v259 = vshrl.u32 %v250, 16
      %v261 = vrot.slane %v259, 7
      %v262 = vshll.u32 %v250, 16
      %v264 = vor.u32 %v261, %v262
      %v265 = vrot.slane %v261, 4
      %v267 = vshrl.u32 %v251, 16
      %v269 = vrot.slane %v267, 7
      %v270 = vshll.u32 %v251, 16
      %v272 = vor.u32 %v269, %v270
      %v273 = vrot.slane %v269, 4
      %v275 = vshrl.u32 %v252, 16
      %v277 = vrot.slane %v275, 7
      %v278 = vshll.u32 %v252, 16
      %v280 = vor.u32 %v277, %v278
      %v281 = vrot.slane %v277, 4
      %v283 = vshrl.u32 %v253, 16
      %v285 = vrot.slane %v283, 7
      %v286 = vshll.u32 %v253, 16
      %v288 = vor.u32 %v285, %v286
      %v289 = vrot.slane %v285, 4
      %v291 = vshrl.u32 %v254, 16
      %v293 = vrot.slane %v291, 7
      %v294 = vshll.u32 %v254, 16
      %v296 = vor.u32 %v293, %v294
      %v297 = vrot.slane %v293, 4
      %v299 = vshrl.u32 %v255, 16
      %v301 = vrot.slane %v299, 7
      %v302 = vshll.u32 %v255, 16
      %v304 = vor.u32 %v301, %v302
      %v305 = vrot.slane %v301, 4
      %v307 = vshrl.u32 %v256, 16
      %v309 = vrot.slane %v307, 7
      %v310 = vshll.u32 %v256, 16
      %v312 = vor.u32 %v309, %v310
      %v313 = vrot.slane %v309, 4
      %v315 = vshrl.u32 %v257, 16
      %v317 = vrot.slane %v315, 7
      %v318 = vshll.u32 %v257, 16
      %v320 = vor.u32 %v317, %v318
      %v321 = vrot.slane %v317, 4
      %s338 = scalar_lea.vmem [#allocation2], 8
      %vm339 = vcmask 519168
      %vm340 = vsmask.f32 7938
      %vm341 = vmand %vm339, %vm340
      %v342 = vld [vmem:[%s338] sm:$0xf]
      %v343 = vsel %vm341, %v264, %v342
      %344 = vst [vmem:[%s338] sm:$0xf] %v343
      %vm345 = vcmask 516096
      %vm346 = vsmask.f32 256
      %vm347 = vmand %vm345, %vm346
      %v348 = vld [vmem:[%s338 + $0x4] sm:$0x1]
      %v349 = vsel %vm347, %v265, %v348
      %350 = vst [vmem:[%s338 + $0x4] sm:$0x1] %v349
      %v351 = vld [vmem:[%s338 + $0x8] sm:$0xf]
      %v352 = vsel %vm341, %v272, %v351
      %353 = vst [vmem:[%s338 + $0x8] sm:$0xf] %v352
      %v354 = vld [vmem:[%s338 + $0xc] sm:$0x1]
      %v355 = vsel %vm347, %v273, %v354
      %356 = vst [vmem:[%s338 + $0xc] sm:$0x1] %v355
      %v357 = vld [vmem:[%s338 + $0x10] sm:$0xf]
      %v358 = vsel %vm341, %v280, %v357
      %359 = vst [vmem:[%s338 + $0x10] sm:$0xf] %v358
      %v360 = vld [vmem:[%s338 + $0x14] sm:$0x1]
      %v361 = vsel %vm347, %v281, %v360
      %362 = vst [vmem:[%s338 + $0x14] sm:$0x1] %v361
      %v363 = vld [vmem:[%s338 + $0x18] sm:$0xf]
      %v364 = vsel %vm341, %v288, %v363
      %365 = vst [vmem:[%s338 + $0x18] sm:$0xf] %v364
      %v366 = vld [vmem:[%s338 + $0x1c] sm:$0x1]
      %v367 = vsel %vm347, %v289, %v366
      %368 = vst [vmem:[%s338 + $0x1c] sm:$0x1] %v367
      %v369 = vld [vmem:[%s338 + $0x20] sm:$0xf]
      %v370 = vsel %vm341, %v296, %v369
      %371 = vst [vmem:[%s338 + $0x20] sm:$0xf] %v370
      %v372 = vld [vmem:[%s338 + $0x24] sm:$0x1]
      %v373 = vsel %vm347, %v297, %v372
      %374 = vst [vmem:[%s338 + $0x24] sm:$0x1] %v373
      %v375 = vld [vmem:[%s338 + $0x28] sm:$0xf]
      %v376 = vsel %vm341, %v304, %v375
      %377 = vst [vmem:[%s338 + $0x28] sm:$0xf] %v376
      %v378 = vld [vmem:[%s338 + $0x2c] sm:$0x1]
      %v379 = vsel %vm347, %v305, %v378
      %380 = vst [vmem:[%s338 + $0x2c] sm:$0x1] %v379
      %v381 = vld [vmem:[%s338 + $0x30] sm:$0xf]
      %v382 = vsel %vm341, %v312, %v381
      %383 = vst [vmem:[%s338 + $0x30] sm:$0xf] %v382
      %v384 = vld [vmem:[%s338 + $0x34] sm:$0x1]
      %v385 = vsel %vm347, %v313, %v384
      %386 = vst [vmem:[%s338 + $0x34] sm:$0x1] %v385
      %v387 = vld [vmem:[%s338 + $0x38] sm:$0xf]
      %v388 = vsel %vm341, %v320, %v387
      %389 = vst [vmem:[%s338 + $0x38] sm:$0xf] %v388
      %v390 = vld [vmem:[%s338 + $0x3c] sm:$0x1]
      %v391 = vsel %vm347, %v321, %v390
      %392 = vst [vmem:[%s338 + $0x3c] sm:$0x1] %v391
      %v393 = vld [vmem:[#allocation2] sm:$0xf]
      %v394 = vld [vmem:[#allocation2 + $0x4] sm:$0x1]
      %v395 = vld [vmem:[#allocation2 + $0x8] sm:$0xf]
      %v396 = vld [vmem:[#allocation2 + $0xc] sm:$0x1]
      %v397 = vld [vmem:[#allocation2 + $0x10] sm:$0xf]
      %v398 = vld [vmem:[#allocation2 + $0x14] sm:$0x1]
      %v399 = vld [vmem:[#allocation2 + $0x18] sm:$0xf]
      %v400 = vld [vmem:[#allocation2 + $0x1c] sm:$0x1]
      %v401 = vld [vmem:[#allocation2 + $0x20] sm:$0xf]
      %v402 = vld [vmem:[#allocation2 + $0x24] sm:$0x1]
      %v403 = vld [vmem:[#allocation2 + $0x28] sm:$0xf]
      %v404 = vld [vmem:[#allocation2 + $0x2c] sm:$0x1]
      %v405 = vld [vmem:[#allocation2 + $0x30] sm:$0xf]
      %v406 = vld [vmem:[#allocation2 + $0x34] sm:$0x1]
      %v407 = vld [vmem:[#allocation2 + $0x38] sm:$0xf]
      %v408 = vld [vmem:[#allocation2 + $0x3c] sm:$0x1]
      %v409 = vld [vmem:[#allocation2 + $0x40] sm:$0xf]
      %v410 = vld [vmem:[#allocation2 + $0x44] sm:$0x1]
      %v411 = vld [vmem:[#allocation2 + $0x48] sm:$0xf]
      %v412 = vld [vmem:[#allocation2 + $0x4c] sm:$0x1]
      %vm413 = vsmask.f32 3328
      %vm414 = vsmask.f32 7440
      %vm415 = vmor %vm413, %vm414
      %v417 = vshrl.u32 %v393, 16
      %v419 = vrot.slane %v417, 4
      %v420 = vshll.u32 %v393, 16
      %v422 = vrot.slane %v420, 5
      %v423 = vor.u32 %v419, %v422
      %v424 = vrot.slane %v423, 4
      %v426 = vshll.u32 %v394, 16
      %v428 = vrot.slane %v426, 5
      %v429 = vsel %vm415, %v424, %v428
      %v431 = vshrl.u32 %v395, 16
      %v433 = vrot.slane %v431, 4
      %v434 = vshll.u32 %v395, 16
      %v436 = vrot.slane %v434, 5
      %v437 = vor.u32 %v433, %v436
      %v438 = vrot.slane %v437, 4
      %v440 = vshll.u32 %v396, 16
      %v442 = vrot.slane %v440, 5
      %v443 = vsel %vm415, %v438, %v442
      %v445 = vshrl.u32 %v397, 16
      %v447 = vrot.slane %v445, 4
      %v448 = vshll.u32 %v397, 16
      %v450 = vrot.slane %v448, 5
      %v451 = vor.u32 %v447, %v450
      %v452 = vrot.slane %v451, 4
      %v454 = vshll.u32 %v398, 16
      %v456 = vrot.slane %v454, 5
      %v457 = vsel %vm415, %v452, %v456
      %v459 = vshrl.u32 %v399, 16
      %v461 = vrot.slane %v459, 4
      %v462 = vshll.u32 %v399, 16
      %v464 = vrot.slane %v462, 5
      %v465 = vor.u32 %v461, %v464
      %v466 = vrot.slane %v465, 4
      %v468 = vshll.u32 %v400, 16
      %v470 = vrot.slane %v468, 5
      %v471 = vsel %vm415, %v466, %v470
      %v473 = vshrl.u32 %v401, 16
      %v475 = vrot.slane %v473, 4
      %v476 = vshll.u32 %v401, 16
      %v478 = vrot.slane %v476, 5
      %v479 = vor.u32 %v475, %v478
      %v480 = vrot.slane %v479, 4
      %v482 = vshll.u32 %v402, 16
      %v484 = vrot.slane %v482, 5
      %v485 = vsel %vm415, %v480, %v484
      %v487 = vshrl.u32 %v403, 16
      %v489 = vrot.slane %v487, 4
      %v490 = vshll.u32 %v403, 16
      %v492 = vrot.slane %v490, 5
      %v493 = vor.u32 %v489, %v492
      %v494 = vrot.slane %v493, 4
      %v496 = vshll.u32 %v404, 16
      %v498 = vrot.slane %v496, 5
      %v499 = vsel %vm415, %v494, %v498
      %v501 = vshrl.u32 %v405, 16
      %v503 = vrot.slane %v501, 4
      %v504 = vshll.u32 %v405, 16
      %v506 = vrot.slane %v504, 5
      %v507 = vor.u32 %v503, %v506
      %v508 = vrot.slane %v507, 4
      %v510 = vshll.u32 %v406, 16
      %v512 = vrot.slane %v510, 5
      %v513 = vsel %vm415, %v508, %v512
      %v515 = vshrl.u32 %v407, 16
      %v517 = vrot.slane %v515, 4
      %v518 = vshll.u32 %v407, 16
      %v520 = vrot.slane %v518, 5
      %v521 = vor.u32 %v517, %v520
      %v522 = vrot.slane %v521, 4
      %v524 = vshll.u32 %v408, 16
      %v526 = vrot.slane %v524, 5
      %v527 = vsel %vm415, %v522, %v526
      %vm544 = vcmask 1042432
      %vm545 = vcmask 1046532
      %vm546 = vmor %vm544, %vm545
      %v547 = vrot.slane %v393, 5
      %v548 = vrot.slane %v547, 4
      %v549 = vrot.slane %v394, 5
      %v550 = vsel %vm546, %v548, %v549
      %v551 = vrot.slane %v395, 5
      %v552 = vrot.slane %v551, 4
      %v553 = vrot.slane %v396, 5
      %v554 = vsel %vm546, %v552, %v553
      %v555 = vrot.slane %v397, 5
      %v556 = vrot.slane %v555, 4
      %v557 = vrot.slane %v398, 5
      %v558 = vsel %vm546, %v556, %v557
      %v559 = vrot.slane %v399, 5
      %v560 = vrot.slane %v559, 4
      %v561 = vrot.slane %v400, 5
      %v562 = vsel %vm546, %v560, %v561
      %v563 = vrot.slane %v401, 5
      %v564 = vrot.slane %v563, 4
      %v565 = vrot.slane %v402, 5
      %v566 = vsel %vm546, %v564, %v565
      %v567 = vrot.slane %v403, 5
      %v568 = vrot.slane %v567, 4
      %v569 = vrot.slane %v404, 5
      %v570 = vsel %vm546, %v568, %v569
      %v571 = vrot.slane %v405, 5
      %v572 = vrot.slane %v571, 4
      %v573 = vrot.slane %v406, 5
      %v574 = vsel %vm546, %v572, %v573
      %v575 = vrot.slane %v407, 5
      %v576 = vrot.slane %v575, 4
      %v577 = vrot.slane %v408, 5
      %v578 = vsel %vm546, %v576, %v577
      %v580 = vshrl.u32 %v409, 16
      %v582 = vrot.slane %v580, 4
      %v583 = vshll.u32 %v409, 16
      %v585 = vrot.slane %v583, 5
      %v586 = vor.u32 %v582, %v585
      %v587 = vrot.slane %v586, 4
      %v589 = vshll.u32 %v410, 16
      %v591 = vrot.slane %v589, 5
      %v592 = vsel %vm415, %v587, %v591
      %v595 = vrot.slane %v409, 5
      %v596 = vrot.slane %v595, 4
      %v597 = vrot.slane %v410, 5
      %v598 = vsel %vm546, %v596, %v597
      %v600 = vshrl.u32 %v411, 16
      %v602 = vrot.slane %v600, 4
      %v603 = vshll.u32 %v411, 16
      %v605 = vrot.slane %v603, 5
      %v606 = vor.u32 %v602, %v605
      %v607 = vrot.slane %v606, 4
      %v609 = vshll.u32 %v412, 16
      %v611 = vrot.slane %v609, 5
      %v612 = vsel %vm415, %v607, %v611
      %v615 = vrot.slane %v411, 5
      %v616 = vrot.slane %v615, 4
      %v617 = vrot.slane %v412, 5
      %v618 = vsel %vm546, %v616, %v617
      %v619 = vunpack.c.l.b16 %v393
      %v620 = vunpack.c.l.b16 %v395
      %v621 = vunpack.c.l.b16 %v397
      %v622 = vunpack.c.l.b16 %v399
      %v623 = vunpack.c.l.b16 %v401
      %v624 = vunpack.c.l.b16 %v403
      %v625 = vunpack.c.l.b16 %v405
      %v626 = vunpack.c.l.b16 %v407
      %v627 = vpack.c.b16 %v620, %v619
      %v628 = vpack.c.b16 %v622, %v621
      %v629 = vpack.c.b16 %v624, %v623
      %v630 = vpack.c.b16 %v626, %v625
      %v631 = vunpack.c.l.b16 %v429
      %v632 = vunpack.c.l.b16 %v443
      %v633 = vunpack.c.l.b16 %v457
      %v634 = vunpack.c.l.b16 %v471
      %v635 = vunpack.c.l.b16 %v485
      %v636 = vunpack.c.l.b16 %v499
      %v637 = vunpack.c.l.b16 %v513
      %v638 = vunpack.c.l.b16 %v527
      %v639 = vpack.c.b16 %v632, %v631
      %v640 = vpack.c.b16 %v634, %v633
      %v641 = vpack.c.b16 %v636, %v635
      %v642 = vpack.c.b16 %v638, %v637
      %643 = vrot.lane.b32.xlu0 %v639, 64
      %v644 = vpop.permute.xlu0 %643
      %645 = vrot.lane.b32.xlu0 %v640, 64
      %v646 = vpop.permute.xlu0 %645
      %647 = vrot.lane.b32.xlu0 %v641, 64
      %v648 = vpop.permute.xlu0 %647
      %649 = vrot.lane.b32.xlu0 %v642, 64
      %v650 = vpop.permute.xlu0 %649
      %v651 = vunpack.c.l.b16 %v550
      %v652 = vunpack.c.l.b16 %v554
      %v653 = vunpack.c.l.b16 %v558
      %v654 = vunpack.c.l.b16 %v562
      %v655 = vunpack.c.l.b16 %v566
      %v656 = vunpack.c.l.b16 %v570
      %v657 = vunpack.c.l.b16 %v574
      %v658 = vunpack.c.l.b16 %v578
      %v659 = vpack.c.b16 %v652, %v651
      %v660 = vpack.c.b16 %v654, %v653
      %v661 = vpack.c.b16 %v656, %v655
      %v662 = vpack.c.b16 %v658, %v657
      %v663 = vunpack.c.l.b16 %v409
      %v664 = vpack.c.b16 %v621, %v620
      %v665 = vpack.c.b16 %v623, %v622
      %v666 = vpack.c.b16 %v625, %v624
      %v667 = vpack.c.b16 %v663, %v626
      %668 = vrot.lane.b32.xlu0 %v664, 64
      %v669 = vpop.permute.xlu0 %668
      %670 = vrot.lane.b32.xlu0 %v665, 64
      %v671 = vpop.permute.xlu0 %670
      %672 = vrot.lane.b32.xlu0 %v666, 64
      %v673 = vpop.permute.xlu0 %672
      %674 = vrot.lane.b32.xlu0 %v667, 64
      %v675 = vpop.permute.xlu0 %674
      %v676 = vunpack.c.l.b16 %v592
      %v677 = vpack.c.b16 %v633, %v632
      %v678 = vpack.c.b16 %v635, %v634
      %v679 = vpack.c.b16 %v637, %v636
      %v680 = vpack.c.b16 %v676, %v638
      %v681 = vunpack.c.l.b16 %v598
      %v682 = vpack.c.b16 %v653, %v652
      %v683 = vpack.c.b16 %v655, %v654
      %v684 = vpack.c.b16 %v657, %v656
      %v685 = vpack.c.b16 %v681, %v658
      %686 = vrot.lane.b32.xlu0 %v682, 64
      %v687 = vpop.permute.xlu0 %686
      %688 = vrot.lane.b32.xlu0 %v683, 64
      %v689 = vpop.permute.xlu0 %688
      %690 = vrot.lane.b32.xlu0 %v684, 64
      %v691 = vpop.permute.xlu0 %690
      %692 = vrot.lane.b32.xlu0 %v685, 64
      %v693 = vpop.permute.xlu0 %692
      %v694 = vunpack.c.l.b16 %v411
      %v695 = vpack.c.b16 %v694, %v663
      %v696 = vunpack.c.l.b16 %v612
      %v697 = vpack.c.b16 %v696, %v676
      %698 = vrot.lane.b32.xlu0 %v697, 64
      %v699 = vpop.permute.xlu0 %698
      %v700 = vunpack.c.l.b16 %v618
      %v701 = vpack.c.b16 %v700, %v681
      %vm702 = vcmask 523264
      %v705 = vsel %vm702, %v627, %v644
      %v709 = vsel %vm702, %v628, %v646
      %v713 = vsel %vm702, %v629, %v648
      %v717 = vsel %vm702, %v630, %v650
      %v721 = vsel %vm702, %v659, %v669
      %v725 = vsel %vm702, %v660, %v671
      %v729 = vsel %vm702, %v661, %v673
      %v733 = vsel %vm702, %v662, %v675
      %v737 = vsel %vm702, %v677, %v687
      %v741 = vsel %vm702, %v678, %v689
      %v745 = vsel %vm702, %v679, %v691
      %v749 = vsel %vm702, %v680, %v693
      %v753 = vsel %vm702, %v695, %v699
      %v755 = vld [vmem:[%s1] sm:$0xf]
      %v756 = vld [vmem:[%s1 + $0x4] sm:$0xf]
      %v757 = vld [vmem:[%s1 + $0x8] sm:$0xf]
      %v758 = vld [vmem:[%s1 + $0xc] sm:$0xf]
      %v759 = vld [vmem:[%s1 + $0x10] sm:$0xf]
      %v760 = vld [vmem:[%s1 + $0x14] sm:$0xf]
      %v761 = vld [vmem:[%s1 + $0x18] sm:$0xf]
      %v762 = vld [vmem:[%s1 + $0x1c] sm:$0xf]
      %v763 = vld [vmem:[%s1 + $0x20] sm:$0xf]
      %v764 = vld [vmem:[%s1 + $0x24] sm:$0xf]
      %v765 = vld [vmem:[%s1 + $0x28] sm:$0xf]
      %v766 = vld [vmem:[%s1 + $0x2c] sm:$0xf]
      %v767 = vld [vmem:[%s1 + $0x30] sm:$0xf]
      %v768 = vld [vmem:[%s1 + $0x34] sm:$0xf]
      %v769 = vld [vmem:[%s1 + $0x38] sm:$0xf]
      %v770 = vld [vmem:[%s1 + $0x3c] sm:$0xf]
      %v771 = vld [vmem:[%s1 + $0x40] sm:$0xf]
      %v772 = vld [vmem:[%s1 + $0x44] sm:$0xf]
      %v773 = vld [vmem:[%s1 + $0x48] sm:$0xf]
      %v774 = vld [vmem:[%s1 + $0x4c] sm:$0xf]
      %v775 = vld [vmem:[%s1 + $0x50] sm:$0xf]
      %v776 = vld [vmem:[%s1 + $0x54] sm:$0xf]
      %v777 = vld [vmem:[%s1 + $0x58] sm:$0xf]
      %v778 = vld [vmem:[%s1 + $0x5c] sm:$0xf]
      %v779 = vld [vmem:[%s1 + $0x60] sm:$0xf]
      %v780 = vld [vmem:[%s1 + $0x64] sm:$0xf]
      %v781 = vld [vmem:[%s1 + $0x68] sm:$0xf]
      %v782 = vld [vmem:[%s1 + $0x6c] sm:$0xf]
      %v783 = vld [vmem:[%s1 + $0x70] sm:$0xf]
      %v784 = vld [vmem:[%s1 + $0x74] sm:$0xf]
      %v785 = vld [vmem:[%s1 + $0x78] sm:$0xf]
      %v786 = vld [vmem:[%s1 + $0x7c] sm:$0xf]
      %v787 = vld [vmem:[%s1 + $0x80] sm:$0xf]
      %v788 = vld [vmem:[%s1 + $0x84] sm:$0xf]
      %v789 = vld [vmem:[%s1 + $0x88] sm:$0xf]
      %v790 = vld [vmem:[%s1 + $0x8c] sm:$0xf]
      %v791 = vld [vmem:[%s1 + $0x90] sm:$0xf]
      %v792 = vld [vmem:[%s1 + $0x94] sm:$0xf]
      %v793 = vld [vmem:[%s1 + $0x98] sm:$0xf]
      %v794 = vld [vmem:[%s1 + $0x9c] sm:$0xf]
      %v795 = vld [vmem:[%s1 + $0xa0] sm:$0xf]
      %v796 = vld [vmem:[%s1 + $0xa4] sm:$0xf]
      %v797 = vld [vmem:[%s1 + $0xa8] sm:$0xf]
      %v798 = vld [vmem:[%s1 + $0xac] sm:$0xf]
      %v799 = vld [vmem:[%s1 + $0xb0] sm:$0xf]
      %v800 = vld [vmem:[%s1 + $0xb4] sm:$0xf]
      %v801 = vld [vmem:[%s1 + $0xb8] sm:$0xf]
      %v802 = vld [vmem:[%s1 + $0xbc] sm:$0xf]
      %v803 = vld [vmem:[%s1 + $0xc0] sm:$0xf]
      %v804 = vld [vmem:[%s1 + $0xc4] sm:$0xf]
      %v805 = vld [vmem:[%s1 + $0xc8] sm:$0xf]
      %v806 = vld [vmem:[%s1 + $0xcc] sm:$0xf]
      %v807 = vld [vmem:[%s1 + $0xd0] sm:$0xf]
      %v808 = vld [vmem:[%s1 + $0xd4] sm:$0xf]
      %v809 = vld [vmem:[%s1 + $0xd8] sm:$0xf]
      %v810 = vld [vmem:[%s1 + $0xdc] sm:$0xf]
      %v811 = vld [vmem:[%s1 + $0xe0] sm:$0xf]
      %v812 = vld [vmem:[%s1 + $0xe4] sm:$0xf]
      %v813 = vld [vmem:[%s1 + $0xe8] sm:$0xf]
      %v814 = vld [vmem:[%s1 + $0xec] sm:$0xf]
      %v815 = vld [vmem:[%s1 + $0xf0] sm:$0xf]
      %v816 = vld [vmem:[%s1 + $0xf4] sm:$0xf]
      %v817 = vld [vmem:[%s1 + $0xf8] sm:$0xf]
      %v818 = vld [vmem:[%s1 + $0xfc] sm:$0xf]
      %v819 = vld [vmem:[%s1 + $0x100] sm:$0xf]
      %v820 = vld [vmem:[%s1 + $0x104] sm:$0xf]
      %v821 = vld [vmem:[%s1 + $0x108] sm:$0xf]
      %v822 = vld [vmem:[%s1 + $0x10c] sm:$0xf]
      %v823 = vld [vmem:[%s1 + $0x110] sm:$0xf]
      %v824 = vld [vmem:[%s1 + $0x114] sm:$0xf]
      %v825 = vld [vmem:[%s1 + $0x118] sm:$0xf]
      %v826 = vld [vmem:[%s1 + $0x11c] sm:$0xf]
      %v827 = vld [vmem:[%s2] sm:$0x1]
      %v829 = vlaneseq
      %v830 = vshrl.u32 %v829, 7
      %v831 = vsub.s32 0, %v830
      %v832 = vrot.slane %v827, %v831
      %v906 = vunpack.c.l.b16 %v755
      %v907 = vunpack.c.l.b16 %v756
      %v908 = vunpack.c.l.b16 %v757
      %v909 = vunpack.c.l.b16 %v758
      %v910 = vunpack.c.l.b16 %v759
      %v911 = vunpack.c.l.b16 %v760
      %v912 = vunpack.c.l.b16 %v761
      %v913 = vunpack.c.l.b16 %v762
      %v914 = vunpack.c.l.b16 %v763
      %v915 = vunpack.c.l.b16 %v764
      %v916 = vunpack.c.l.b16 %v765
      %v917 = vunpack.c.l.b16 %v766
      %v918 = vunpack.c.l.b16 %v767
      %v919 = vunpack.c.l.b16 %v768
      %v920 = vunpack.c.l.b16 %v769
      %v921 = vunpack.c.l.b16 %v770
      %v922 = vunpack.c.l.b16 %v771
      %v923 = vunpack.c.l.b16 %v772
      %v924 = vunpack.c.l.b16 %v773
      %v925 = vunpack.c.l.b16 %v774
      %v926 = vunpack.c.l.b16 %v775
      %v927 = vunpack.c.l.b16 %v776
      %v928 = vunpack.c.l.b16 %v777
      %v929 = vunpack.c.l.b16 %v778
      %v930 = vunpack.c.l.b16 %v779
      %v931 = vunpack.c.l.b16 %v780
      %v932 = vunpack.c.l.b16 %v781
      %v933 = vunpack.c.l.b16 %v782
      %v934 = vunpack.c.l.b16 %v783
      %v935 = vunpack.c.l.b16 %v784
      %v936 = vunpack.c.l.b16 %v785
      %v937 = vunpack.c.l.b16 %v786
      %v938 = vunpack.c.l.b16 %v787
      %v939 = vunpack.c.l.b16 %v788
      %v940 = vunpack.c.l.b16 %v789
      %v941 = vunpack.c.l.b16 %v790
      %v942 = vunpack.c.l.b16 %v791
      %v943 = vunpack.c.l.b16 %v792
      %v944 = vunpack.c.l.b16 %v793
      %v945 = vunpack.c.l.b16 %v794
      %v946 = vunpack.c.l.b16 %v795
      %v947 = vunpack.c.l.b16 %v796
      %v948 = vunpack.c.l.b16 %v797
      %v949 = vunpack.c.l.b16 %v798
      %v950 = vunpack.c.l.b16 %v799
      %v951 = vunpack.c.l.b16 %v800
      %v952 = vunpack.c.l.b16 %v801
      %v953 = vunpack.c.l.b16 %v802
      %v954 = vunpack.c.l.b16 %v803
      %v955 = vunpack.c.l.b16 %v804
      %v956 = vunpack.c.l.b16 %v805
      %v957 = vunpack.c.l.b16 %v806
      %v958 = vunpack.c.l.b16 %v807
      %v959 = vunpack.c.l.b16 %v808
      %v960 = vunpack.c.l.b16 %v809
      %v961 = vunpack.c.l.b16 %v810
      %v962 = vunpack.c.l.b16 %v811
      %v963 = vunpack.c.l.b16 %v812
      %v964 = vunpack.c.l.b16 %v813
      %v965 = vunpack.c.l.b16 %v814
      %v966 = vunpack.c.l.b16 %v815
      %v967 = vunpack.c.l.b16 %v816
      %v968 = vunpack.c.l.b16 %v817
      %v969 = vunpack.c.l.b16 %v818
      %v970 = vunpack.c.l.b16 %v819
      %v971 = vunpack.c.l.b16 %v820
      %v972 = vunpack.c.l.b16 %v821
      %v973 = vunpack.c.l.b16 %v822
      %v974 = vunpack.c.l.b16 %v823
      %v975 = vunpack.c.l.b16 %v824
      %v976 = vunpack.c.l.b16 %v825
      %v977 = vunpack.c.l.b16 %v826
      %v978 = vpack.c.b16 %v907, %v906
      %v979 = vpack.c.b16 %v909, %v908
      %v980 = vpack.c.b16 %v911, %v910
      %v981 = vpack.c.b16 %v913, %v912
      %v982 = vpack.c.b16 %v915, %v914
      %v983 = vpack.c.b16 %v917, %v916
      %v984 = vpack.c.b16 %v919, %v918
      %v985 = vpack.c.b16 %v921, %v920
      %v986 = vpack.c.b16 %v923, %v922
      %v987 = vpack.c.b16 %v925, %v924
      %v988 = vpack.c.b16 %v927, %v926
      %v989 = vpack.c.b16 %v929, %v928
      %v990 = vpack.c.b16 %v931, %v930
      %v991 = vpack.c.b16 %v933, %v932
      %v992 = vpack.c.b16 %v935, %v934
      %v993 = vpack.c.b16 %v937, %v936
      %v994 = vpack.c.b16 %v939, %v938
      %v995 = vpack.c.b16 %v941, %v940
      %v996 = vpack.c.b16 %v943, %v942
      %v997 = vpack.c.b16 %v945, %v944
      %v998 = vpack.c.b16 %v947, %v946
      %v999 = vpack.c.b16 %v949, %v948
      %v1000 = vpack.c.b16 %v951, %v950
      %v1001 = vpack.c.b16 %v953, %v952
      %v1002 = vpack.c.b16 %v955, %v954
      %v1003 = vpack.c.b16 %v957, %v956
      %v1004 = vpack.c.b16 %v959, %v958
      %v1005 = vpack.c.b16 %v961, %v960
      %v1006 = vpack.c.b16 %v963, %v962
      %v1007 = vpack.c.b16 %v965, %v964
      %v1008 = vpack.c.b16 %v967, %v966
      %v1009 = vpack.c.b16 %v969, %v968
      %v1010 = vpack.c.b16 %v971, %v970
      %v1011 = vpack.c.b16 %v973, %v972
      %v1012 = vpack.c.b16 %v975, %v974
      %v1013 = vpack.c.b16 %v977, %v976
      %v1050 = vsel %vm702, %v660, 0
      %v1052 = vsel %vm702, %v661, 0
      %v1054 = vsel %vm702, %v662, 0
      %v1057 = vsel %vm702, %v701, 0
      %1059 = vmatprep.subr.bf16.mxu0 0
      %1060 = vmatpush1.bf16.msra.mxu0 %v978
      %1061 = vmatprep.subr.bf16.mxu0 0
      %1062 = vmatpush1.bf16.msra.mxu0 %v979
      %1063 = vmatprep.subr.bf16.mxu0 0
      %1064 = vmatpush1.bf16.msra.mxu0 %v980
      %1065 = vmatprep.subr.bf16.mxu0 0
      %1066 = vmatpush1.bf16.msra.mxu0 %v981
      %1067 = vmatprep.subr.bf16.mxu0 0
      %1068 = vmatpush1.bf16.msra.mxu0 %v982
      %1069 = vmatprep.subr.bf16.mxu0 0
      %1070 = vmatpush1.bf16.msra.mxu0 %v983
      %1071 = vmatprep.subr.bf16.mxu0 0
      %1072 = vmatpush1.bf16.msra.mxu0 %v984
      %1073 = vmatprep.subr.bf16.mxu0 0
      %1074 = vmatpush1.bf16.msra.mxu0 %v985
      %1075 = vmatprep.subr.bf16.mxu0 0
      %1076 = vmatpush1.bf16.msra.mxu0 %v986
      %1077 = vmatprep.subr.bf16.mxu0 0
      %1078 = vmatpush1.bf16.msra.mxu0 %v987
      %1079 = vmatprep.subr.bf16.mxu0 0
      %1080 = vmatpush1.bf16.msra.mxu0 %v988
      %1081 = vmatprep.subr.bf16.mxu0 0
      %1082 = vmatpush1.bf16.msra.mxu0 %v989
      %1083 = vmatprep.subr.bf16.mxu0 0
      %1084 = vmatpush1.bf16.msra.mxu0 %v990
      %1085 = vmatprep.subr.bf16.mxu0 0
      %1086 = vmatpush1.bf16.msra.mxu0 %v991
      %1087 = vmatprep.subr.bf16.mxu0 0
      %1088 = vmatpush1.bf16.msra.mxu0 %v992
      %1089 = vmatprep.subr.bf16.mxu0 0
      %1090 = vmatpush1.bf16.msra.mxu0 %v993
      %1091 = vmatprep.mubr.bf16.mxu0 %v721
      %1092 = vmatmul.mubr.bf16.gmra.mrb[0].mxu0 %v705
      %v1093 = vpop.f32.mrb[0].mxu0
      %v1094 = vadd.f32 %v832, %v1093
      %v1095 = vpop.f32.mrb[0].mxu0
      %v1096 = vpop.f32.mrb[0].mxu0
      %v1097 = vadd.f32 %v832, %v1096
      %v1098 = vpop.f32.mrb[0].mxu0
      %1099 = vmatprep.mubr.bf16.mxu0 %v725
      %1100 = vmatmul.mubr.bf16.gmra.mrb[0].mxu0 %v709
      %v1101 = vpop.f32.mrb[0].mxu0
      %v1102 = vadd.f32 %v832, %v1101
      %v1103 = vpop.f32.mrb[0].mxu0
      %v1104 = vpop.f32.mrb[0].mxu0
      %v1105 = vadd.f32 %v832, %v1104
      %v1106 = vpop.f32.mrb[0].mxu0
      %1107 = vmatprep.mubr.bf16.mxu0 %v729
      %1108 = vmatmul.mubr.bf16.gmra.mrb[0].mxu0 %v713
      %v1109 = vpop.f32.mrb[0].mxu0
      %v1110 = vadd.f32 %v832, %v1109
      %v1111 = vpop.f32.mrb[0].mxu0
      %v1112 = vpop.f32.mrb[0].mxu0
      %v1113 = vadd.f32 %v832, %v1112
      %v1114 = vpop.f32.mrb[0].mxu0
      %1115 = vmatprep.mubr.bf16.mxu0 %v733
      %1116 = vmatmul.mubr.bf16.gmra.mrb[0].mxu0 %v717
      %v1117 = vpop.f32.mrb[0].mxu0
      %v1118 = vadd.f32 %v832, %v1117
      %v1119 = vpop.f32.mrb[0].mxu0
      %v1120 = vpop.f32.mrb[0].mxu0
      %v1121 = vadd.f32 %v832, %v1120
      %v1122 = vpop.f32.mrb[0].mxu0
      %1123 = vdwg.mxu0
      %1124 = vmatprep.subr.bf16.mxu0 0
      %1125 = vmatpush1.bf16.msra.mxu0 %v994
      %1126 = vmatprep.subr.bf16.mxu0 0
      %1127 = vmatpush1.bf16.msra.mxu0 %v995
      %1128 = vmatprep.subr.bf16.mxu0 0
      %1129 = vmatpush1.bf16.msra.mxu0 %v996
      %1130 = vmatprep.subr.bf16.mxu0 0
      %1131 = vmatpush1.bf16.msra.mxu0 %v997
      %1132 = vmatprep.subr.bf16.mxu0 0
      %1133 = vmatpush1.bf16.msra.mxu0 %v998
      %1134 = vmatprep.subr.bf16.mxu0 0
      %1135 = vmatpush1.bf16.msra.mxu0 %v999
      %1136 = vmatprep.subr.bf16.mxu0 0
      %1137 = vmatpush1.bf16.msra.mxu0 %v1000
      %1138 = vmatprep.subr.bf16.mxu0 0
      %1139 = vmatpush1.bf16.msra.mxu0 %v1001
      %1140 = vmatprep.subr.bf16.mxu0 0
      %1141 = vmatpush1.bf16.msra.mxu0 %v1002
      %1142 = vmatprep.subr.bf16.mxu0 0
      %1143 = vmatpush1.bf16.msra.mxu0 %v1003
      %1144 = vmatprep.subr.bf16.mxu0 0
      %1145 = vmatpush1.bf16.msra.mxu0 %v1004
      %1146 = vmatprep.subr.bf16.mxu0 0
      %1147 = vmatpush1.bf16.msra.mxu0 %v1005
      %1148 = vmatprep.subr.bf16.mxu0 0
      %1149 = vmatpush1.bf16.msra.mxu0 %v1006
      %1150 = vmatprep.subr.bf16.mxu0 0
      %1151 = vmatpush1.bf16.msra.mxu0 %v1007
      %1152 = vmatprep.subr.bf16.mxu0 0
      %1153 = vmatpush1.bf16.msra.mxu0 %v1008
      %1154 = vmatprep.subr.bf16.mxu0 0
      %1155 = vmatpush1.bf16.msra.mxu0 %v1009
      %1156 = vmatprep.mubr.bf16.mxu0 %v709
      %1157 = vmatmul.mubr.bf16.gmra.mrb[0].mxu0 %v737
      %v1158 = vpop.f32.mrb[0].mxu0
      %v1159 = vadd.f32 %v1094, %v1158
      %v1160 = vpop.f32.mrb[0].mxu0
      %v1161 = vpop.f32.mrb[0].mxu0
      %v1162 = vadd.f32 %v1097, %v1161
      %v1163 = vpop.f32.mrb[0].mxu0
      %1164 = vmatprep.mubr.bf16.mxu0 %v713
      %1165 = vmatmul.mubr.bf16.gmra.mrb[0].mxu0 %v741
      %v1166 = vpop.f32.mrb[0].mxu0
      %v1167 = vadd.f32 %v1102, %v1166
      %v1168 = vpop.f32.mrb[0].mxu0
      %v1169 = vpop.f32.mrb[0].mxu0
      %v1170 = vadd.f32 %v1105, %v1169
      %v1171 = vpop.f32.mrb[0].mxu0
      %1172 = vmatprep.mubr.bf16.mxu0 %v717
      %1173 = vmatmul.mubr.bf16.gmra.mrb[0].mxu0 %v745
      %v1174 = vpop.f32.mrb[0].mxu0
      %v1175 = vadd.f32 %v1110, %v1174
      %v1176 = vpop.f32.mrb[0].mxu0
      %v1177 = vpop.f32.mrb[0].mxu0
      %v1178 = vadd.f32 %v1113, %v1177
      %v1179 = vpop.f32.mrb[0].mxu0
      %1180 = vmatprep.mubr.bf16.mxu0 %v753
      %1181 = vmatmul.mubr.bf16.gmra.mrb[0].mxu0 %v749
      %v1182 = vpop.f32.mrb[0].mxu0
      %v1183 = vadd.f32 %v1118, %v1182
      %v1184 = vpop.f32.mrb[0].mxu0
      %v1185 = vpop.f32.mrb[0].mxu0
      %v1186 = vadd.f32 %v1121, %v1185
      %v1187 = vpop.f32.mrb[0].mxu0
      %1188 = vdwg.mxu0
      %1189 = vmatprep.subr.bf16.mxu0 0
      %1190 = vmatpush1.bf16.msra.mxu0 %v1010
      %1191 = vmatprep.subr.bf16.mxu0 0
      %1192 = vmatpush1.bf16.msra.mxu0 %v1011
      %1193 = vmatprep.subr.bf16.mxu0 0
      %1194 = vmatpush1.bf16.msra.mxu0 %v1012
      %1195 = vmatprep.subr.bf16.mxu0 0
      %1196 = vmatpush1.bf16.msra.mxu0 %v1013
      %1197 = vmatprep.subr.bf16.mxu0 0
      %1198 = vmatpush1.bf16.msra.mxu0 0
      %1199 = vmatprep.subr.bf16.mxu0 0
      %1200 = vmatpush1.bf16.msra.mxu0 0
      %1201 = vmatprep.subr.bf16.mxu0 0
      %1202 = vmatpush1.bf16.msra.mxu0 0
      %1203 = vmatprep.subr.bf16.mxu0 0
      %1204 = vmatpush1.bf16.msra.mxu0 0
      %1205 = vmatprep.subr.bf16.mxu0 0
      %1206 = vmatpush1.bf16.msra.mxu0 0
      %1207 = vmatprep.subr.bf16.mxu0 0
      %1208 = vmatpush1.bf16.msra.mxu0 0
      %1209 = vmatprep.subr.bf16.mxu0 0
      %1210 = vmatpush1.bf16.msra.mxu0 0
      %1211 = vmatprep.subr.bf16.mxu0 0
      %1212 = vmatpush1.bf16.msra.mxu0 0
      %1213 = vmatprep.subr.bf16.mxu0 0
      %1214 = vmatpush1.bf16.msra.mxu0 0
      %1215 = vmatprep.subr.bf16.mxu0 0
      %1216 = vmatpush1.bf16.msra.mxu0 0
      %1217 = vmatprep.subr.bf16.mxu0 0
      %1218 = vmatpush1.bf16.msra.mxu0 0
      %1219 = vmatprep.subr.bf16.mxu0 0
      %1220 = vmatpush1.bf16.msra.mxu0 0
      %1221 = vmatprep.mubr.bf16.mxu0 0
      %1222 = vmatmul.mubr.bf16.gmra.mrb[0].mxu0 %v1050
      %v1223 = vpop.f32.mrb[0].mxu0
      %v1224 = vadd.f32 %v1159, %v1223
      %v1225 = vpop.f32.mrb[0].mxu0
      %v1226 = vpop.f32.mrb[0].mxu0
      %v1227 = vadd.f32 %v1162, %v1226
      %v1228 = vpop.f32.mrb[0].mxu0
      %1229 = vmatprep.mubr.bf16.mxu0 0
      %1230 = vmatmul.mubr.bf16.gmra.mrb[0].mxu0 %v1052
      %v1231 = vpop.f32.mrb[0].mxu0
      %v1232 = vadd.f32 %v1167, %v1231
      %v1233 = vpop.f32.mrb[0].mxu0
      %v1234 = vpop.f32.mrb[0].mxu0
      %v1235 = vadd.f32 %v1170, %v1234
      %v1236 = vpop.f32.mrb[0].mxu0
      %1237 = vmatprep.mubr.bf16.mxu0 0
      %1238 = vmatmul.mubr.bf16.gmra.mrb[0].mxu0 %v1054
      %v1239 = vpop.f32.mrb[0].mxu0
      %v1240 = vadd.f32 %v1175, %v1239
      %v1241 = vpop.f32.mrb[0].mxu0
      %v1242 = vpop.f32.mrb[0].mxu0
      %v1243 = vadd.f32 %v1178, %v1242
      %v1244 = vpop.f32.mrb[0].mxu0
      %1245 = vmatprep.mubr.bf16.mxu0 0
      %1246 = vmatmul.mubr.bf16.gmra.mrb[0].mxu0 %v1057
      %v1247 = vpop.f32.mrb[0].mxu0
      %v1248 = vadd.f32 %v1183, %v1247
      %v1249 = vpop.f32.mrb[0].mxu0
      %v1250 = vpop.f32.mrb[0].mxu0
      %v1251 = vadd.f32 %v1186, %v1250
      %v1252 = vpop.f32.mrb[0].mxu0
      %1253 = vdwg.mxu0
      %v1254 = vpack.c.bf16 %v1224, %v1224
      %v1255 = vpack.c.bf16 %v1227, %v1227
      %v1256 = vpack.c.bf16 %v1232, %v1232
      %v1257 = vpack.c.bf16 %v1235, %v1235
      %v1258 = vpack.c.bf16 %v1240, %v1240
      %v1259 = vpack.c.bf16 %v1243, %v1243
      %v1260 = vpack.c.bf16 %v1248, %v1248
      %v1261 = vpack.c.bf16 %v1251, %v1251
      %1262 = vst [vmem:[%s170] sm:$0xf] %v1254
      %1263 = vst [vmem:[%s170 + $0x4] sm:$0xf] %v1255
      %1264 = vst [vmem:[%s170 + $0x8] sm:$0xf] %v1256
      %1265 = vst [vmem:[%s170 + $0xc] sm:$0xf] %v1257
      %1266 = vst [vmem:[%s170 + $0x10] sm:$0xf] %v1258
      %1267 = vst [vmem:[%s170 + $0x14] sm:$0xf] %v1259
      %1268 = vst [vmem:[%s170 + $0x18] sm:$0xf] %v1260
      %1269 = vst [vmem:[%s170 + $0x1c] sm:$0xf] %v1261
      %p1270 = scmp.lt.s32.totalorder %s14, 1
      %s1271 = scalar_select %p1270, %s14, 1
      %s1272 = smul.addr %s1271, 8
      %s1273 = smul.addr %s1272, 4
      %s1274 = scalar_lea.vmem %s3, %s1273
      // Predicated region
      $region33: #{segd_forward.2} parent=31 // pred_check
        %p1275 = pneg %p100
      $region34: #{segd_forward.2} parent=31 // pred_check_branch
        %1277 = sbr.rel (%p1275) target = $region36
      $region35: #{segd_forward.2} parent=31 // pred_region
        _
      $region36: #{segd_forward.2} parent=31 // pred_fallthru
        _
    $region32: #{segd_forward.2} parent=5 // pred_fallthru
      _
    %p1278 = scmp.le.s32.totalorder 2, %s9
    // Predicated region
    $region37: #{segd_forward.2} parent=5 // pred_check
      %p1279 = pneg %p1278
    $region38: #{segd_forward.2} parent=5 // pred_check_branch
      %1281 = sbr.rel (%p1279) target = $region40
    $region39: #{segd_forward.2} parent=5 // pred_region
      %s1282 = ssub.s32 %s9, 2
      // Predicated region
      $region41: #{segd_forward.2} parent=39 // pred_check
        %p1283 = pneg %p106
      $region42: #{segd_forward.2} parent=39 // pred_check_branch
        %1285 = sbr.rel (%p1283) target = $region44
      $region43: #{segd_forward.2} parent=39 // pred_region
        %p1286 = scmp.lt.s32.totalorder %s15, 1
        %s1287 = scalar_select %p1286, %s15, 1
        %s1288 = smul.addr %s1287, 8
        %s1289 = smul.addr %s1288, 4
        %s1290 = scalar_lea.vmem %s3, %s1289
      $region44: #{segd_forward.2} parent=39 // pred_fallthru
        _
    $region40: #{segd_forward.2} parent=5 // pred_fallthru
      _
  $region6: #{segd_forward.2} parent=0 // loop_footer
    %s13 = sadd.s32 1, %s9
  $region7: #{segd_forward.2} parent=0 // loop_footer_branch
    %8 = sbr.rel target = $region3
  $region8: #{segd_forward.2} parent=0 // loop_exit
    _

// kernel: segd_forward.3
$region0: #{segd_forward.3}
  #allocation0 [shape = 'u32[]', space=smem, size = 0x4, offset = 0x4, fixed_abs, tag = 'smem constant byte address 0x4 - core index']
  #allocation1 [shape = 'u32[144,128]{1,0:T(1,128)}', space=vmem, size = 0x12000, scoped, tag = 'internal scratch']
  #allocation2 [shape = 'bf16[18,18,32]{2,1,0:T(8,128)(2,1)}', space=vmem, size = 0x1b000, scoped, tag = 'scratch operand']
  %s0 = inlined_call_operand.vmem [shape: bf16[2,16,16,32], index: 0, kind: input, shape index: {}]
  %s1 = inlined_call_operand.vmem [shape: bf16[288,64], index: 1, kind: input, shape index: {}]
  %s2 = inlined_call_operand.vmem [shape: f32[1,64], index: 2, kind: input, shape index: {}]
  %s3 = inlined_call_operand.vmem [shape: f32[64,20], index: 3, kind: input, shape index: {}]
  %s4 = inlined_call_operand.vmem [shape: f32[1,20], index: 4, kind: input, shape index: {}]
  %s5 = inlined_call_operand.vmem [shape: f32[2,16,16,20], index: 5, kind: output, shape index: {}]
  %s6 = sld [smem:[#allocation0]]
  $region53: #{segd_forward.3} parent=0
    _
  %s8 = ssub.s32 1, %s6
  %s9 = scalar_select 0, %s8, %s6
  loop: start=0, step=1, limit=4
  $region2: #{segd_forward.3} parent=0 // loop_pre_header
    _
  $region3: #{segd_forward.3} parent=0 // loop_header
    %s11 = sphi 0, %s15
    %p12 = scmp.ge.s32.totalorder %s11, 4
    %s21 = sphi 0, %s23
    %s24 = sphi 0, %s21
    %s25 = sphi 0, %s24
    %s41 = sphi 0, %s25
    %s45 = sphi 0, %s45
    %s47 = sphi 0, %s45
    %s48 = sphi 0, %s47
    %s62 = sphi 0, %s48
    %s66 = sphi 0, %s66
    %s68 = sphi 0, %s66
    %s69 = sphi 0, %s68
    %s83 = sphi 0, %s69
    %s87 = sphi 0, %s87
    %s89 = sphi 0, %s87
    %s90 = sphi 0, %s89
    %s104 = sphi 0, %s90
    %s108 = sphi 0, %s108
    %s110 = sphi 0, %s108
    %s111 = sphi 0, %s110
    %s125 = sphi 0, %s111
    %s131 = sphi 0, %s133
    %s134 = sphi 0, %s131
    %s135 = sphi 0, %s134
    %s151 = sphi 0, %s135
  $region4: #{segd_forward.3} parent=0 // loop_header_branch
    %14 = sbr.rel (%p12) target = $region8
  $region5: #{segd_forward.3} parent=0 // loop_body
    %s16 = ssub.s32 %s11, 1
    %s17 = ssub.s32 %s11, 2
    %s18 = sadd.s32 %s11, 1
    %s19 = ssub.s32 %s11, %s18
    %p20 = scmp.eq.s32.totalorder %s19, 0
    %s22 = sadd.s32 %s21, 1
    %s23 = scalar_select %p20, %s21, %s22
    %p26 = pneg %p20
    %p27 = scmp.eq.s32.totalorder %s11, 1
    %p28 = por %p26, %p27
    %p29 = scmp.ne.s32.totalorder %s21, %s24
    %p30 = scmp.eq.s32.totalorder %s11, 0
    %p31 = por %p29, %p30
    %p32 = scmp.ne.s32.totalorder %s21, %s24
    %p33 = scmp.eq.s32.totalorder %s16, 1
    %p34 = por %p32, %p33
    %p35 = scmp.ne.s32.totalorder %s24, %s25
    %p36 = scmp.eq.s32.totalorder %s16, 0
    %p37 = por %p35, %p36
    %p38 = scmp.ne.s32.totalorder %s24, %s25
    %p39 = scmp.eq.s32.totalorder %s17, 1
    %p40 = por %p38, %p39
    %p42 = scmp.ne.s32.totalorder %s25, %s41
    %p43 = scmp.eq.s32.totalorder %s17, 0
    %p44 = por %p42, %p43
    %s46 = sadd.s32 %s45, 1
    %p49 = scmp.eq.s32.totalorder %s11, 1
    %p50 = scmp.ne.s32.totalorder %s45, %s47
    %p51 = scmp.eq.s32.totalorder %s11, 0
    %p52 = por %p50, %p51
    %p53 = scmp.ne.s32.totalorder %s45, %s47
    %p54 = scmp.eq.s32.totalorder %s16, 1
    %p55 = por %p53, %p54
    %p56 = scmp.ne.s32.totalorder %s47, %s48
    %p57 = scmp.eq.s32.totalorder %s16, 0
    %p58 = por %p56, %p57
    %p59 = scmp.ne.s32.totalorder %s47, %s48
    %p60 = scmp.eq.s32.totalorder %s17, 1
    %p61 = por %p59, %p60
    %p63 = scmp.ne.s32.totalorder %s48, %s62
    %p64 = scmp.eq.s32.totalorder %s17, 0
    %p65 = por %p63, %p64
    %s67 = sadd.s32 %s66, 1
    %p70 = scmp.eq.s32.totalorder %s11, 1
    %p71 = scmp.ne.s32.totalorder %s66, %s68
    %p72 = scmp.eq.s32.totalorder %s11, 0
    %p73 = por %p71, %p72
    %p74 = scmp.ne.s32.totalorder %s66, %s68
    %p75 = scmp.eq.s32.totalorder %s16, 1
    %p76 = por %p74, %p75
    %p77 = scmp.ne.s32.totalorder %s68, %s69
    %p78 = scmp.eq.s32.totalorder %s16, 0
    %p79 = por %p77, %p78
    %p80 = scmp.ne.s32.totalorder %s68, %s69
    %p81 = scmp.eq.s32.totalorder %s17, 1
    %p82 = por %p80, %p81
    %p84 = scmp.ne.s32.totalorder %s69, %s83
    %p85 = scmp.eq.s32.totalorder %s17, 0
    %p86 = por %p84, %p85
    %s88 = sadd.s32 %s87, 1
    %p91 = scmp.eq.s32.totalorder %s11, 1
    %p92 = scmp.ne.s32.totalorder %s87, %s89
    %p93 = scmp.eq.s32.totalorder %s11, 0
    %p94 = por %p92, %p93
    %p95 = scmp.ne.s32.totalorder %s87, %s89
    %p96 = scmp.eq.s32.totalorder %s16, 1
    %p97 = por %p95, %p96
    %p98 = scmp.ne.s32.totalorder %s89, %s90
    %p99 = scmp.eq.s32.totalorder %s16, 0
    %p100 = por %p98, %p99
    %p101 = scmp.ne.s32.totalorder %s89, %s90
    %p102 = scmp.eq.s32.totalorder %s17, 1
    %p103 = por %p101, %p102
    %p105 = scmp.ne.s32.totalorder %s90, %s104
    %p106 = scmp.eq.s32.totalorder %s17, 0
    %p107 = por %p105, %p106
    %s109 = sadd.s32 %s108, 1
    %p112 = scmp.eq.s32.totalorder %s11, 1
    %p113 = scmp.ne.s32.totalorder %s108, %s110
    %p114 = scmp.eq.s32.totalorder %s11, 0
    %p115 = por %p113, %p114
    %p116 = scmp.ne.s32.totalorder %s108, %s110
    %p117 = scmp.eq.s32.totalorder %s16, 1
    %p118 = por %p116, %p117
    %p119 = scmp.ne.s32.totalorder %s110, %s111
    %p120 = scmp.eq.s32.totalorder %s16, 0
    %p121 = por %p119, %p120
    %p122 = scmp.ne.s32.totalorder %s110, %s111
    %p123 = scmp.eq.s32.totalorder %s17, 1
    %p124 = por %p122, %p123
    %p126 = scmp.ne.s32.totalorder %s111, %s125
    %p127 = scmp.eq.s32.totalorder %s17, 0
    %p128 = por %p126, %p127
    %s129 = ssub.s32 %s11, %s18
    %p130 = scmp.eq.s32.totalorder %s129, 0
    %s132 = sadd.s32 %s131, 1
    %s133 = scalar_select %p130, %s131, %s132
    %p136 = pneg %p130
    %p137 = scmp.eq.s32.totalorder %s11, 1
    %p138 = por %p136, %p137
    %p139 = scmp.ne.s32.totalorder %s131, %s134
    %p140 = scmp.eq.s32.totalorder %s11, 0
    %p141 = por %p139, %p140
    %p142 = scmp.ne.s32.totalorder %s131, %s134
    %p143 = scmp.eq.s32.totalorder %s16, 1
    %p144 = por %p142, %p143
    %p145 = scmp.ne.s32.totalorder %s134, %s135
    %p146 = scmp.eq.s32.totalorder %s16, 0
    %p147 = por %p145, %p146
    %p148 = scmp.ne.s32.totalorder %s134, %s135
    %p149 = scmp.eq.s32.totalorder %s17, 1
    %p150 = por %p148, %p149
    %p152 = scmp.ne.s32.totalorder %s135, %s151
    %p153 = scmp.eq.s32.totalorder %s17, 0
    %p154 = por %p152, %p153
    %p155 = scmp.le.s32.totalorder 1, %s11
    %p156 = scmp.lt.s32.totalorder %s11, 3
    %p157 = pnand %p155, %p156
    %p158 = pneg %p157
    // Predicated region
    $region9: #{segd_forward.3} parent=5 // pred_check
      _
    $region10: #{segd_forward.3} parent=5 // pred_check_branch
      %160 = sbr.rel (%p157) target = $region12
    $region11: #{segd_forward.3} parent=5 // pred_region
      %s161 = ssub.s32 %s11, 1
      // Predicated region
      $region13: #{segd_forward.3} parent=11 // pred_check
        %p162 = pneg %p58
      $region14: #{segd_forward.3} parent=11 // pred_check_branch
        %164 = sbr.rel (%p162) target = $region16
      $region15: #{segd_forward.3} parent=11 // pred_region
        _
      $region16: #{segd_forward.3} parent=11 // pred_fallthru
        _
      // Predicated region
      $region17: #{segd_forward.3} parent=11 // pred_check
        %p165 = pneg %p79
      $region18: #{segd_forward.3} parent=11 // pred_check_branch
        %167 = sbr.rel (%p165) target = $region20
      $region19: #{segd_forward.3} parent=11 // pred_region
        _
      $region20: #{segd_forward.3} parent=11 // pred_fallthru
        _
      // Predicated region
      $region21: #{segd_forward.3} parent=11 // pred_check
        %p168 = pneg %p100
      $region22: #{segd_forward.3} parent=11 // pred_check_branch
        %170 = sbr.rel (%p168) target = $region24
      $region23: #{segd_forward.3} parent=11 // pred_region
        _
      $region24: #{segd_forward.3} parent=11 // pred_fallthru
        _
      // Predicated region
      $region25: #{segd_forward.3} parent=11 // pred_check
        %p171 = pneg %p121
      $region26: #{segd_forward.3} parent=11 // pred_check_branch
        %173 = sbr.rel (%p171) target = $region28
      $region27: #{segd_forward.3} parent=11 // pred_region
        _
      $region28: #{segd_forward.3} parent=11 // pred_fallthru
        _
    $region12: #{segd_forward.3} parent=5 // pred_fallthru
      _
    %p174 = scmp.lt.s32.totalorder %s11, 2
    // Predicated region
    $region29: #{segd_forward.3} parent=5 // pred_check
      %p175 = pneg %p174
    $region30: #{segd_forward.3} parent=5 // pred_check_branch
      %177 = sbr.rel (%p175) target = $region32
    $region31: #{segd_forward.3} parent=5 // pred_region
      // Predicated region
      $region33: #{segd_forward.3} parent=31 // pred_check
        %p178 = pneg %p31
      $region34: #{segd_forward.3} parent=31 // pred_check_branch
        %180 = sbr.rel (%p178) target = $region36
      $region35: #{segd_forward.3} parent=31 // pred_region
        %p181 = scmp.lt.s32.totalorder %s11, 1
        %s182 = scalar_select %p181, %s11, 1
        %s183 = smul.addr %s182, 32
        %s184 = smul.addr %s183, 4
        %s185 = scalar_lea.vmem %s0, %s184
      $region36: #{segd_forward.3} parent=31 // pred_fallthru
        _
    $region32: #{segd_forward.3} parent=5 // pred_fallthru
      _
    %p186 = scmp.le.s32.totalorder 1, %s11
    %p187 = scmp.lt.s32.totalorder %s11, 3
    %p188 = pnand %p186, %p187
    %p189 = pneg %p188
    // Predicated region
    $region37: #{segd_forward.3} parent=5 // pred_check
      _
    $region38: #{segd_forward.3} parent=5 // pred_check_branch
      %191 = sbr.rel (%p188) target = $region40
    $region39: #{segd_forward.3} parent=5 // pred_region
      %s192 = ssub.s32 %s11, 1
      %p193 = scmp.lt.s32.totalorder %s16, 1
      %s194 = scalar_select %p193, %s16, 1
      %s195 = smul.addr %s194, 32
      %s196 = smul.addr %s195, 4
      %s197 = scalar_lea.vmem %s0, %s196
      %p198 = pneg %p37
      %p199 = pneg %p34
      %p200 = pneg %p58
      %p201 = pneg %p55
      %p202 = pneg %p79
      %p203 = pneg %p76
      %p204 = pneg %p100
      %p205 = pneg %p97
      %p206 = pneg %p121
      %p207 = pneg %p118
      %p208 = pneg %p147
      %p209 = pneg %p144
      %p210 = scmp.lt.s32.totalorder %s16, 1
      %s211 = scalar_select %p210, %s16, 1
      %s212 = smul.addr %s211, 32
      %s213 = smul.addr %s212, 8
      %s214 = scalar_lea.vmem %s5, %s213
      %p215 = scmp.lt.s32.totalorder %s16, 1
      %s216 = scalar_select %p215, %s16, 1
      %s217 = smul.addr %s216, 32
      %s218 = smul.addr %s217, 4
      %s219 = scalar_lea.vmem %s0, %s218
      %p220 = scmp.lt.s32.totalorder %s16, 1
      %s221 = scalar_select %p220, %s16, 1
      %s222 = smul.addr %s221, 32
      %s223 = smul.addr %s222, 8
      %s224 = scalar_lea.vmem %s5, %s223
      %vm226 = vcmask 257024
      %227 = vst.msk [vmem:[#allocation2] sm:$0xf] %vm226, 0
      %228 = vst.msk [vmem:[#allocation2 + $0x4] sm:$0xf] %vm226, 0
      %vm229 = vcmask 253952
      %230 = vst.msk [vmem:[#allocation2 + $0x8] sm:$0x1] %vm229, 0
      %231 = vst.msk [vmem:[#allocation2 + $0xc] sm:$0xf] %vm226, 0
      %232 = vst.msk [vmem:[#allocation2 + $0x10] sm:$0xf] %vm226, 0
      %233 = vst.msk [vmem:[#allocation2 + $0x14] sm:$0x1] %vm229, 0
      %234 = vst.msk [vmem:[#allocation2 + $0x18] sm:$0xf] %vm226, 0
      %235 = vst.msk [vmem:[#allocation2 + $0x1c] sm:$0xf] %vm226, 0
      %236 = vst.msk [vmem:[#allocation2 + $0x20] sm:$0x1] %vm229, 0
      %237 = vst.msk [vmem:[#allocation2 + $0x24] sm:$0xf] %vm226, 0
      %238 = vst.msk [vmem:[#allocation2 + $0x28] sm:$0xf] %vm226, 0
      %239 = vst.msk [vmem:[#allocation2 + $0x2c] sm:$0x1] %vm229, 0
      %240 = vst.msk [vmem:[#allocation2 + $0x30] sm:$0xf] %vm226, 0
      %241 = vst.msk [vmem:[#allocation2 + $0x34] sm:$0xf] %vm226, 0
      %242 = vst.msk [vmem:[#allocation2 + $0x38] sm:$0x1] %vm229, 0
      %243 = vst.msk [vmem:[#allocation2 + $0x3c] sm:$0xf] %vm226, 0
      %244 = vst.msk [vmem:[#allocation2 + $0x40] sm:$0xf] %vm226, 0
      %245 = vst.msk [vmem:[#allocation2 + $0x44] sm:$0x1] %vm229, 0
      %246 = vst.msk [vmem:[#allocation2 + $0x48] sm:$0xf] %vm226, 0
      %247 = vst.msk [vmem:[#allocation2 + $0x4c] sm:$0xf] %vm226, 0
      %248 = vst.msk [vmem:[#allocation2 + $0x50] sm:$0x1] %vm229, 0
      %249 = vst.msk [vmem:[#allocation2 + $0x54] sm:$0xf] %vm226, 0
      %250 = vst.msk [vmem:[#allocation2 + $0x58] sm:$0xf] %vm226, 0
      %251 = vst.msk [vmem:[#allocation2 + $0x5c] sm:$0x1] %vm229, 0
      %252 = vst.msk [vmem:[#allocation2 + $0x60] sm:$0xf] %vm226, 0
      %253 = vst.msk [vmem:[#allocation2 + $0x64] sm:$0xf] %vm226, 0
      %254 = vst.msk [vmem:[#allocation2 + $0x68] sm:$0x1] %vm229, 0
      %255 = vst.msk [vmem:[#allocation2 + $0x6c] sm:$0xf] %vm226, 0
      %256 = vst.msk [vmem:[#allocation2 + $0x70] sm:$0xf] %vm226, 0
      %257 = vst.msk [vmem:[#allocation2 + $0x74] sm:$0x1] %vm229, 0
      %258 = vst.msk [vmem:[#allocation2 + $0x78] sm:$0xf] %vm226, 0
      %259 = vst.msk [vmem:[#allocation2 + $0x7c] sm:$0xf] %vm226, 0
      %260 = vst.msk [vmem:[#allocation2 + $0x80] sm:$0x1] %vm229, 0
      %261 = vst.msk [vmem:[#allocation2 + $0x84] sm:$0xf] %vm226, 0
      %262 = vst.msk [vmem:[#allocation2 + $0x88] sm:$0xf] %vm226, 0
      %263 = vst.msk [vmem:[#allocation2 + $0x8c] sm:$0x1] %vm229, 0
      %264 = vst.msk [vmem:[#allocation2 + $0x90] sm:$0xf] %vm226, 0
      %265 = vst.msk [vmem:[#allocation2 + $0x94] sm:$0xf] %vm226, 0
      %266 = vst.msk [vmem:[#allocation2 + $0x98] sm:$0x1] %vm229, 0
      %267 = vst.msk [vmem:[#allocation2 + $0x9c] sm:$0xf] %vm226, 0
      %268 = vst.msk [vmem:[#allocation2 + $0xa0] sm:$0xf] %vm226, 0
      %269 = vst.msk [vmem:[#allocation2 + $0xa4] sm:$0x1] %vm229, 0
      %270 = vst.msk [vmem:[#allocation2 + $0xa8] sm:$0xf] %vm226, 0
      %271 = vst.msk [vmem:[#allocation2 + $0xac] sm:$0xf] %vm226, 0
      %272 = vst.msk [vmem:[#allocation2 + $0xb0] sm:$0x1] %vm229, 0
      %273 = vst.msk [vmem:[#allocation2 + $0xb4] sm:$0xf] %vm226, 0
      %274 = vst.msk [vmem:[#allocation2 + $0xb8] sm:$0xf] %vm226, 0
      %275 = vst.msk [vmem:[#allocation2 + $0xbc] sm:$0x1] %vm229, 0
      %276 = vst.msk [vmem:[#allocation2 + $0xc0] sm:$0xf] %vm226, 0
      %277 = vst.msk [vmem:[#allocation2 + $0xc4] sm:$0xf] %vm226, 0
      %278 = vst.msk [vmem:[#allocation2 + $0xc8] sm:$0x1] %vm229, 0
      %279 = vst.msk [vmem:[#allocation2 + $0xcc] sm:$0xf] %vm226, 0
      %280 = vst.msk [vmem:[#allocation2 + $0xd0] sm:$0xf] %vm226, 0
      %281 = vst.msk [vmem:[#allocation2 + $0xd4] sm:$0x1] %vm229, 0
      %v282 = vld [vmem:[%s219] sm:$0xf]
      %v283 = vld [vmem:[%s219 + $0x4] sm:$0xf]
      %v284 = vld [vmem:[%s219 + $0x8] sm:$0xf]
      %v285 = vld [vmem:[%s219 + $0xc] sm:$0xf]
      %v286 = vld [vmem:[%s219 + $0x10] sm:$0xf]
      %v287 = vld [vmem:[%s219 + $0x14] sm:$0xf]
      %v288 = vld [vmem:[%s219 + $0x18] sm:$0xf]
      %v289 = vld [vmem:[%s219 + $0x1c] sm:$0xf]
      %v290 = vld [vmem:[%s219 + $0x20] sm:$0xf]
      %v291 = vld [vmem:[%s219 + $0x24] sm:$0xf]
      %v292 = vld [vmem:[%s219 + $0x28] sm:$0xf]
      %v293 = vld [vmem:[%s219 + $0x2c] sm:$0xf]
      %v294 = vld [vmem:[%s219 + $0x30] sm:$0xf]
      %v295 = vld [vmem:[%s219 + $0x34] sm:$0xf]
      %v296 = vld [vmem:[%s219 + $0x38] sm:$0xf]
      %v297 = vld [vmem:[%s219 + $0x3c] sm:$0xf]
      %v298 = vld [vmem:[%s219 + $0x40] sm:$0xf]
      %v299 = vld [vmem:[%s219 + $0x44] sm:$0xf]
      %v300 = vld [vmem:[%s219 + $0x48] sm:$0xf]
      %v301 = vld [vmem:[%s219 + $0x4c] sm:$0xf]
      %v302 = vld [vmem:[%s219 + $0x50] sm:$0xf]
      %v303 = vld [vmem:[%s219 + $0x54] sm:$0xf]
      %v304 = vld [vmem:[%s219 + $0x58] sm:$0xf]
      %v305 = vld [vmem:[%s219 + $0x5c] sm:$0xf]
      %v306 = vld [vmem:[%s219 + $0x60] sm:$0xf]
      %v307 = vld [vmem:[%s219 + $0x64] sm:$0xf]
      %v308 = vld [vmem:[%s219 + $0x68] sm:$0xf]
      %v309 = vld [vmem:[%s219 + $0x6c] sm:$0xf]
      %v310 = vld [vmem:[%s219 + $0x70] sm:$0xf]
      %v311 = vld [vmem:[%s219 + $0x74] sm:$0xf]
      %v312 = vld [vmem:[%s219 + $0x78] sm:$0xf]
      %v313 = vld [vmem:[%s219 + $0x7c] sm:$0xf]
      %v314 = vunpack.c.l.bf16 %v282
      %v315 = vunpack.c.l.bf16 %v283
      %v316 = vunpack.c.l.bf16 %v284
      %v317 = vunpack.c.l.bf16 %v285
      %v318 = vunpack.c.l.bf16 %v286
      %v319 = vunpack.c.l.bf16 %v287
      %v320 = vunpack.c.l.bf16 %v288
      %v321 = vunpack.c.l.bf16 %v289
      %v322 = vunpack.c.l.bf16 %v290
      %v323 = vunpack.c.l.bf16 %v291
      %v324 = vunpack.c.l.bf16 %v292
      %v325 = vunpack.c.l.bf16 %v293
      %v326 = vunpack.c.l.bf16 %v294
      %v327 = vunpack.c.l.bf16 %v295
      %v328 = vunpack.c.l.bf16 %v296
      %v329 = vunpack.c.l.bf16 %v297
      %v330 = vunpack.c.l.bf16 %v298
      %v331 = vunpack.c.l.bf16 %v299
      %v332 = vunpack.c.l.bf16 %v300
      %v333 = vunpack.c.l.bf16 %v301
      %v334 = vunpack.c.l.bf16 %v302
      %v335 = vunpack.c.l.bf16 %v303
      %v336 = vunpack.c.l.bf16 %v304
      %v337 = vunpack.c.l.bf16 %v305
      %v338 = vunpack.c.l.bf16 %v306
      %v339 = vunpack.c.l.bf16 %v307
      %v340 = vunpack.c.l.bf16 %v308
      %v341 = vunpack.c.l.bf16 %v309
      %v342 = vunpack.c.l.bf16 %v310
      %v343 = vunpack.c.l.bf16 %v311
      %v344 = vunpack.c.l.bf16 %v312
      %v345 = vunpack.c.l.bf16 %v313
      %vm346 = vcmp.gt.f32.partialorder %v314, 0.0
      %vm347 = vcmp.gt.f32.partialorder %v315, 0.0
      %vm348 = vcmp.gt.f32.partialorder %v316, 0.0
      %vm349 = vcmp.gt.f32.partialorder %v317, 0.0
      %vm350 = vcmp.gt.f32.partialorder %v318, 0.0
      %vm351 = vcmp.gt.f32.partialorder %v319, 0.0
      %vm352 = vcmp.gt.f32.partialorder %v320, 0.0
      %vm353 = vcmp.gt.f32.partialorder %v321, 0.0
      %vm354 = vcmp.gt.f32.partialorder %v322, 0.0
      %vm355 = vcmp.gt.f32.partialorder %v323, 0.0
      %vm356 = vcmp.gt.f32.partialorder %v324, 0.0
      %vm357 = vcmp.gt.f32.partialorder %v325, 0.0
      %vm358 = vcmp.gt.f32.partialorder %v326, 0.0
      %vm359 = vcmp.gt.f32.partialorder %v327, 0.0
      %vm360 = vcmp.gt.f32.partialorder %v328, 0.0
      %vm361 = vcmp.gt.f32.partialorder %v329, 0.0
      %vm362 = vcmp.gt.f32.partialorder %v330, 0.0
      %vm363 = vcmp.gt.f32.partialorder %v331, 0.0
      %vm364 = vcmp.gt.f32.partialorder %v332, 0.0
      %vm365 = vcmp.gt.f32.partialorder %v333, 0.0
      %vm366 = vcmp.gt.f32.partialorder %v334, 0.0
      %vm367 = vcmp.gt.f32.partialorder %v335, 0.0
      %vm368 = vcmp.gt.f32.partialorder %v336, 0.0
      %vm369 = vcmp.gt.f32.partialorder %v337, 0.0
      %vm370 = vcmp.gt.f32.partialorder %v338, 0.0
      %vm371 = vcmp.gt.f32.partialorder %v339, 0.0
      %vm372 = vcmp.gt.f32.partialorder %v340, 0.0
      %vm373 = vcmp.gt.f32.partialorder %v341, 0.0
      %vm374 = vcmp.gt.f32.partialorder %v342, 0.0
      %vm375 = vcmp.gt.f32.partialorder %v343, 0.0
      %vm376 = vcmp.gt.f32.partialorder %v344, 0.0
      %vm377 = vcmp.gt.f32.partialorder %v345, 0.0
      %v378 = vmul.f32 %v314, 0.02
      %v379 = vmul.f32 %v315, 0.02
      %v380 = vmul.f32 %v316, 0.02
      %v381 = vmul.f32 %v317, 0.02
      %v382 = vmul.f32 %v318, 0.02
      %v383 = vmul.f32 %v319, 0.02
      %v384 = vmul.f32 %v320, 0.02
      %v385 = vmul.f32 %v321, 0.02
      %v386 = vmul.f32 %v322, 0.02
      %v387 = vmul.f32 %v323, 0.02
      %v388 = vmul.f32 %v324, 0.02
      %v389 = vmul.f32 %v325, 0.02
      %v390 = vmul.f32 %v326, 0.02
      %v391 = vmul.f32 %v327, 0.02
      %v392 = vmul.f32 %v328, 0.02
      %v393 = vmul.f32 %v329, 0.02
      %v394 = vmul.f32 %v330, 0.02
      %v395 = vmul.f32 %v331, 0.02
      %v396 = vmul.f32 %v332, 0.02
      %v397 = vmul.f32 %v333, 0.02
      %v398 = vmul.f32 %v334, 0.02
      %v399 = vmul.f32 %v335, 0.02
      %v400 = vmul.f32 %v336, 0.02
      %v401 = vmul.f32 %v337, 0.02
      %v402 = vmul.f32 %v338, 0.02
      %v403 = vmul.f32 %v339, 0.02
      %v404 = vmul.f32 %v340, 0.02
      %v405 = vmul.f32 %v341, 0.02
      %v406 = vmul.f32 %v342, 0.02
      %v407 = vmul.f32 %v343, 0.02
      %v408 = vmul.f32 %v344, 0.02
      %v409 = vmul.f32 %v345, 0.02
      %v410 = vsel %vm346, %v314, %v378
      %v411 = vsel %vm347, %v315, %v379
      %v412 = vsel %vm348, %v316, %v380
      %v413 = vsel %vm349, %v317, %v381
      %v414 = vsel %vm350, %v318, %v382
      %v415 = vsel %vm351, %v319, %v383
      %v416 = vsel %vm352, %v320, %v384
      %v417 = vsel %vm353, %v321, %v385
      %v418 = vsel %vm354, %v322, %v386
      %v419 = vsel %vm355, %v323, %v387
      %v420 = vsel %vm356, %v324, %v388
      %v421 = vsel %vm357, %v325, %v389
      %v422 = vsel %vm358, %v326, %v390
      %v423 = vsel %vm359, %v327, %v391
      %v424 = vsel %vm360, %v328, %v392
      %v425 = vsel %vm361, %v329, %v393
      %v426 = vsel %vm362, %v330, %v394
      %v427 = vsel %vm363, %v331, %v395
      %v428 = vsel %vm364, %v332, %v396
      %v429 = vsel %vm365, %v333, %v397
      %v430 = vsel %vm366, %v334, %v398
      %v431 = vsel %vm367, %v335, %v399
      %v432 = vsel %vm368, %v336, %v400
      %v433 = vsel %vm369, %v337, %v401
      %v434 = vsel %vm370, %v338, %v402
      %v435 = vsel %vm371, %v339, %v403
      %v436 = vsel %vm372, %v340, %v404
      %v437 = vsel %vm373, %v341, %v405
      %v438 = vsel %vm374, %v342, %v406
      %v439 = vsel %vm375, %v343, %v407
      %v440 = vsel %vm376, %v344, %v408
      %v441 = vsel %vm377, %v345, %v409
      %v442 = vpack.c.bf16 %v411, %v410
      %v443 = vpack.c.bf16 %v413, %v412
      %v444 = vpack.c.bf16 %v415, %v414
      %v445 = vpack.c.bf16 %v417, %v416
      %v446 = vpack.c.bf16 %v419, %v418
      %v447 = vpack.c.bf16 %v421, %v420
      %v448 = vpack.c.bf16 %v423, %v422
      %v449 = vpack.c.bf16 %v425, %v424
      %v450 = vpack.c.bf16 %v427, %v426
      %v451 = vpack.c.bf16 %v429, %v428
      %v452 = vpack.c.bf16 %v431, %v430
      %v453 = vpack.c.bf16 %v433, %v432
      %v454 = vpack.c.bf16 %v435, %v434
      %v455 = vpack.c.bf16 %v437, %v436
      %v456 = vpack.c.bf16 %v439, %v438
      %v457 = vpack.c.bf16 %v441, %v440
      %v474 = vunpack.c.l.b16 %v442
      %v475 = vunpack.c.h.b16 %v442
      %v476 = vunpack.c.l.b16 %v443
      %v477 = vunpack.c.h.b16 %v443
      %v478 = vunpack.c.l.b16 %v444
      %v479 = vunpack.c.h.b16 %v444
      %v480 = vunpack.c.l.b16 %v445
      %v481 = vunpack.c.h.b16 %v445
      %v482 = vunpack.c.l.b16 %v446
      %v483 = vunpack.c.h.b16 %v446
      %v484 = vunpack.c.l.b16 %v447
      %v485 = vunpack.c.h.b16 %v447
      %v486 = vunpack.c.l.b16 %v448
      %v487 = vunpack.c.h.b16 %v448
      %v488 = vunpack.c.l.b16 %v449
      %v489 = vunpack.c.h.b16 %v449
      %v490 = vunpack.c.l.b16 %v450
      %v491 = vunpack.c.h.b16 %v450
      %v492 = vunpack.c.l.b16 %v451
      %v493 = vunpack.c.h.b16 %v451
      %v494 = vunpack.c.l.b16 %v452
      %v495 = vunpack.c.h.b16 %v452
      %v496 = vunpack.c.l.b16 %v453
      %v497 = vunpack.c.h.b16 %v453
      %v498 = vunpack.c.l.b16 %v454
      %v499 = vunpack.c.h.b16 %v454
      %v500 = vunpack.c.l.b16 %v455
      %v501 = vunpack.c.h.b16 %v455
      %v502 = vunpack.c.l.b16 %v456
      %v503 = vunpack.c.h.b16 %v456
      %v504 = vunpack.c.l.b16 %v457
      %v505 = vunpack.c.h.b16 %v457
      %v506 = vpack.c.b16 %v474, %v474
      %v507 = vpack.c.b16 %v475, %v475
      %v508 = vpack.c.b16 %v476, %v476
      %v509 = vpack.c.b16 %v477, %v477
      %v510 = vpack.c.b16 %v478, %v478
      %v511 = vpack.c.b16 %v479, %v479
      %v512 = vpack.c.b16 %v480, %v480
      %v513 = vpack.c.b16 %v481, %v481
      %v514 = vpack.c.b16 %v482, %v482
      %v515 = vpack.c.b16 %v483, %v483
      %v516 = vpack.c.b16 %v484, %v484
      %v517 = vpack.c.b16 %v485, %v485
      %v518 = vpack.c.b16 %v486, %v486
      %v519 = vpack.c.b16 %v487, %v487
      %v520 = vpack.c.b16 %v488, %v488
      %v521 = vpack.c.b16 %v489, %v489
      %v522 = vpack.c.b16 %v490, %v490
      %v523 = vpack.c.b16 %v491, %v491
      %v524 = vpack.c.b16 %v492, %v492
      %v525 = vpack.c.b16 %v493, %v493
      %v526 = vpack.c.b16 %v494, %v494
      %v527 = vpack.c.b16 %v495, %v495
      %v528 = vpack.c.b16 %v496, %v496
      %v529 = vpack.c.b16 %v497, %v497
      %v530 = vpack.c.b16 %v498, %v498
      %v531 = vpack.c.b16 %v499, %v499
      %v532 = vpack.c.b16 %v500, %v500
      %v533 = vpack.c.b16 %v501, %v501
      %v534 = vpack.c.b16 %v502, %v502
      %v535 = vpack.c.b16 %v503, %v503
      %v536 = vpack.c.b16 %v504, %v504
      %v537 = vpack.c.b16 %v505, %v505
      %vm538 = vsmask.f32 256
      %vm539 = vsmask.f32 4368
      %vm540 = vmor %vm538, %vm539
      %v542 = vshrl.u32 %v506, 16
      %v544 = vrot.slane %v542, 7
      %v545 = vshll.u32 %v506, 16
      %v547 = vor.u32 %v544, %v545
      %v548 = vrot.slane %v544, 4
      %v550 = vshrl.u32 %v507, 16
      %v552 = vrot.slane %v550, 7
      %v553 = vshll.u32 %v507, 16
      %v555 = vor.u32 %v552, %v553
      %v556 = vsel %vm540, %v548, %v555
      %v557 = vrot.slane %v552, 4
      %v559 = vshrl.u32 %v508, 16
      %v561 = vrot.slane %v559, 7
      %v562 = vshll.u32 %v508, 16
      %v564 = vor.u32 %v561, %v562
      %v565 = vrot.slane %v561, 4
      %v567 = vshrl.u32 %v509, 16
      %v569 = vrot.slane %v567, 7
      %v570 = vshll.u32 %v509, 16
      %v572 = vor.u32 %v569, %v570
      %v573 = vsel %vm540, %v565, %v572
      %v574 = vrot.slane %v569, 4
      %v576 = vshrl.u32 %v510, 16
      %v578 = vrot.slane %v576, 7
      %v579 = vshll.u32 %v510, 16
      %v581 = vor.u32 %v578, %v579
      %v582 = vrot.slane %v578, 4
      %v584 = vshrl.u32 %v511, 16
      %v586 = vrot.slane %v584, 7
      %v587 = vshll.u32 %v511, 16
      %v589 = vor.u32 %v586, %v587
      %v590 = vsel %vm540, %v582, %v589
      %v591 = vrot.slane %v586, 4
      %v593 = vshrl.u32 %v512, 16
      %v595 = vrot.slane %v593, 7
      %v596 = vshll.u32 %v512, 16
      %v598 = vor.u32 %v595, %v596
      %v599 = vrot.slane %v595, 4
      %v601 = vshrl.u32 %v513, 16
      %v603 = vrot.slane %v601, 7
      %v604 = vshll.u32 %v513, 16
      %v606 = vor.u32 %v603, %v604
      %v607 = vsel %vm540, %v599, %v606
      %v608 = vrot.slane %v603, 4
      %v610 = vshrl.u32 %v514, 16
      %v612 = vrot.slane %v610, 7
      %v613 = vshll.u32 %v514, 16
      %v615 = vor.u32 %v612, %v613
      %v616 = vrot.slane %v612, 4
      %v618 = vshrl.u32 %v515, 16
      %v620 = vrot.slane %v618, 7
      %v621 = vshll.u32 %v515, 16
      %v623 = vor.u32 %v620, %v621
      %v624 = vsel %vm540, %v616, %v623
      %v625 = vrot.slane %v620, 4
      %v627 = vshrl.u32 %v516, 16
      %v629 = vrot.slane %v627, 7
      %v630 = vshll.u32 %v516, 16
      %v632 = vor.u32 %v629, %v630
      %v633 = vrot.slane %v629, 4
      %v635 = vshrl.u32 %v517, 16
      %v637 = vrot.slane %v635, 7
      %v638 = vshll.u32 %v517, 16
      %v640 = vor.u32 %v637, %v638
      %v641 = vsel %vm540, %v633, %v640
      %v642 = vrot.slane %v637, 4
      %v644 = vshrl.u32 %v518, 16
      %v646 = vrot.slane %v644, 7
      %v647 = vshll.u32 %v518, 16
      %v649 = vor.u32 %v646, %v647
      %v650 = vrot.slane %v646, 4
      %v652 = vshrl.u32 %v519, 16
      %v654 = vrot.slane %v652, 7
      %v655 = vshll.u32 %v519, 16
      %v657 = vor.u32 %v654, %v655
      %v658 = vsel %vm540, %v650, %v657
      %v659 = vrot.slane %v654, 4
      %v661 = vshrl.u32 %v520, 16
      %v663 = vrot.slane %v661, 7
      %v664 = vshll.u32 %v520, 16
      %v666 = vor.u32 %v663, %v664
      %v667 = vrot.slane %v663, 4
      %v669 = vshrl.u32 %v521, 16
      %v671 = vrot.slane %v669, 7
      %v672 = vshll.u32 %v521, 16
      %v674 = vor.u32 %v671, %v672
      %v675 = vsel %vm540, %v667, %v674
      %v676 = vrot.slane %v671, 4
      %v678 = vshrl.u32 %v522, 16
      %v680 = vrot.slane %v678, 7
      %v681 = vshll.u32 %v522, 16
      %v683 = vor.u32 %v680, %v681
      %v684 = vrot.slane %v680, 4
      %v686 = vshrl.u32 %v523, 16
      %v688 = vrot.slane %v686, 7
      %v689 = vshll.u32 %v523, 16
      %v691 = vor.u32 %v688, %v689
      %v692 = vsel %vm540, %v684, %v691
      %v693 = vrot.slane %v688, 4
      %v695 = vshrl.u32 %v524, 16
      %v697 = vrot.slane %v695, 7
      %v698 = vshll.u32 %v524, 16
      %v700 = vor.u32 %v697, %v698
      %v701 = vrot.slane %v697, 4
      %v703 = vshrl.u32 %v525, 16
      %v705 = vrot.slane %v703, 7
      %v706 = vshll.u32 %v525, 16
      %v708 = vor.u32 %v705, %v706
      %v709 = vsel %vm540, %v701, %v708
      %v710 = vrot.slane %v705, 4
      %v712 = vshrl.u32 %v526, 16
      %v714 = vrot.slane %v712, 7
      %v715 = vshll.u32 %v526, 16
      %v717 = vor.u32 %v714, %v715
      %v718 = vrot.slane %v714, 4
      %v720 = vshrl.u32 %v527, 16
      %v722 = vrot.slane %v720, 7
      %v723 = vshll.u32 %v527, 16
      %v725 = vor.u32 %v722, %v723
      %v726 = vsel %vm540, %v718, %v725
      %v727 = vrot.slane %v722, 4
      %v729 = vshrl.u32 %v528, 16
      %v731 = vrot.slane %v729, 7
      %v732 = vshll.u32 %v528, 16
      %v734 = vor.u32 %v731, %v732
      %v735 = vrot.slane %v731, 4
      %v737 = vshrl.u32 %v529, 16
      %v739 = vrot.slane %v737, 7
      %v740 = vshll.u32 %v529, 16
      %v742 = vor.u32 %v739, %v740
      %v743 = vsel %vm540, %v735, %v742
      %v744 = vrot.slane %v739, 4
      %v746 = vshrl.u32 %v530, 16
      %v748 = vrot.slane %v746, 7
      %v749 = vshll.u32 %v530, 16
      %v751 = vor.u32 %v748, %v749
      %v752 = vrot.slane %v748, 4
      %v754 = vshrl.u32 %v531, 16
      %v756 = vrot.slane %v754, 7
      %v757 = vshll.u32 %v531, 16
      %v759 = vor.u32 %v756, %v757
      %v760 = vsel %vm540, %v752, %v759
      %v761 = vrot.slane %v756, 4
      %v763 = vshrl.u32 %v532, 16
      %v765 = vrot.slane %v763, 7
      %v766 = vshll.u32 %v532, 16
      %v768 = vor.u32 %v765, %v766
      %v769 = vrot.slane %v765, 4
      %v771 = vshrl.u32 %v533, 16
      %v773 = vrot.slane %v771, 7
      %v774 = vshll.u32 %v533, 16
      %v776 = vor.u32 %v773, %v774
      %v777 = vsel %vm540, %v769, %v776
      %v778 = vrot.slane %v773, 4
      %v780 = vshrl.u32 %v534, 16
      %v782 = vrot.slane %v780, 7
      %v783 = vshll.u32 %v534, 16
      %v785 = vor.u32 %v782, %v783
      %v786 = vrot.slane %v782, 4
      %v788 = vshrl.u32 %v535, 16
      %v790 = vrot.slane %v788, 7
      %v791 = vshll.u32 %v535, 16
      %v793 = vor.u32 %v790, %v791
      %v794 = vsel %vm540, %v786, %v793
      %v795 = vrot.slane %v790, 4
      %v797 = vshrl.u32 %v536, 16
      %v799 = vrot.slane %v797, 7
      %v800 = vshll.u32 %v536, 16
      %v802 = vor.u32 %v799, %v800
      %v803 = vrot.slane %v799, 4
      %v805 = vshrl.u32 %v537, 16
      %v807 = vrot.slane %v805, 7
      %v808 = vshll.u32 %v537, 16
      %v810 = vor.u32 %v807, %v808
      %v811 = vsel %vm540, %v803, %v810
      %v812 = vrot.slane %v807, 4
      %s861 = scalar_lea.vmem [#allocation2], 12
      %vm862 = vcmask 257024
      %vm863 = vsmask.f32 7938
      %vm864 = vmand %vm862, %vm863
      %v865 = vld [vmem:[%s861] sm:$0xf]
      %v866 = vsel %vm864, %v547, %v865
      %867 = vst [vmem:[%s861] sm:$0xf] %v866
      %868 = vst.msk [vmem:[%s861 + $0x4] sm:$0xf] %vm226, %v556
      %vm869 = vcmask 253952
      %vm870 = vmand %vm869, %vm538
      %v871 = vld [vmem:[%s861 + $0x8] sm:$0x1]
      %v872 = vsel %vm870, %v557, %v871
      %873 = vst [vmem:[%s861 + $0x8] sm:$0x1] %v872
      %v874 = vld [vmem:[%s861 + $0xc] sm:$0xf]
      %v875 = vsel %vm864, %v564, %v874
      %876 = vst [vmem:[%s861 + $0xc] sm:$0xf] %v875
      %877 = vst.msk [vmem:[%s861 + $0x10] sm:$0xf] %vm226, %v573
      %v878 = vld [vmem:[%s861 + $0x14] sm:$0x1]
      %v879 = vsel %vm870, %v574, %v878
      %880 = vst [vmem:[%s861 + $0x14] sm:$0x1] %v879
      %v881 = vld [vmem:[%s861 + $0x18] sm:$0xf]
      %v882 = vsel %vm864, %v581, %v881
      %883 = vst [vmem:[%s861 + $0x18] sm:$0xf] %v882
      %884 = vst.msk [vmem:[%s861 + $0x1c] sm:$0xf] %vm226, %v590
      %v885 = vld [vmem:[%s861 + $0x20] sm:$0x1]
      %v886 = vsel %vm870, %v591, %v885
      %887 = vst [vmem:[%s861 + $0x20] sm:$0x1] %v886
      %v888 = vld [vmem:[%s861 + $0x24] sm:$0xf]
      %v889 = vsel %vm864, %v598, %v888
      %890 = vst [vmem:[%s861 + $0x24] sm:$0xf] %v889
      %891 = vst.msk [vmem:[%s861 + $0x28] sm:$0xf] %vm226, %v607
      %v892 = vld [vmem:[%s861 + $0x2c] sm:$0x1]
      %v893 = vsel %vm870, %v608, %v892
      %894 = vst [vmem:[%s861 + $0x2c] sm:$0x1] %v893
      %v895 = vld [vmem:[%s861 + $0x30] sm:$0xf]
      %v896 = vsel %vm864, %v615, %v895
      %897 = vst [vmem:[%s861 + $0x30] sm:$0xf] %v896
      %898 = vst.msk [vmem:[%s861 + $0x34] sm:$0xf] %vm226, %v624
      %v899 = vld [vmem:[%s861 + $0x38] sm:$0x1]
      %v900 = vsel %vm870, %v625, %v899
      %901 = vst [vmem:[%s861 + $0x38] sm:$0x1] %v900
      %v902 = vld [vmem:[%s861 + $0x3c] sm:$0xf]
      %v903 = vsel %vm864, %v632, %v902
      %904 = vst [vmem:[%s861 + $0x3c] sm:$0xf] %v903
      %905 = vst.msk [vmem:[%s861 + $0x40] sm:$0xf] %vm226, %v641
      %v906 = vld [vmem:[%s861 + $0x44] sm:$0x1]
      %v907 = vsel %vm870, %v642, %v906
      %908 = vst [vmem:[%s861 + $0x44] sm:$0x1] %v907
      %v909 = vld [vmem:[%s861 + $0x48] sm:$0xf]
      %v910 = vsel %vm864, %v649, %v909
      %911 = vst [vmem:[%s861 + $0x48] sm:$0xf] %v910
      %912 = vst.msk [vmem:[%s861 + $0x4c] sm:$0xf] %vm226, %v658
      %v913 = vld [vmem:[%s861 + $0x50] sm:$0x1]
      %v914 = vsel %vm870, %v659, %v913
      %915 = vst [vmem:[%s861 + $0x50] sm:$0x1] %v914
      %v916 = vld [vmem:[%s861 + $0x54] sm:$0xf]
      %v917 = vsel %vm864, %v666, %v916
      %918 = vst [vmem:[%s861 + $0x54] sm:$0xf] %v917
      %919 = vst.msk [vmem:[%s861 + $0x58] sm:$0xf] %vm226, %v675
      %v920 = vld [vmem:[%s861 + $0x5c] sm:$0x1]
      %v921 = vsel %vm870, %v676, %v920
      %922 = vst [vmem:[%s861 + $0x5c] sm:$0x1] %v921
      %v923 = vld [vmem:[%s861 + $0x60] sm:$0xf]
      %v924 = vsel %vm864, %v683, %v923
      %925 = vst [vmem:[%s861 + $0x60] sm:$0xf] %v924
      %926 = vst.msk [vmem:[%s861 + $0x64] sm:$0xf] %vm226, %v692
      %v927 = vld [vmem:[%s861 + $0x68] sm:$0x1]
      %v928 = vsel %vm870, %v693, %v927
      %929 = vst [vmem:[%s861 + $0x68] sm:$0x1] %v928
      %v930 = vld [vmem:[%s861 + $0x6c] sm:$0xf]
      %v931 = vsel %vm864, %v700, %v930
      %932 = vst [vmem:[%s861 + $0x6c] sm:$0xf] %v931
      %933 = vst.msk [vmem:[%s861 + $0x70] sm:$0xf] %vm226, %v709
      %v934 = vld [vmem:[%s861 + $0x74] sm:$0x1]
      %v935 = vsel %vm870, %v710, %v934
      %936 = vst [vmem:[%s861 + $0x74] sm:$0x1] %v935
      %v937 = vld [vmem:[%s861 + $0x78] sm:$0xf]
      %v938 = vsel %vm864, %v717, %v937
      %939 = vst [vmem:[%s861 + $0x78] sm:$0xf] %v938
      %940 = vst.msk [vmem:[%s861 + $0x7c] sm:$0xf] %vm226, %v726
      %v941 = vld [vmem:[%s861 + $0x80] sm:$0x1]
      %v942 = vsel %vm870, %v727, %v941
      %943 = vst [vmem:[%s861 + $0x80] sm:$0x1] %v942
      %v944 = vld [vmem:[%s861 + $0x84] sm:$0xf]
      %v945 = vsel %vm864, %v734, %v944
      %946 = vst [vmem:[%s861 + $0x84] sm:$0xf] %v945
      %947 = vst.msk [vmem:[%s861 + $0x88] sm:$0xf] %vm226, %v743
      %v948 = vld [vmem:[%s861 + $0x8c] sm:$0x1]
      %v949 = vsel %vm870, %v744, %v948
      %950 = vst [vmem:[%s861 + $0x8c] sm:$0x1] %v949
      %v951 = vld [vmem:[%s861 + $0x90] sm:$0xf]
      %v952 = vsel %vm864, %v751, %v951
      %953 = vst [vmem:[%s861 + $0x90] sm:$0xf] %v952
      %954 = vst.msk [vmem:[%s861 + $0x94] sm:$0xf] %vm226, %v760
      %v955 = vld [vmem:[%s861 + $0x98] sm:$0x1]
      %v956 = vsel %vm870, %v761, %v955
      %957 = vst [vmem:[%s861 + $0x98] sm:$0x1] %v956
      %v958 = vld [vmem:[%s861 + $0x9c] sm:$0xf]
      %v959 = vsel %vm864, %v768, %v958
      %960 = vst [vmem:[%s861 + $0x9c] sm:$0xf] %v959
      %961 = vst.msk [vmem:[%s861 + $0xa0] sm:$0xf] %vm226, %v777
      %v962 = vld [vmem:[%s861 + $0xa4] sm:$0x1]
      %v963 = vsel %vm870, %v778, %v962
      %964 = vst [vmem:[%s861 + $0xa4] sm:$0x1] %v963
      %v965 = vld [vmem:[%s861 + $0xa8] sm:$0xf]
      %v966 = vsel %vm864, %v785, %v965
      %967 = vst [vmem:[%s861 + $0xa8] sm:$0xf] %v966
      %968 = vst.msk [vmem:[%s861 + $0xac] sm:$0xf] %vm226, %v794
      %v969 = vld [vmem:[%s861 + $0xb0] sm:$0x1]
      %v970 = vsel %vm870, %v795, %v969
      %971 = vst [vmem:[%s861 + $0xb0] sm:$0x1] %v970
      %v972 = vld [vmem:[%s861 + $0xb4] sm:$0xf]
      %v973 = vsel %vm864, %v802, %v972
      %974 = vst [vmem:[%s861 + $0xb4] sm:$0xf] %v973
      %975 = vst.msk [vmem:[%s861 + $0xb8] sm:$0xf] %vm226, %v811
      %v976 = vld [vmem:[%s861 + $0xbc] sm:$0x1]
      %v977 = vsel %vm870, %v812, %v976
      %978 = vst [vmem:[%s861 + $0xbc] sm:$0x1] %v977
      %v979 = vld [vmem:[#allocation2] sm:$0xf]
      %v980 = vld [vmem:[#allocation2 + $0x4] sm:$0xf]
      %v981 = vld [vmem:[#allocation2 + $0x8] sm:$0x1]
      %v982 = vld [vmem:[#allocation2 + $0xc] sm:$0xf]
      %v983 = vld [vmem:[#allocation2 + $0x10] sm:$0xf]
      %v984 = vld [vmem:[#allocation2 + $0x14] sm:$0x1]
      %v985 = vld [vmem:[#allocation2 + $0x18] sm:$0xf]
      %v986 = vld [vmem:[#allocation2 + $0x1c] sm:$0xf]
      %v987 = vld [vmem:[#allocation2 + $0x20] sm:$0x1]
      %v988 = vld [vmem:[#allocation2 + $0x24] sm:$0xf]
      %v989 = vld [vmem:[#allocation2 + $0x28] sm:$0xf]
      %v990 = vld [vmem:[#allocation2 + $0x2c] sm:$0x1]
      %v991 = vld [vmem:[#allocation2 + $0x30] sm:$0xf]
      %v992 = vld [vmem:[#allocation2 + $0x34] sm:$0xf]
      %v993 = vld [vmem:[#allocation2 + $0x38] sm:$0x1]
      %v994 = vld [vmem:[#allocation2 + $0x3c] sm:$0xf]
      %v995 = vld [vmem:[#allocation2 + $0x40] sm:$0xf]
      %v996 = vld [vmem:[#allocation2 + $0x44] sm:$0x1]
      %v997 = vld [vmem:[#allocation2 + $0x48] sm:$0xf]
      %v998 = vld [vmem:[#allocation2 + $0x4c] sm:$0xf]
      %v999 = vld [vmem:[#allocation2 + $0x50] sm:$0x1]
      %v1000 = vld [vmem:[#allocation2 + $0x54] sm:$0xf]
      %v1001 = vld [vmem:[#allocation2 + $0x58] sm:$0xf]
      %v1002 = vld [vmem:[#allocation2 + $0x5c] sm:$0x1]
      %v1003 = vld [vmem:[#allocation2 + $0x60] sm:$0xf]
      %v1004 = vld [vmem:[#allocation2 + $0x64] sm:$0xf]
      %v1005 = vld [vmem:[#allocation2 + $0x68] sm:$0x1]
      %v1006 = vld [vmem:[#allocation2 + $0x6c] sm:$0xf]
      %v1007 = vld [vmem:[#allocation2 + $0x70] sm:$0xf]
      %v1008 = vld [vmem:[#allocation2 + $0x74] sm:$0x1]
      %v1009 = vld [vmem:[#allocation2 + $0x78] sm:$0xf]
      %v1010 = vld [vmem:[#allocation2 + $0x7c] sm:$0xf]
      %v1011 = vld [vmem:[#allocation2 + $0x80] sm:$0x1]
      %v1012 = vld [vmem:[#allocation2 + $0x84] sm:$0xf]
      %v1013 = vld [vmem:[#allocation2 + $0x88] sm:$0xf]
      %v1014 = vld [vmem:[#allocation2 + $0x8c] sm:$0x1]
      %v1015 = vld [vmem:[#allocation2 + $0x90] sm:$0xf]
      %v1016 = vld [vmem:[#allocation2 + $0x94] sm:$0xf]
      %v1017 = vld [vmem:[#allocation2 + $0x98] sm:$0x1]
      %v1018 = vld [vmem:[#allocation2 + $0x9c] sm:$0xf]
      %v1019 = vld [vmem:[#allocation2 + $0xa0] sm:$0xf]
      %v1020 = vld [vmem:[#allocation2 + $0xa4] sm:$0x1]
      %v1021 = vld [vmem:[#allocation2 + $0xa8] sm:$0xf]
      %v1022 = vld [vmem:[#allocation2 + $0xac] sm:$0xf]
      %v1023 = vld [vmem:[#allocation2 + $0xb0] sm:$0x1]
      %v1024 = vld [vmem:[#allocation2 + $0xb4] sm:$0xf]
      %v1025 = vld [vmem:[#allocation2 + $0xb8] sm:$0xf]
      %v1026 = vld [vmem:[#allocation2 + $0xbc] sm:$0x1]
      %v1027 = vld [vmem:[#allocation2 + $0xc0] sm:$0xf]
      %v1028 = vld [vmem:[#allocation2 + $0xc4] sm:$0xf]
      %v1029 = vld [vmem:[#allocation2 + $0xc8] sm:$0x1]
      %v1030 = vld [vmem:[#allocation2 + $0xcc] sm:$0xf]
      %v1031 = vld [vmem:[#allocation2 + $0xd0] sm:$0xf]
      %v1032 = vld [vmem:[#allocation2 + $0xd4] sm:$0x1]
      %vm1033 = vsmask.f32 3328
      %vm1034 = vsmask.f32 7440
      %vm1035 = vmor %vm1033, %vm1034
      %v1037 = vshrl.u32 %v979, 16
      %v1039 = vrot.slane %v1037, 4
      %v1040 = vshll.u32 %v979, 16
      %v1042 = vrot.slane %v1040, 5
      %v1043 = vor.u32 %v1039, %v1042
      %v1044 = vrot.slane %v1043, 4
      %v1046 = vshll.u32 %v980, 16
      %v1048 = vrot.slane %v1046, 5
      %v1049 = vsel %vm1035, %v1044, %v1048
      %v1050 = vshrl.u32 %v980, 16
      %v1052 = vrot.slane %v1050, 4
      %v1053 = vor.u32 %v1052, %v1048
      %v1054 = vrot.slane %v1053, 4
      %v1056 = vshll.u32 %v981, 16
      %v1058 = vrot.slane %v1056, 5
      %v1059 = vsel %vm1035, %v1054, %v1058
      %v1061 = vshrl.u32 %v982, 16
      %v1063 = vrot.slane %v1061, 4
      %v1064 = vshll.u32 %v982, 16
      %v1066 = vrot.slane %v1064, 5
      %v1067 = vor.u32 %v1063, %v1066
      %v1068 = vrot.slane %v1067, 4
      %v1070 = vshll.u32 %v983, 16
      %v1072 = vrot.slane %v1070, 5
      %v1073 = vsel %vm1035, %v1068, %v1072
      %v1074 = vshrl.u32 %v983, 16
      %v1076 = vrot.slane %v1074, 4
      %v1077 = vor.u32 %v1076, %v1072
      %v1078 = vrot.slane %v1077, 4
      %v1080 = vshll.u32 %v984, 16
      %v1082 = vrot.slane %v1080, 5
      %v1083 = vsel %vm1035, %v1078, %v1082
      %v1085 = vshrl.u32 %v985, 16
      %v1087 = vrot.slane %v1085, 4
      %v1088 = vshll.u32 %v985, 16
      %v1090 = vrot.slane %v1088, 5
      %v1091 = vor.u32 %v1087, %v1090
      %v1092 = vrot.slane %v1091, 4
      %v1094 = vshll.u32 %v986, 16
      %v1096 = vrot.slane %v1094, 5
      %v1097 = vsel %vm1035, %v1092, %v1096
      %v1098 = vshrl.u32 %v986, 16
      %v1100 = vrot.slane %v1098, 4
      %v1101 = vor.u32 %v1100, %v1096
      %v1102 = vrot.slane %v1101, 4
      %v1104 = vshll.u32 %v987, 16
      %v1106 = vrot.slane %v1104, 5
      %v1107 = vsel %vm1035, %v1102, %v1106
      %v1109 = vshrl.u32 %v988, 16
      %v1111 = vrot.slane %v1109, 4
      %v1112 = vshll.u32 %v988, 16
      %v1114 = vrot.slane %v1112, 5
      %v1115 = vor.u32 %v1111, %v1114
      %v1116 = vrot.slane %v1115, 4
      %v1118 = vshll.u32 %v989, 16
      %v1120 = vrot.slane %v1118, 5
      %v1121 = vsel %vm1035, %v1116, %v1120
      %v1122 = vshrl.u32 %v989, 16
      %v1124 = vrot.slane %v1122, 4
      %v1125 = vor.u32 %v1124, %v1120
      %v1126 = vrot.slane %v1125, 4
      %v1128 = vshll.u32 %v990, 16
      %v1130 = vrot.slane %v1128, 5
      %v1131 = vsel %vm1035, %v1126, %v1130
      %v1133 = vshrl.u32 %v991, 16
      %v1135 = vrot.slane %v1133, 4
      %v1136 = vshll.u32 %v991, 16
      %v1138 = vrot.slane %v1136, 5
      %v1139 = vor.u32 %v1135, %v1138
      %v1140 = vrot.slane %v1139, 4
      %v1142 = vshll.u32 %v992, 16
      %v1144 = vrot.slane %v1142, 5
      %v1145 = vsel %vm1035, %v1140, %v1144
      %v1146 = vshrl.u32 %v992, 16
      %v1148 = vrot.slane %v1146, 4
      %v1149 = vor.u32 %v1148, %v1144
      %v1150 = vrot.slane %v1149, 4
      %v1152 = vshll.u32 %v993, 16
      %v1154 = vrot.slane %v1152, 5
      %v1155 = vsel %vm1035, %v1150, %v1154
      %v1157 = vshrl.u32 %v994, 16
      %v1159 = vrot.slane %v1157, 4
      %v1160 = vshll.u32 %v994, 16
      %v1162 = vrot.slane %v1160, 5
      %v1163 = vor.u32 %v1159, %v1162
      %v1164 = vrot.slane %v1163, 4
      %v1166 = vshll.u32 %v995, 16
      %v1168 = vrot.slane %v1166, 5
      %v1169 = vsel %vm1035, %v1164, %v1168
      %v1170 = vshrl.u32 %v995, 16
      %v1172 = vrot.slane %v1170, 4
      %v1173 = vor.u32 %v1172, %v1168
      %v1174 = vrot.slane %v1173, 4
      %v1176 = vshll.u32 %v996, 16
      %v1178 = vrot.slane %v1176, 5
      %v1179 = vsel %vm1035, %v1174, %v1178
      %v1181 = vshrl.u32 %v997, 16
      %v1183 = vrot.slane %v1181, 4
      %v1184 = vshll.u32 %v997, 16
      %v1186 = vrot.slane %v1184, 5
      %v1187 = vor.u32 %v1183, %v1186
      %v1188 = vrot.slane %v1187, 4
      %v1190 = vshll.u32 %v998, 16
      %v1192 = vrot.slane %v1190, 5
      %v1193 = vsel %vm1035, %v1188, %v1192
      %v1194 = vshrl.u32 %v998, 16
      %v1196 = vrot.slane %v1194, 4
      %v1197 = vor.u32 %v1196, %v1192
      %v1198 = vrot.slane %v1197, 4
      %v1200 = vshll.u32 %v999, 16
      %v1202 = vrot.slane %v1200, 5
      %v1203 = vsel %vm1035, %v1198, %v1202
      %v1205 = vshrl.u32 %v1000, 16
      %v1207 = vrot.slane %v1205, 4
      %v1208 = vshll.u32 %v1000, 16
      %v1210 = vrot.slane %v1208, 5
      %v1211 = vor.u32 %v1207, %v1210
      %v1212 = vrot.slane %v1211, 4
      %v1214 = vshll.u32 %v1001, 16
      %v1216 = vrot.slane %v1214, 5
      %v1217 = vsel %vm1035, %v1212, %v1216
      %v1218 = vshrl.u32 %v1001, 16
      %v1220 = vrot.slane %v1218, 4
      %v1221 = vor.u32 %v1220, %v1216
      %v1222 = vrot.slane %v1221, 4
      %v1224 = vshll.u32 %v1002, 16
      %v1226 = vrot.slane %v1224, 5
      %v1227 = vsel %vm1035, %v1222, %v1226
      %v1229 = vshrl.u32 %v1003, 16
      %v1231 = vrot.slane %v1229, 4
      %v1232 = vshll.u32 %v1003, 16
      %v1234 = vrot.slane %v1232, 5
      %v1235 = vor.u32 %v1231, %v1234
      %v1236 = vrot.slane %v1235, 4
      %v1238 = vshll.u32 %v1004, 16
      %v1240 = vrot.slane %v1238, 5
      %v1241 = vsel %vm1035, %v1236, %v1240
      %v1242 = vshrl.u32 %v1004, 16
      %v1244 = vrot.slane %v1242, 4
      %v1245 = vor.u32 %v1244, %v1240
      %v1246 = vrot.slane %v1245, 4
      %v1248 = vshll.u32 %v1005, 16
      %v1250 = vrot.slane %v1248, 5
      %v1251 = vsel %vm1035, %v1246, %v1250
      %v1253 = vshrl.u32 %v1006, 16
      %v1255 = vrot.slane %v1253, 4
      %v1256 = vshll.u32 %v1006, 16
      %v1258 = vrot.slane %v1256, 5
      %v1259 = vor.u32 %v1255, %v1258
      %v1260 = vrot.slane %v1259, 4
      %v1262 = vshll.u32 %v1007, 16
      %v1264 = vrot.slane %v1262, 5
      %v1265 = vsel %vm1035, %v1260, %v1264
      %v1266 = vshrl.u32 %v1007, 16
      %v1268 = vrot.slane %v1266, 4
      %v1269 = vor.u32 %v1268, %v1264
      %v1270 = vrot.slane %v1269, 4
      %v1272 = vshll.u32 %v1008, 16
      %v1274 = vrot.slane %v1272, 5
      %v1275 = vsel %vm1035, %v1270, %v1274
      %v1277 = vshrl.u32 %v1009, 16
      %v1279 = vrot.slane %v1277, 4
      %v1280 = vshll.u32 %v1009, 16
      %v1282 = vrot.slane %v1280, 5
      %v1283 = vor.u32 %v1279, %v1282
      %v1284 = vrot.slane %v1283, 4
      %v1286 = vshll.u32 %v1010, 16
      %v1288 = vrot.slane %v1286, 5
      %v1289 = vsel %vm1035, %v1284, %v1288
      %v1290 = vshrl.u32 %v1010, 16
      %v1292 = vrot.slane %v1290, 4
      %v1293 = vor.u32 %v1292, %v1288
      %v1294 = vrot.slane %v1293, 4
      %v1296 = vshll.u32 %v1011, 16
      %v1298 = vrot.slane %v1296, 5
      %v1299 = vsel %vm1035, %v1294, %v1298
      %v1301 = vshrl.u32 %v1012, 16
      %v1303 = vrot.slane %v1301, 4
      %v1304 = vshll.u32 %v1012, 16
      %v1306 = vrot.slane %v1304, 5
      %v1307 = vor.u32 %v1303, %v1306
      %v1308 = vrot.slane %v1307, 4
      %v1310 = vshll.u32 %v1013, 16
      %v1312 = vrot.slane %v1310, 5
      %v1313 = vsel %vm1035, %v1308, %v1312
      %v1314 = vshrl.u32 %v1013, 16
      %v1316 = vrot.slane %v1314, 4
      %v1317 = vor.u32 %v1316, %v1312
      %v1318 = vrot.slane %v1317, 4
      %v1320 = vshll.u32 %v1014, 16
      %v1322 = vrot.slane %v1320, 5
      %v1323 = vsel %vm1035, %v1318, %v1322
      %v1325 = vshrl.u32 %v1015, 16
      %v1327 = vrot.slane %v1325, 4
      %v1328 = vshll.u32 %v1015, 16
      %v1330 = vrot.slane %v1328, 5
      %v1331 = vor.u32 %v1327, %v1330
      %v1332 = vrot.slane %v1331, 4
      %v1334 = vshll.u32 %v1016, 16
      %v1336 = vrot.slane %v1334, 5
      %v1337 = vsel %vm1035, %v1332, %v1336
      %v1338 = vshrl.u32 %v1016, 16
      %v1340 = vrot.slane %v1338, 4
      %v1341 = vor.u32 %v1340, %v1336
      %v1342 = vrot.slane %v1341, 4
      %v1344 = vshll.u32 %v1017, 16
      %v1346 = vrot.slane %v1344, 5
      %v1347 = vsel %vm1035, %v1342, %v1346
      %v1349 = vshrl.u32 %v1018, 16
      %v1351 = vrot.slane %v1349, 4
      %v1352 = vshll.u32 %v1018, 16
      %v1354 = vrot.slane %v1352, 5
      %v1355 = vor.u32 %v1351, %v1354
      %v1356 = vrot.slane %v1355, 4
      %v1358 = vshll.u32 %v1019, 16
      %v1360 = vrot.slane %v1358, 5
      %v1361 = vsel %vm1035, %v1356, %v1360
      %v1362 = vshrl.u32 %v1019, 16
      %v1364 = vrot.slane %v1362, 4
      %v1365 = vor.u32 %v1364, %v1360
      %v1366 = vrot.slane %v1365, 4
      %v1368 = vshll.u32 %v1020, 16
      %v1370 = vrot.slane %v1368, 5
      %v1371 = vsel %vm1035, %v1366, %v1370
      %v1373 = vshrl.u32 %v1021, 16
      %v1375 = vrot.slane %v1373, 4
      %v1376 = vshll.u32 %v1021, 16
      %v1378 = vrot.slane %v1376, 5
      %v1379 = vor.u32 %v1375, %v1378
      %v1380 = vrot.slane %v1379, 4
      %v1382 = vshll.u32 %v1022, 16
      %v1384 = vrot.slane %v1382, 5
      %v1385 = vsel %vm1035, %v1380, %v1384
      %v1386 = vshrl.u32 %v1022, 16
      %v1388 = vrot.slane %v1386, 4
      %v1389 = vor.u32 %v1388, %v1384
      %v1390 = vrot.slane %v1389, 4
      %v1392 = vshll.u32 %v1023, 16
      %v1394 = vrot.slane %v1392, 5
      %v1395 = vsel %vm1035, %v1390, %v1394
      %v1397 = vshrl.u32 %v1024, 16
      %v1399 = vrot.slane %v1397, 4
      %v1400 = vshll.u32 %v1024, 16
      %v1402 = vrot.slane %v1400, 5
      %v1403 = vor.u32 %v1399, %v1402
      %v1404 = vrot.slane %v1403, 4
      %v1406 = vshll.u32 %v1025, 16
      %v1408 = vrot.slane %v1406, 5
      %v1409 = vsel %vm1035, %v1404, %v1408
      %v1410 = vshrl.u32 %v1025, 16
      %v1412 = vrot.slane %v1410, 4
      %v1413 = vor.u32 %v1412, %v1408
      %v1414 = vrot.slane %v1413, 4
      %v1416 = vshll.u32 %v1026, 16
      %v1418 = vrot.slane %v1416, 5
      %v1419 = vsel %vm1035, %v1414, %v1418
      %vm1468 = vcmask 1042432
      %vm1469 = vcmask 1046532
      %vm1470 = vmor %vm1468, %vm1469
      %v1471 = vrot.slane %v979, 5
      %v1472 = vrot.slane %v1471, 4
      %v1473 = vrot.slane %v980, 5
      %v1474 = vsel %vm1470, %v1472, %v1473
      %v1475 = vrot.slane %v1473, 4
      %v1476 = vrot.slane %v981, 5
      %v1477 = vsel %vm1470, %v1475, %v1476
      %v1478 = vrot.slane %v982, 5
      %v1479 = vrot.slane %v1478, 4
      %v1480 = vrot.slane %v983, 5
      %v1481 = vsel %vm1470, %v1479, %v1480
      %v1482 = vrot.slane %v1480, 4
      %v1483 = vrot.slane %v984, 5
      %v1484 = vsel %vm1470, %v1482, %v1483
      %v1485 = vrot.slane %v985, 5
      %v1486 = vrot.slane %v1485, 4
      %v1487 = vrot.slane %v986, 5
      %v1488 = vsel %vm1470, %v1486, %v1487
      %v1489 = vrot.slane %v1487, 4
      %v1490 = vrot.slane %v987, 5
      %v1491 = vsel %vm1470, %v1489, %v1490
      %v1492 = vrot.slane %v988, 5
      %v1493 = vrot.slane %v1492, 4
      %v1494 = vrot.slane %v989, 5
      %v1495 = vsel %vm1470, %v1493, %v1494
      %v1496 = vrot.slane %v1494, 4
      %v1497 = vrot.slane %v990, 5
      %v1498 = vsel %vm1470, %v1496, %v1497
      %v1499 = vrot.slane %v991, 5
      %v1500 = vrot.slane %v1499, 4
      %v1501 = vrot.slane %v992, 5
      %v1502 = vsel %vm1470, %v1500, %v1501
      %v1503 = vrot.slane %v1501, 4
      %v1504 = vrot.slane %v993, 5
      %v1505 = vsel %vm1470, %v1503, %v1504
      %v1506 = vrot.slane %v994, 5
      %v1507 = vrot.slane %v1506, 4
      %v1508 = vrot.slane %v995, 5
      %v1509 = vsel %vm1470, %v1507, %v1508
      %v1510 = vrot.slane %v1508, 4
      %v1511 = vrot.slane %v996, 5
      %v1512 = vsel %vm1470, %v1510, %v1511
      %v1513 = vrot.slane %v997, 5
      %v1514 = vrot.slane %v1513, 4
      %v1515 = vrot.slane %v998, 5
      %v1516 = vsel %vm1470, %v1514, %v1515
      %v1517 = vrot.slane %v1515, 4
      %v1518 = vrot.slane %v999, 5
      %v1519 = vsel %vm1470, %v1517, %v1518
      %v1520 = vrot.slane %v1000, 5
      %v1521 = vrot.slane %v1520, 4
      %v1522 = vrot.slane %v1001, 5
      %v1523 = vsel %vm1470, %v1521, %v1522
      %v1524 = vrot.slane %v1522, 4
      %v1525 = vrot.slane %v1002, 5
      %v1526 = vsel %vm1470, %v1524, %v1525
      %v1527 = vrot.slane %v1003, 5
      %v1528 = vrot.slane %v1527, 4
      %v1529 = vrot.slane %v1004, 5
      %v1530 = vsel %vm1470, %v1528, %v1529
      %v1531 = vrot.slane %v1529, 4
      %v1532 = vrot.slane %v1005, 5
      %v1533 = vsel %vm1470, %v1531, %v1532
      %v1534 = vrot.slane %v1006, 5
      %v1535 = vrot.slane %v1534, 4
      %v1536 = vrot.slane %v1007, 5
      %v1537 = vsel %vm1470, %v1535, %v1536
      %v1538 = vrot.slane %v1536, 4
      %v1539 = vrot.slane %v1008, 5
      %v1540 = vsel %vm1470, %v1538, %v1539
      %v1541 = vrot.slane %v1009, 5
      %v1542 = vrot.slane %v1541, 4
      %v1543 = vrot.slane %v1010, 5
      %v1544 = vsel %vm1470, %v1542, %v1543
      %v1545 = vrot.slane %v1543, 4
      %v1546 = vrot.slane %v1011, 5
      %v1547 = vsel %vm1470, %v1545, %v1546
      %v1548 = vrot.slane %v1012, 5
      %v1549 = vrot.slane %v1548, 4
      %v1550 = vrot.slane %v1013, 5
      %v1551 = vsel %vm1470, %v1549, %v1550
      %v1552 = vrot.slane %v1550, 4
      %v1553 = vrot.slane %v1014, 5
      %v1554 = vsel %vm1470, %v1552, %v1553
      %v1555 = vrot.slane %v1015, 5
      %v1556 = vrot.slane %v1555, 4
      %v1557 = vrot.slane %v1016, 5
      %v1558 = vsel %vm1470, %v1556, %v1557
      %v1559 = vrot.slane %v1557, 4
      %v1560 = vrot.slane %v1017, 5
      %v1561 = vsel %vm1470, %v1559, %v1560
      %v1562 = vrot.slane %v1018, 5
      %v1563 = vrot.slane %v1562, 4
      %v1564 = vrot.slane %v1019, 5
      %v1565 = vsel %vm1470, %v1563, %v1564
      %v1566 = vrot.slane %v1564, 4
      %v1567 = vrot.slane %v1020, 5
      %v1568 = vsel %vm1470, %v1566, %v1567
      %v1569 = vrot.slane %v1021, 5
      %v1570 = vrot.slane %v1569, 4
      %v1571 = vrot.slane %v1022, 5
      %v1572 = vsel %vm1470, %v1570, %v1571
      %v1573 = vrot.slane %v1571, 4
      %v1574 = vrot.slane %v1023, 5
      %v1575 = vsel %vm1470, %v1573, %v1574
      %v1576 = vrot.slane %v1024, 5
      %v1577 = vrot.slane %v1576, 4
      %v1578 = vrot.slane %v1025, 5
      %v1579 = vsel %vm1470, %v1577, %v1578
      %v1580 = vrot.slane %v1578, 4
      %v1581 = vrot.slane %v1026, 5
      %v1582 = vsel %vm1470, %v1580, %v1581
      %v1584 = vshrl.u32 %v1027, 16
      %v1586 = vrot.slane %v1584, 4
      %v1587 = vshll.u32 %v1027, 16
      %v1589 = vrot.slane %v1587, 5
      %v1590 = vor.u32 %v1586, %v1589
      %v1591 = vrot.slane %v1590, 4
      %v1593 = vshll.u32 %v1028, 16
      %v1595 = vrot.slane %v1593, 5
      %v1596 = vsel %vm1035, %v1591, %v1595
      %v1597 = vshrl.u32 %v1028, 16
      %v1599 = vrot.slane %v1597, 4
      %v1600 = vor.u32 %v1599, %v1595
      %v1601 = vrot.slane %v1600, 4
      %v1603 = vshll.u32 %v1029, 16
      %v1605 = vrot.slane %v1603, 5
      %v1606 = vsel %vm1035, %v1601, %v1605
      %v1610 = vrot.slane %v1027, 5
      %v1611 = vrot.slane %v1610, 4
      %v1612 = vrot.slane %v1028, 5
      %v1613 = vsel %vm1470, %v1611, %v1612
      %v1614 = vrot.slane %v1612, 4
      %v1615 = vrot.slane %v1029, 5
      %v1616 = vsel %vm1470, %v1614, %v1615
      %v1618 = vshrl.u32 %v1030, 16
      %v1620 = vrot.slane %v1618, 4
      %v1621 = vshll.u32 %v1030, 16
      %v1623 = vrot.slane %v1621, 5
      %v1624 = vor.u32 %v1620, %v1623
      %v1625 = vrot.slane %v1624, 4
      %v1627 = vshll.u32 %v1031, 16
      %v1629 = vrot.slane %v1627, 5
      %v1630 = vsel %vm1035, %v1625, %v1629
      %v1631 = vshrl.u32 %v1031, 16
      %v1633 = vrot.slane %v1631, 4
      %v1634 = vor.u32 %v1633, %v1629
      %v1635 = vrot.slane %v1634, 4
      %v1637 = vshll.u32 %v1032, 16
      %v1639 = vrot.slane %v1637, 5
      %v1640 = vsel %vm1035, %v1635, %v1639
      %v1644 = vrot.slane %v1030, 5
      %v1645 = vrot.slane %v1644, 4
      %v1646 = vrot.slane %v1031, 5
      %v1647 = vsel %vm1470, %v1645, %v1646
      %v1648 = vrot.slane %v1646, 4
      %v1649 = vrot.slane %v1032, 5
      %v1650 = vsel %vm1470, %v1648, %v1649
      %v1651 = vunpack.c.l.b16 %v979
      %v1652 = vunpack.c.l.b16 %v980
      %v1653 = vunpack.c.l.b16 %v982
      %v1654 = vunpack.c.l.b16 %v983
      %v1655 = vunpack.c.l.b16 %v985
      %v1656 = vunpack.c.l.b16 %v986
      %v1657 = vunpack.c.l.b16 %v988
      %v1658 = vunpack.c.l.b16 %v989
      %v1659 = vunpack.c.l.b16 %v991
      %v1660 = vunpack.c.l.b16 %v992
      %v1661 = vunpack.c.l.b16 %v994
      %v1662 = vunpack.c.l.b16 %v995
      %v1663 = vunpack.c.l.b16 %v997
      %v1664 = vunpack.c.l.b16 %v998
      %v1665 = vunpack.c.l.b16 %v1000
      %v1666 = vunpack.c.l.b16 %v1001
      %v1667 = vunpack.c.l.b16 %v1003
      %v1668 = vunpack.c.l.b16 %v1004
      %v1669 = vunpack.c.l.b16 %v1006
      %v1670 = vunpack.c.l.b16 %v1007
      %v1671 = vunpack.c.l.b16 %v1009
      %v1672 = vunpack.c.l.b16 %v1010
      %v1673 = vunpack.c.l.b16 %v1012
      %v1674 = vunpack.c.l.b16 %v1013
      %v1675 = vunpack.c.l.b16 %v1015
      %v1676 = vunpack.c.l.b16 %v1016
      %v1677 = vunpack.c.l.b16 %v1018
      %v1678 = vunpack.c.l.b16 %v1019
      %v1679 = vunpack.c.l.b16 %v1021
      %v1680 = vunpack.c.l.b16 %v1022
      %v1681 = vunpack.c.l.b16 %v1024
      %v1682 = vunpack.c.l.b16 %v1025
      %v1683 = vpack.c.b16 %v1652, %v1651
      %v1684 = vpack.c.b16 %v1654, %v1653
      %v1685 = vpack.c.b16 %v1656, %v1655
      %v1686 = vpack.c.b16 %v1658, %v1657
      %v1687 = vpack.c.b16 %v1660, %v1659
      %v1688 = vpack.c.b16 %v1662, %v1661
      %v1689 = vpack.c.b16 %v1664, %v1663
      %v1690 = vpack.c.b16 %v1666, %v1665
      %v1691 = vpack.c.b16 %v1668, %v1667
      %v1692 = vpack.c.b16 %v1670, %v1669
      %v1693 = vpack.c.b16 %v1672, %v1671
      %v1694 = vpack.c.b16 %v1674, %v1673
      %v1695 = vpack.c.b16 %v1676, %v1675
      %v1696 = vpack.c.b16 %v1678, %v1677
      %v1697 = vpack.c.b16 %v1680, %v1679
      %v1698 = vpack.c.b16 %v1682, %v1681
      %v1699 = vunpack.c.l.b16 %v1049
      %v1700 = vunpack.c.l.b16 %v1059
      %v1701 = vunpack.c.l.b16 %v1073
      %v1702 = vunpack.c.l.b16 %v1083
      %v1703 = vunpack.c.l.b16 %v1097
      %v1704 = vunpack.c.l.b16 %v1107
      %v1705 = vunpack.c.l.b16 %v1121
      %v1706 = vunpack.c.l.b16 %v1131
      %v1707 = vunpack.c.l.b16 %v1145
      %v1708 = vunpack.c.l.b16 %v1155
      %v1709 = vunpack.c.l.b16 %v1169
      %v1710 = vunpack.c.l.b16 %v1179
      %v1711 = vunpack.c.l.b16 %v1193
      %v1712 = vunpack.c.l.b16 %v1203
      %v1713 = vunpack.c.l.b16 %v1217
      %v1714 = vunpack.c.l.b16 %v1227
      %v1715 = vunpack.c.l.b16 %v1241
      %v1716 = vunpack.c.l.b16 %v1251
      %v1717 = vunpack.c.l.b16 %v1265
      %v1718 = vunpack.c.l.b16 %v1275
      %v1719 = vunpack.c.l.b16 %v1289
      %v1720 = vunpack.c.l.b16 %v1299
      %v1721 = vunpack.c.l.b16 %v1313
      %v1722 = vunpack.c.l.b16 %v1323
      %v1723 = vunpack.c.l.b16 %v1337
      %v1724 = vunpack.c.l.b16 %v1347
      %v1725 = vunpack.c.l.b16 %v1361
      %v1726 = vunpack.c.l.b16 %v1371
      %v1727 = vunpack.c.l.b16 %v1385
      %v1728 = vunpack.c.l.b16 %v1395
      %v1729 = vunpack.c.l.b16 %v1409
      %v1730 = vunpack.c.l.b16 %v1419
      %v1731 = vpack.c.b16 %v1700, %v1699
      %v1732 = vpack.c.b16 %v1702, %v1701
      %v1733 = vpack.c.b16 %v1704, %v1703
      %v1734 = vpack.c.b16 %v1706, %v1705
      %v1735 = vpack.c.b16 %v1708, %v1707
      %v1736 = vpack.c.b16 %v1710, %v1709
      %v1737 = vpack.c.b16 %v1712, %v1711
      %v1738 = vpack.c.b16 %v1714, %v1713
      %v1739 = vpack.c.b16 %v1716, %v1715
      %v1740 = vpack.c.b16 %v1718, %v1717
      %v1741 = vpack.c.b16 %v1720, %v1719
      %v1742 = vpack.c.b16 %v1722, %v1721
      %v1743 = vpack.c.b16 %v1724, %v1723
      %v1744 = vpack.c.b16 %v1726, %v1725
      %v1745 = vpack.c.b16 %v1728, %v1727
      %v1746 = vpack.c.b16 %v1730, %v1729
      %1747 = vrot.lane.b32.xlu0 %v1731, 32
      %v1748 = vpop.permute.xlu0 %1747
      %1749 = vrot.lane.b32.xlu0 %v1732, 32
      %v1750 = vpop.permute.xlu0 %1749
      %1751 = vrot.lane.b32.xlu0 %v1733, 32
      %v1752 = vpop.permute.xlu0 %1751
      %1753 = vrot.lane.b32.xlu0 %v1734, 32
      %v1754 = vpop.permute.xlu0 %1753
      %1755 = vrot.lane.b32.xlu0 %v1735, 32
      %v1756 = vpop.permute.xlu0 %1755
      %1757 = vrot.lane.b32.xlu0 %v1736, 32
      %v1758 = vpop.permute.xlu0 %1757
      %1759 = vrot.lane.b32.xlu0 %v1737, 32
      %v1760 = vpop.permute.xlu0 %1759
      %1761 = vrot.lane.b32.xlu0 %v1738, 32
      %v1762 = vpop.permute.xlu0 %1761
      %1763 = vrot.lane.b32.xlu0 %v1739, 32
      %v1764 = vpop.permute.xlu0 %1763
      %1765 = vrot.lane.b32.xlu0 %v1740, 32
      %v1766 = vpop.permute.xlu0 %1765
      %1767 = vrot.lane.b32.xlu0 %v1741, 32
      %v1768 = vpop.permute.xlu0 %1767
      %1769 = vrot.lane.b32.xlu0 %v1742, 32
      %v1770 = vpop.permute.xlu0 %1769
      %1771 = vrot.lane.b32.xlu0 %v1743, 32
      %v1772 = vpop.permute.xlu0 %1771
      %1773 = vrot.lane.b32.xlu0 %v1744, 32
      %v1774 = vpop.permute.xlu0 %1773
      %1775 = vrot.lane.b32.xlu0 %v1745, 32
      %v1776 = vpop.permute.xlu0 %1775
      %1777 = vrot.lane.b32.xlu0 %v1746, 32
      %v1778 = vpop.permute.xlu0 %1777
      %v1779 = vunpack.c.l.b16 %v1474
      %v1780 = vunpack.c.l.b16 %v1477
      %v1781 = vunpack.c.l.b16 %v1481
      %v1782 = vunpack.c.l.b16 %v1484
      %v1783 = vunpack.c.l.b16 %v1488
      %v1784 = vunpack.c.l.b16 %v1491
      %v1785 = vunpack.c.l.b16 %v1495
      %v1786 = vunpack.c.l.b16 %v1498
      %v1787 = vunpack.c.l.b16 %v1502
      %v1788 = vunpack.c.l.b16 %v1505
      %v1789 = vunpack.c.l.b16 %v1509
      %v1790 = vunpack.c.l.b16 %v1512
      %v1791 = vunpack.c.l.b16 %v1516
      %v1792 = vunpack.c.l.b16 %v1519
      %v1793 = vunpack.c.l.b16 %v1523
      %v1794 = vunpack.c.l.b16 %v1526
      %v1795 = vunpack.c.l.b16 %v1530
      %v1796 = vunpack.c.l.b16 %v1533
      %v1797 = vunpack.c.l.b16 %v1537
      %v1798 = vunpack.c.l.b16 %v1540
      %v1799 = vunpack.c.l.b16 %v1544
      %v1800 = vunpack.c.l.b16 %v1547
      %v1801 = vunpack.c.l.b16 %v1551
      %v1802 = vunpack.c.l.b16 %v1554
      %v1803 = vunpack.c.l.b16 %v1558
      %v1804 = vunpack.c.l.b16 %v1561
      %v1805 = vunpack.c.l.b16 %v1565
      %v1806 = vunpack.c.l.b16 %v1568
      %v1807 = vunpack.c.l.b16 %v1572
      %v1808 = vunpack.c.l.b16 %v1575
      %v1809 = vunpack.c.l.b16 %v1579
      %v1810 = vunpack.c.l.b16 %v1582
      %v1811 = vpack.c.b16 %v1780, %v1779
      %v1812 = vpack.c.b16 %v1782, %v1781
      %v1813 = vpack.c.b16 %v1784, %v1783
      %v1814 = vpack.c.b16 %v1786, %v1785
      %v1815 = vpack.c.b16 %v1788, %v1787
      %v1816 = vpack.c.b16 %v1790, %v1789
      %v1817 = vpack.c.b16 %v1792, %v1791
      %v1818 = vpack.c.b16 %v1794, %v1793
      %v1819 = vpack.c.b16 %v1796, %v1795
      %v1820 = vpack.c.b16 %v1798, %v1797
      %v1821 = vpack.c.b16 %v1800, %v1799
      %v1822 = vpack.c.b16 %v1802, %v1801
      %v1823 = vpack.c.b16 %v1804, %v1803
      %v1824 = vpack.c.b16 %v1806, %v1805
      %v1825 = vpack.c.b16 %v1808, %v1807
      %v1826 = vpack.c.b16 %v1810, %v1809
      %1827 = vrot.lane.b32.xlu0 %v1811, 64
      %v1828 = vpop.permute.xlu0 %1827
      %1829 = vrot.lane.b32.xlu0 %v1812, 64
      %v1830 = vpop.permute.xlu0 %1829
      %1831 = vrot.lane.b32.xlu0 %v1813, 64
      %v1832 = vpop.permute.xlu0 %1831
      %1833 = vrot.lane.b32.xlu0 %v1814, 64
      %v1834 = vpop.permute.xlu0 %1833
      %1835 = vrot.lane.b32.xlu0 %v1815, 64
      %v1836 = vpop.permute.xlu0 %1835
      %1837 = vrot.lane.b32.xlu0 %v1816, 64
      %v1838 = vpop.permute.xlu0 %1837
      %1839 = vrot.lane.b32.xlu0 %v1817, 64
      %v1840 = vpop.permute.xlu0 %1839
      %1841 = vrot.lane.b32.xlu0 %v1818, 64
      %v1842 = vpop.permute.xlu0 %1841
      %1843 = vrot.lane.b32.xlu0 %v1819, 64
      %v1844 = vpop.permute.xlu0 %1843
      %1845 = vrot.lane.b32.xlu0 %v1820, 64
      %v1846 = vpop.permute.xlu0 %1845
      %1847 = vrot.lane.b32.xlu0 %v1821, 64
      %v1848 = vpop.permute.xlu0 %1847
      %1849 = vrot.lane.b32.xlu0 %v1822, 64
      %v1850 = vpop.permute.xlu0 %1849
      %1851 = vrot.lane.b32.xlu0 %v1823, 64
      %v1852 = vpop.permute.xlu0 %1851
      %1853 = vrot.lane.b32.xlu0 %v1824, 64
      %v1854 = vpop.permute.xlu0 %1853
      %1855 = vrot.lane.b32.xlu0 %v1825, 64
      %v1856 = vpop.permute.xlu0 %1855
      %1857 = vrot.lane.b32.xlu0 %v1826, 64
      %v1858 = vpop.permute.xlu0 %1857
      %v1859 = vunpack.c.l.b16 %v1027
      %v1860 = vunpack.c.l.b16 %v1028
      %v1861 = vpack.c.b16 %v1860, %v1859
      %1862 = vrot.lane.b32.xlu0 %v1684, 96
      %v1863 = vpop.permute.xlu0 %1862
      %1864 = vrot.lane.b32.xlu0 %v1685, 96
      %v1865 = vpop.permute.xlu0 %1864
      %1866 = vrot.lane.b32.xlu0 %v1686, 96
      %v1867 = vpop.permute.xlu0 %1866
      %1868 = vrot.lane.b32.xlu0 %v1687, 96
      %v1869 = vpop.permute.xlu0 %1868
      %1870 = vrot.lane.b32.xlu0 %v1688, 96
      %v1871 = vpop.permute.xlu0 %1870
      %1872 = vrot.lane.b32.xlu0 %v1689, 96
      %v1873 = vpop.permute.xlu0 %1872
      %1874 = vrot.lane.b32.xlu0 %v1690, 96
      %v1875 = vpop.permute.xlu0 %1874
      %1876 = vrot.lane.b32.xlu0 %v1691, 96
      %v1877 = vpop.permute.xlu0 %1876
      %1878 = vrot.lane.b32.xlu0 %v1692, 96
      %v1879 = vpop.permute.xlu0 %1878
      %1880 = vrot.lane.b32.xlu0 %v1693, 96
      %v1881 = vpop.permute.xlu0 %1880
      %1882 = vrot.lane.b32.xlu0 %v1694, 96
      %v1883 = vpop.permute.xlu0 %1882
      %1884 = vrot.lane.b32.xlu0 %v1695, 96
      %v1885 = vpop.permute.xlu0 %1884
      %1886 = vrot.lane.b32.xlu0 %v1696, 96
      %v1887 = vpop.permute.xlu0 %1886
      %1888 = vrot.lane.b32.xlu0 %v1697, 96
      %v1889 = vpop.permute.xlu0 %1888
      %1890 = vrot.lane.b32.xlu0 %v1698, 96
      %v1891 = vpop.permute.xlu0 %1890
      %1892 = vrot.lane.b32.xlu0 %v1861, 96
      %v1893 = vpop.permute.xlu0 %1892
      %v1894 = vunpack.c.l.b16 %v1596
      %v1895 = vunpack.c.l.b16 %v1606
      %v1896 = vpack.c.b16 %v1895, %v1894
      %v1897 = vunpack.c.l.b16 %v1613
      %v1898 = vunpack.c.l.b16 %v1616
      %v1899 = vpack.c.b16 %v1898, %v1897
      %1900 = vrot.lane.b32.xlu0 %v1812, 32
      %v1901 = vpop.permute.xlu0 %1900
      %1902 = vrot.lane.b32.xlu0 %v1813, 32
      %v1903 = vpop.permute.xlu0 %1902
      %1904 = vrot.lane.b32.xlu0 %v1814, 32
      %v1905 = vpop.permute.xlu0 %1904
      %1906 = vrot.lane.b32.xlu0 %v1815, 32
      %v1907 = vpop.permute.xlu0 %1906
      %1908 = vrot.lane.b32.xlu0 %v1816, 32
      %v1909 = vpop.permute.xlu0 %1908
      %1910 = vrot.lane.b32.xlu0 %v1817, 32
      %v1911 = vpop.permute.xlu0 %1910
      %1912 = vrot.lane.b32.xlu0 %v1818, 32
      %v1913 = vpop.permute.xlu0 %1912
      %1914 = vrot.lane.b32.xlu0 %v1819, 32
      %v1915 = vpop.permute.xlu0 %1914
      %1916 = vrot.lane.b32.xlu0 %v1820, 32
      %v1917 = vpop.permute.xlu0 %1916
      %1918 = vrot.lane.b32.xlu0 %v1821, 32
      %v1919 = vpop.permute.xlu0 %1918
      %1920 = vrot.lane.b32.xlu0 %v1822, 32
      %v1921 = vpop.permute.xlu0 %1920
      %1922 = vrot.lane.b32.xlu0 %v1823, 32
      %v1923 = vpop.permute.xlu0 %1922
      %1924 = vrot.lane.b32.xlu0 %v1824, 32
      %v1925 = vpop.permute.xlu0 %1924
      %1926 = vrot.lane.b32.xlu0 %v1825, 32
      %v1927 = vpop.permute.xlu0 %1926
      %1928 = vrot.lane.b32.xlu0 %v1826, 32
      %v1929 = vpop.permute.xlu0 %1928
      %1930 = vrot.lane.b32.xlu0 %v1899, 32
      %v1931 = vpop.permute.xlu0 %1930
      %v1932 = vunpack.c.l.b16 %v1030
      %v1933 = vunpack.c.l.b16 %v1031
      %v1934 = vpack.c.b16 %v1933, %v1932
      %1935 = vrot.lane.b32.xlu0 %v1685, 64
      %v1936 = vpop.permute.xlu0 %1935
      %1937 = vrot.lane.b32.xlu0 %v1686, 64
      %v1938 = vpop.permute.xlu0 %1937
      %1939 = vrot.lane.b32.xlu0 %v1687, 64
      %v1940 = vpop.permute.xlu0 %1939
      %1941 = vrot.lane.b32.xlu0 %v1688, 64
      %v1942 = vpop.permute.xlu0 %1941
      %1943 = vrot.lane.b32.xlu0 %v1689, 64
      %v1944 = vpop.permute.xlu0 %1943
      %1945 = vrot.lane.b32.xlu0 %v1690, 64
      %v1946 = vpop.permute.xlu0 %1945
      %1947 = vrot.lane.b32.xlu0 %v1691, 64
      %v1948 = vpop.permute.xlu0 %1947
      %1949 = vrot.lane.b32.xlu0 %v1692, 64
      %v1950 = vpop.permute.xlu0 %1949
      %1951 = vrot.lane.b32.xlu0 %v1693, 64
      %v1952 = vpop.permute.xlu0 %1951
      %1953 = vrot.lane.b32.xlu0 %v1694, 64
      %v1954 = vpop.permute.xlu0 %1953
      %1955 = vrot.lane.b32.xlu0 %v1695, 64
      %v1956 = vpop.permute.xlu0 %1955
      %1957 = vrot.lane.b32.xlu0 %v1696, 64
      %v1958 = vpop.permute.xlu0 %1957
      %1959 = vrot.lane.b32.xlu0 %v1697, 64
      %v1960 = vpop.permute.xlu0 %1959
      %1961 = vrot.lane.b32.xlu0 %v1698, 64
      %v1962 = vpop.permute.xlu0 %1961
      %1963 = vrot.lane.b32.xlu0 %v1861, 64
      %v1964 = vpop.permute.xlu0 %1963
      %1965 = vrot.lane.b32.xlu0 %v1934, 64
      %v1966 = vpop.permute.xlu0 %1965
      %v1967 = vunpack.c.l.b16 %v1630
      %v1968 = vunpack.c.l.b16 %v1640
      %v1969 = vpack.c.b16 %v1968, %v1967
      %1970 = vrot.lane.b32.xlu0 %v1733, 96
      %v1971 = vpop.permute.xlu0 %1970
      %1972 = vrot.lane.b32.xlu0 %v1734, 96
      %v1973 = vpop.permute.xlu0 %1972
      %1974 = vrot.lane.b32.xlu0 %v1735, 96
      %v1975 = vpop.permute.xlu0 %1974
      %1976 = vrot.lane.b32.xlu0 %v1736, 96
      %v1977 = vpop.permute.xlu0 %1976
      %1978 = vrot.lane.b32.xlu0 %v1737, 96
      %v1979 = vpop.permute.xlu0 %1978
      %1980 = vrot.lane.b32.xlu0 %v1738, 96
      %v1981 = vpop.permute.xlu0 %1980
      %1982 = vrot.lane.b32.xlu0 %v1739, 96
      %v1983 = vpop.permute.xlu0 %1982
      %1984 = vrot.lane.b32.xlu0 %v1740, 96
      %v1985 = vpop.permute.xlu0 %1984
      %1986 = vrot.lane.b32.xlu0 %v1741, 96
      %v1987 = vpop.permute.xlu0 %1986
      %1988 = vrot.lane.b32.xlu0 %v1742, 96
      %v1989 = vpop.permute.xlu0 %1988
      %1990 = vrot.lane.b32.xlu0 %v1743, 96
      %v1991 = vpop.permute.xlu0 %1990
      %1992 = vrot.lane.b32.xlu0 %v1744, 96
      %v1993 = vpop.permute.xlu0 %1992
      %1994 = vrot.lane.b32.xlu0 %v1745, 96
      %v1995 = vpop.permute.xlu0 %1994
      %1996 = vrot.lane.b32.xlu0 %v1746, 96
      %v1997 = vpop.permute.xlu0 %1996
      %1998 = vrot.lane.b32.xlu0 %v1896, 96
      %v1999 = vpop.permute.xlu0 %1998
      %2000 = vrot.lane.b32.xlu0 %v1969, 96
      %v2001 = vpop.permute.xlu0 %2000
      %v2002 = vunpack.c.l.b16 %v1647
      %v2003 = vunpack.c.l.b16 %v1650
      %v2004 = vpack.c.b16 %v2003, %v2002
      %vm2005 = vcmask 261120
      %v2008 = vsel %vm2005, %v1683, %v1748
      %v2011 = vsel %vm2005, %v1684, %v1750
      %v2014 = vsel %vm2005, %v1685, %v1752
      %v2017 = vsel %vm2005, %v1686, %v1754
      %v2020 = vsel %vm2005, %v1687, %v1756
      %v2023 = vsel %vm2005, %v1688, %v1758
      %v2026 = vsel %vm2005, %v1689, %v1760
      %v2029 = vsel %vm2005, %v1690, %v1762
      %v2032 = vsel %vm2005, %v1691, %v1764
      %v2035 = vsel %vm2005, %v1692, %v1766
      %v2038 = vsel %vm2005, %v1693, %v1768
      %v2041 = vsel %vm2005, %v1694, %v1770
      %v2044 = vsel %vm2005, %v1695, %v1772
      %v2047 = vsel %vm2005, %v1696, %v1774
      %v2050 = vsel %vm2005, %v1697, %v1776
      %v2053 = vsel %vm2005, %v1698, %v1778
      %vm2054 = vcmask 523264
      %v2056 = vsel %vm2054, %v2008, %v1828
      %v2058 = vsel %vm2054, %v2011, %v1830
      %v2060 = vsel %vm2054, %v2014, %v1832
      %v2062 = vsel %vm2054, %v2017, %v1834
      %v2064 = vsel %vm2054, %v2020, %v1836
      %v2066 = vsel %vm2054, %v2023, %v1838
      %v2068 = vsel %vm2054, %v2026, %v1840
      %v2070 = vsel %vm2054, %v2029, %v1842
      %v2072 = vsel %vm2054, %v2032, %v1844
      %v2074 = vsel %vm2054, %v2035, %v1846
      %v2076 = vsel %vm2054, %v2038, %v1848
      %v2078 = vsel %vm2054, %v2041, %v1850
      %v2080 = vsel %vm2054, %v2044, %v1852
      %v2082 = vsel %vm2054, %v2047, %v1854
      %v2084 = vsel %vm2054, %v2050, %v1856
      %v2086 = vsel %vm2054, %v2053, %v1858
      %vm2087 = vcmask 785408
      %v2089 = vsel %vm2087, %v2056, %v1863
      %v2092 = vsel %vm2087, %v2058, %v1865
      %v2095 = vsel %vm2087, %v2060, %v1867
      %v2098 = vsel %vm2087, %v2062, %v1869
      %v2101 = vsel %vm2087, %v2064, %v1871
      %v2104 = vsel %vm2087, %v2066, %v1873
      %v2107 = vsel %vm2087, %v2068, %v1875
      %v2110 = vsel %vm2087, %v2070, %v1877
      %v2113 = vsel %vm2087, %v2072, %v1879
      %v2116 = vsel %vm2087, %v2074, %v1881
      %v2119 = vsel %vm2087, %v2076, %v1883
      %v2122 = vsel %vm2087, %v2078, %v1885
      %v2125 = vsel %vm2087, %v2080, %v1887
      %v2128 = vsel %vm2087, %v2082, %v1889
      %v2131 = vsel %vm2087, %v2084, %v1891
      %v2134 = vsel %vm2087, %v2086, %v1893
      %v2138 = vsel %vm2005, %v1732, %v1901
      %v2141 = vsel %vm2005, %v1733, %v1903
      %v2144 = vsel %vm2005, %v1734, %v1905
      %v2147 = vsel %vm2005, %v1735, %v1907
      %v2150 = vsel %vm2005, %v1736, %v1909
      %v2153 = vsel %vm2005, %v1737, %v1911
      %v2156 = vsel %vm2005, %v1738, %v1913
      %v2159 = vsel %vm2005, %v1739, %v1915
      %v2162 = vsel %vm2005, %v1740, %v1917
      %v2165 = vsel %vm2005, %v1741, %v1919
      %v2168 = vsel %vm2005, %v1742, %v1921
      %v2171 = vsel %vm2005, %v1743, %v1923
      %v2174 = vsel %vm2005, %v1744, %v1925
      %v2177 = vsel %vm2005, %v1745, %v1927
      %v2180 = vsel %vm2005, %v1746, %v1929
      %v2183 = vsel %vm2005, %v1896, %v1931
      %v2185 = vsel %vm2054, %v2138, %v1936
      %v2187 = vsel %vm2054, %v2141, %v1938
      %v2189 = vsel %vm2054, %v2144, %v1940
      %v2191 = vsel %vm2054, %v2147, %v1942
      %v2193 = vsel %vm2054, %v2150, %v1944
      %v2195 = vsel %vm2054, %v2153, %v1946
      %v2197 = vsel %vm2054, %v2156, %v1948
      %v2199 = vsel %vm2054, %v2159, %v1950
      %v2201 = vsel %vm2054, %v2162, %v1952
      %v2203 = vsel %vm2054, %v2165, %v1954
      %v2205 = vsel %vm2054, %v2168, %v1956
      %v2207 = vsel %vm2054, %v2171, %v1958
      %v2209 = vsel %vm2054, %v2174, %v1960
      %v2211 = vsel %vm2054, %v2177, %v1962
      %v2213 = vsel %vm2054, %v2180, %v1964
      %v2215 = vsel %vm2054, %v2183, %v1966
      %v2217 = vsel %vm2087, %v2185, %v1971
      %v2220 = vsel %vm2087, %v2187, %v1973
      %v2223 = vsel %vm2087, %v2189, %v1975
      %v2226 = vsel %vm2087, %v2191, %v1977
      %v2229 = vsel %vm2087, %v2193, %v1979
      %v2232 = vsel %vm2087, %v2195, %v1981
      %v2235 = vsel %vm2087, %v2197, %v1983
      %v2238 = vsel %vm2087, %v2199, %v1985
      %v2241 = vsel %vm2087, %v2201, %v1987
      %v2244 = vsel %vm2087, %v2203, %v1989
      %v2247 = vsel %vm2087, %v2205, %v1991
      %v2250 = vsel %vm2087, %v2207, %v1993
      %v2253 = vsel %vm2087, %v2209, %v1995
      %v2256 = vsel %vm2087, %v2211, %v1997
      %v2259 = vsel %vm2087, %v2213, %v1999
      %v2262 = vsel %vm2087, %v2215, %v2001
      %v2264 = vld [vmem:[%s1] sm:$0xf]
      %v2265 = vld [vmem:[%s1 + $0x4] sm:$0xf]
      %v2266 = vld [vmem:[%s1 + $0x8] sm:$0xf]
      %v2267 = vld [vmem:[%s1 + $0xc] sm:$0xf]
      %v2268 = vld [vmem:[%s1 + $0x10] sm:$0xf]
      %v2269 = vld [vmem:[%s1 + $0x14] sm:$0xf]
      %v2270 = vld [vmem:[%s1 + $0x18] sm:$0xf]
      %v2271 = vld [vmem:[%s1 + $0x1c] sm:$0xf]
      %v2272 = vld [vmem:[%s1 + $0x20] sm:$0xf]
      %v2273 = vld [vmem:[%s1 + $0x24] sm:$0xf]
      %v2274 = vld [vmem:[%s1 + $0x28] sm:$0xf]
      %v2275 = vld [vmem:[%s1 + $0x2c] sm:$0xf]
      %v2276 = vld [vmem:[%s1 + $0x30] sm:$0xf]
      %v2277 = vld [vmem:[%s1 + $0x34] sm:$0xf]
      %v2278 = vld [vmem:[%s1 + $0x38] sm:$0xf]
      %v2279 = vld [vmem:[%s1 + $0x3c] sm:$0xf]
      %v2280 = vld [vmem:[%s1 + $0x40] sm:$0xf]
      %v2281 = vld [vmem:[%s1 + $0x44] sm:$0xf]
      %v2282 = vld [vmem:[%s1 + $0x48] sm:$0xf]
      %v2283 = vld [vmem:[%s1 + $0x4c] sm:$0xf]
      %v2284 = vld [vmem:[%s1 + $0x50] sm:$0xf]
      %v2285 = vld [vmem:[%s1 + $0x54] sm:$0xf]
      %v2286 = vld [vmem:[%s1 + $0x58] sm:$0xf]
      %v2287 = vld [vmem:[%s1 + $0x5c] sm:$0xf]
      %v2288 = vld [vmem:[%s1 + $0x60] sm:$0xf]
      %v2289 = vld [vmem:[%s1 + $0x64] sm:$0xf]
      %v2290 = vld [vmem:[%s1 + $0x68] sm:$0xf]
      %v2291 = vld [vmem:[%s1 + $0x6c] sm:$0xf]
      %v2292 = vld [vmem:[%s1 + $0x70] sm:$0xf]
      %v2293 = vld [vmem:[%s1 + $0x74] sm:$0xf]
      %v2294 = vld [vmem:[%s1 + $0x78] sm:$0xf]
      %v2295 = vld [vmem:[%s1 + $0x7c] sm:$0xf]
      %v2296 = vld [vmem:[%s1 + $0x80] sm:$0xf]
      %v2297 = vld [vmem:[%s1 + $0x84] sm:$0xf]
      %v2298 = vld [vmem:[%s1 + $0x88] sm:$0xf]
      %v2299 = vld [vmem:[%s1 + $0x8c] sm:$0xf]
      %v2300 = vld [vmem:[%s2] sm:$0x1]
      %v2302 = vlaneseq
      %v2303 = vshrl.u32 %v2302, 7
      %v2304 = vsub.s32 0, %v2303
      %v2305 = vrot.slane %v2300, %v2304
      %v2343 = vunpack.c.l.b16 %v2264
      %v2344 = vunpack.c.l.b16 %v2265
      %v2345 = vunpack.c.l.b16 %v2266
      %v2346 = vunpack.c.l.b16 %v2267
      %v2347 = vunpack.c.l.b16 %v2268
      %v2348 = vunpack.c.l.b16 %v2269
      %v2349 = vunpack.c.l.b16 %v2270
      %v2350 = vunpack.c.l.b16 %v2271
      %v2351 = vunpack.c.l.b16 %v2272
      %v2352 = vunpack.c.l.b16 %v2273
      %v2353 = vunpack.c.l.b16 %v2274
      %v2354 = vunpack.c.l.b16 %v2275
      %v2355 = vunpack.c.l.b16 %v2276
      %v2356 = vunpack.c.l.b16 %v2277
      %v2357 = vunpack.c.l.b16 %v2278
      %v2358 = vunpack.c.l.b16 %v2279
      %v2359 = vunpack.c.l.b16 %v2280
      %v2360 = vunpack.c.l.b16 %v2281
      %v2361 = vunpack.c.l.b16 %v2282
      %v2362 = vunpack.c.l.b16 %v2283
      %v2363 = vunpack.c.l.b16 %v2284
      %v2364 = vunpack.c.l.b16 %v2285
      %v2365 = vunpack.c.l.b16 %v2286
      %v2366 = vunpack.c.l.b16 %v2287
      %v2367 = vunpack.c.l.b16 %v2288
      %v2368 = vunpack.c.l.b16 %v2289
      %v2369 = vunpack.c.l.b16 %v2290
      %v2370 = vunpack.c.l.b16 %v2291
      %v2371 = vunpack.c.l.b16 %v2292
      %v2372 = vunpack.c.l.b16 %v2293
      %v2373 = vunpack.c.l.b16 %v2294
      %v2374 = vunpack.c.l.b16 %v2295
      %v2375 = vunpack.c.l.b16 %v2296
      %v2376 = vunpack.c.l.b16 %v2297
      %v2377 = vunpack.c.l.b16 %v2298
      %v2378 = vunpack.c.l.b16 %v2299
      %v2379 = vpack.c.b16 %v2344, %v2343
      %v2380 = vpack.c.b16 %v2346, %v2345
      %v2381 = vpack.c.b16 %v2348, %v2347
      %v2382 = vpack.c.b16 %v2350, %v2349
      %v2383 = vpack.c.b16 %v2352, %v2351
      %v2384 = vpack.c.b16 %v2354, %v2353
      %v2385 = vpack.c.b16 %v2356, %v2355
      %v2386 = vpack.c.b16 %v2358, %v2357
      %v2387 = vpack.c.b16 %v2360, %v2359
      %v2388 = vpack.c.b16 %v2362, %v2361
      %v2389 = vpack.c.b16 %v2364, %v2363
      %v2390 = vpack.c.b16 %v2366, %v2365
      %v2391 = vpack.c.b16 %v2368, %v2367
      %v2392 = vpack.c.b16 %v2370, %v2369
      %v2393 = vpack.c.b16 %v2372, %v2371
      %v2394 = vpack.c.b16 %v2374, %v2373
      %v2395 = vpack.c.b16 %v2376, %v2375
      %v2396 = vpack.c.b16 %v2378, %v2377
      %v2416 = vsel %vm2005, %v1813, 0
      %v2419 = vsel %vm2005, %v1814, 0
      %v2422 = vsel %vm2005, %v1815, 0
      %v2425 = vsel %vm2005, %v1816, 0
      %v2428 = vsel %vm2005, %v1817, 0
      %v2431 = vsel %vm2005, %v1818, 0
      %v2434 = vsel %vm2005, %v1819, 0
      %v2437 = vsel %vm2005, %v1820, 0
      %v2440 = vsel %vm2005, %v1821, 0
      %v2443 = vsel %vm2005, %v1822, 0
      %v2446 = vsel %vm2005, %v1823, 0
      %v2449 = vsel %vm2005, %v1824, 0
      %v2452 = vsel %vm2005, %v1825, 0
      %v2455 = vsel %vm2005, %v1826, 0
      %v2458 = vsel %vm2005, %v1899, 0
      %v2461 = vsel %vm2005, %v2004, 0
      %2463 = vmatprep.subr.bf16.mxu0 0
      %2464 = vmatpush1.bf16.msra.mxu0 %v2379
      %2465 = vmatprep.subr.bf16.mxu0 0
      %2466 = vmatpush1.bf16.msra.mxu0 %v2380
      %2467 = vmatprep.subr.bf16.mxu0 0
      %2468 = vmatpush1.bf16.msra.mxu0 %v2381
      %2469 = vmatprep.subr.bf16.mxu0 0
      %2470 = vmatpush1.bf16.msra.mxu0 %v2382
      %2471 = vmatprep.subr.bf16.mxu0 0
      %2472 = vmatpush1.bf16.msra.mxu0 %v2383
      %2473 = vmatprep.subr.bf16.mxu0 0
      %2474 = vmatpush1.bf16.msra.mxu0 %v2384
      %2475 = vmatprep.subr.bf16.mxu0 0
      %2476 = vmatpush1.bf16.msra.mxu0 %v2385
      %2477 = vmatprep.subr.bf16.mxu0 0
      %2478 = vmatpush1.bf16.msra.mxu0 %v2386
      %2479 = vmatprep.subr.bf16.mxu0 0
      %2480 = vmatpush1.bf16.msra.mxu0 %v2387
      %2481 = vmatprep.subr.bf16.mxu0 0
      %2482 = vmatpush1.bf16.msra.mxu0 %v2388
      %2483 = vmatprep.subr.bf16.mxu0 0
      %2484 = vmatpush1.bf16.msra.mxu0 %v2389
      %2485 = vmatprep.subr.bf16.mxu0 0
      %2486 = vmatpush1.bf16.msra.mxu0 %v2390
      %2487 = vmatprep.subr.bf16.mxu0 0
      %2488 = vmatpush1.bf16.msra.mxu0 %v2391
      %2489 = vmatprep.subr.bf16.mxu0 0
      %2490 = vmatpush1.bf16.msra.mxu0 %v2392
      %2491 = vmatprep.subr.bf16.mxu0 0
      %2492 = vmatpush1.bf16.msra.mxu0 %v2393
      %2493 = vmatprep.subr.bf16.mxu0 0
      %2494 = vmatpush1.bf16.msra.mxu0 %v2394
      %2495 = vmatprep.mubr.bf16.mxu0 %v2217
      %2496 = vmatmul.mubr.bf16.gmra.mrb[0].mxu0 %v2089
      %v2497 = vpop.f32.mrb[0].mxu0
      %v2498 = vadd.f32 %v2305, %v2497
      %v2499 = vpop.f32.mrb[0].mxu0
      %v2500 = vpop.f32.mrb[0].mxu0
      %v2501 = vadd.f32 %v2305, %v2500
      %v2502 = vpop.f32.mrb[0].mxu0
      %2503 = vmatprep.mubr.bf16.mxu0 %v2220
      %2504 = vmatmul.mubr.bf16.gmra.mrb[0].mxu0 %v2092
      %v2505 = vpop.f32.mrb[0].mxu0
      %v2506 = vadd.f32 %v2305, %v2505
      %v2507 = vpop.f32.mrb[0].mxu0
      %v2508 = vpop.f32.mrb[0].mxu0
      %v2509 = vadd.f32 %v2305, %v2508
      %v2510 = vpop.f32.mrb[0].mxu0
      %2511 = vmatprep.mubr.bf16.mxu0 %v2223
      %2512 = vmatmul.mubr.bf16.gmra.mrb[0].mxu0 %v2095
      %v2513 = vpop.f32.mrb[0].mxu0
      %v2514 = vadd.f32 %v2305, %v2513
      %v2515 = vpop.f32.mrb[0].mxu0
      %v2516 = vpop.f32.mrb[0].mxu0
      %v2517 = vadd.f32 %v2305, %v2516
      %v2518 = vpop.f32.mrb[0].mxu0
      %2519 = vmatprep.mubr.bf16.mxu0 %v2226
      %2520 = vmatmul.mubr.bf16.gmra.mrb[0].mxu0 %v2098
      %v2521 = vpop.f32.mrb[0].mxu0
      %v2522 = vadd.f32 %v2305, %v2521
      %v2523 = vpop.f32.mrb[0].mxu0
      %v2524 = vpop.f32.mrb[0].mxu0
      %v2525 = vadd.f32 %v2305, %v2524
      %v2526 = vpop.f32.mrb[0].mxu0
      %2527 = vmatprep.mubr.bf16.mxu0 %v2229
      %2528 = vmatmul.mubr.bf16.gmra.mrb[0].mxu0 %v2101
      %v2529 = vpop.f32.mrb[0].mxu0
      %v2530 = vadd.f32 %v2305, %v2529
      %v2531 = vpop.f32.mrb[0].mxu0
      %v2532 = vpop.f32.mrb[0].mxu0
      %v2533 = vadd.f32 %v2305, %v2532
      %v2534 = vpop.f32.mrb[0].mxu0
      %2535 = vmatprep.mubr.bf16.mxu0 %v2232
      %2536 = vmatmul.mubr.bf16.gmra.mrb[0].mxu0 %v2104
      %v2537 = vpop.f32.mrb[0].mxu0
      %v2538 = vadd.f32 %v2305, %v2537
      %v2539 = vpop.f32.mrb[0].mxu0
      %v2540 = vpop.f32.mrb[0].mxu0
      %v2541 = vadd.f32 %v2305, %v2540
      %v2542 = vpop.f32.mrb[0].mxu0
      %2543 = vmatprep.mubr.bf16.mxu0 %v2235
      %2544 = vmatmul.mubr.bf16.gmra.mrb[0].mxu0 %v2107
      %v2545 = vpop.f32.mrb[0].mxu0
      %v2546 = vadd.f32 %v2305, %v2545
      %v2547 = vpop.f32.mrb[0].mxu0
      %v2548 = vpop.f32.mrb[0].mxu0
      %v2549 = vadd.f32 %v2305, %v2548
      %v2550 = vpop.f32.mrb[0].mxu0
      %2551 = vmatprep.mubr.bf16.mxu0 %v2238
      %2552 = vmatmul.mubr.bf16.gmra.mrb[0].mxu0 %v2110
      %v2553 = vpop.f32.mrb[0].mxu0
      %v2554 = vadd.f32 %v2305, %v2553
      %v2555 = vpop.f32.mrb[0].mxu0
      %v2556 = vpop.f32.mrb[0].mxu0
      %v2557 = vadd.f32 %v2305, %v2556
      %v2558 = vpop.f32.mrb[0].mxu0
      %2559 = vmatprep.mubr.bf16.mxu0 %v2241
      %2560 = vmatmul.mubr.bf16.gmra.mrb[0].mxu0 %v2113
      %v2561 = vpop.f32.mrb[0].mxu0
      %v2562 = vadd.f32 %v2305, %v2561
      %v2563 = vpop.f32.mrb[0].mxu0
      %v2564 = vpop.f32.mrb[0].mxu0
      %v2565 = vadd.f32 %v2305, %v2564
      %v2566 = vpop.f32.mrb[0].mxu0
      %2567 = vmatprep.mubr.bf16.mxu0 %v2244
      %2568 = vmatmul.mubr.bf16.gmra.mrb[0].mxu0 %v2116
      %v2569 = vpop.f32.mrb[0].mxu0
      %v2570 = vadd.f32 %v2305, %v2569
      %v2571 = vpop.f32.mrb[0].mxu0
      %v2572 = vpop.f32.mrb[0].mxu0
      %v2573 = vadd.f32 %v2305, %v2572
      %v2574 = vpop.f32.mrb[0].mxu0
      %2575 = vmatprep.mubr.bf16.mxu0 %v2247
      %2576 = vmatmul.mubr.bf16.gmra.mrb[0].mxu0 %v2119
      %v2577 = vpop.f32.mrb[0].mxu0
      %v2578 = vadd.f32 %v2305, %v2577
      %v2579 = vpop.f32.mrb[0].mxu0
      %v2580 = vpop.f32.mrb[0].mxu0
      %v2581 = vadd.f32 %v2305, %v2580
      %v2582 = vpop.f32.mrb[0].mxu0
      %2583 = vmatprep.mubr.bf16.mxu0 %v2250
      %2584 = vmatmul.mubr.bf16.gmra.mrb[0].mxu0 %v2122
      %v2585 = vpop.f32.mrb[0].mxu0
      %v2586 = vadd.f32 %v2305, %v2585
      %v2587 = vpop.f32.mrb[0].mxu0
      %v2588 = vpop.f32.mrb[0].mxu0
      %v2589 = vadd.f32 %v2305, %v2588
      %v2590 = vpop.f32.mrb[0].mxu0
      %2591 = vmatprep.mubr.bf16.mxu0 %v2253
      %2592 = vmatmul.mubr.bf16.gmra.mrb[0].mxu0 %v2125
      %v2593 = vpop.f32.mrb[0].mxu0
      %v2594 = vadd.f32 %v2305, %v2593
      %v2595 = vpop.f32.mrb[0].mxu0
      %v2596 = vpop.f32.mrb[0].mxu0
      %v2597 = vadd.f32 %v2305, %v2596
      %v2598 = vpop.f32.mrb[0].mxu0
      %2599 = vmatprep.mubr.bf16.mxu0 %v2256
      %2600 = vmatmul.mubr.bf16.gmra.mrb[0].mxu0 %v2128
      %v2601 = vpop.f32.mrb[0].mxu0
      %v2602 = vadd.f32 %v2305, %v2601
      %v2603 = vpop.f32.mrb[0].mxu0
      %v2604 = vpop.f32.mrb[0].mxu0
      %v2605 = vadd.f32 %v2305, %v2604
      %v2606 = vpop.f32.mrb[0].mxu0
      %2607 = vmatprep.mubr.bf16.mxu0 %v2259
      %2608 = vmatmul.mubr.bf16.gmra.mrb[0].mxu0 %v2131
      %v2609 = vpop.f32.mrb[0].mxu0
      %v2610 = vadd.f32 %v2305, %v2609
      %v2611 = vpop.f32.mrb[0].mxu0
      %v2612 = vpop.f32.mrb[0].mxu0
      %v2613 = vadd.f32 %v2305, %v2612
      %v2614 = vpop.f32.mrb[0].mxu0
      %2615 = vmatprep.mubr.bf16.mxu0 %v2262
      %2616 = vmatmul.mubr.bf16.gmra.mrb[0].mxu0 %v2134
      %v2617 = vpop.f32.mrb[0].mxu0
      %v2618 = vadd.f32 %v2305, %v2617
      %v2619 = vpop.f32.mrb[0].mxu0
      %v2620 = vpop.f32.mrb[0].mxu0
      %v2621 = vadd.f32 %v2305, %v2620
      %v2622 = vpop.f32.mrb[0].mxu0
      %2623 = vdwg.mxu0
      %2624 = vmatprep.subr.bf16.mxu0 0
      %2625 = vmatpush1.bf16.msra.mxu0 %v2395
      %2626 = vmatprep.subr.bf16.mxu0 0
      %2627 = vmatpush1.bf16.msra.mxu0 %v2396
      %2628 = vmatprep.subr.bf16.mxu0 0
      %2629 = vmatpush1.bf16.msra.mxu0 0
      %2630 = vmatprep.subr.bf16.mxu0 0
      %2631 = vmatpush1.bf16.msra.mxu0 0
      %2632 = vmatprep.subr.bf16.mxu0 0
      %2633 = vmatpush1.bf16.msra.mxu0 0
      %2634 = vmatprep.subr.bf16.mxu0 0
      %2635 = vmatpush1.bf16.msra.mxu0 0
      %2636 = vmatprep.subr.bf16.mxu0 0
      %2637 = vmatpush1.bf16.msra.mxu0 0
      %2638 = vmatprep.subr.bf16.mxu0 0
      %2639 = vmatpush1.bf16.msra.mxu0 0
      %2640 = vmatprep.subr.bf16.mxu0 0
      %2641 = vmatpush1.bf16.msra.mxu0 0
      %2642 = vmatprep.subr.bf16.mxu0 0
      %2643 = vmatpush1.bf16.msra.mxu0 0
      %2644 = vmatprep.subr.bf16.mxu0 0
      %2645 = vmatpush1.bf16.msra.mxu0 0
      %2646 = vmatprep.subr.bf16.mxu0 0
      %2647 = vmatpush1.bf16.msra.mxu0 0
      %2648 = vmatprep.subr.bf16.mxu0 0
      %2649 = vmatpush1.bf16.msra.mxu0 0
      %2650 = vmatprep.subr.bf16.mxu0 0
      %2651 = vmatpush1.bf16.msra.mxu0 0
      %2652 = vmatprep.subr.bf16.mxu0 0
      %2653 = vmatpush1.bf16.msra.mxu0 0
      %2654 = vmatprep.subr.bf16.mxu0 0
      %2655 = vmatpush1.bf16.msra.mxu0 0
      %2656 = vmatprep.mubr.bf16.mxu0 0
      %2657 = vmatmul.mubr.bf16.gmra.mrb[0].mxu0 %v2416
      %v2658 = vpop.f32.mrb[0].mxu0
      %v2659 = vadd.f32 %v2498, %v2658
      %v2660 = vpop.f32.mrb[0].mxu0
      %v2661 = vpop.f32.mrb[0].mxu0
      %v2662 = vadd.f32 %v2501, %v2661
      %v2663 = vpop.f32.mrb[0].mxu0
      %2664 = vmatprep.mubr.bf16.mxu0 0
      %2665 = vmatmul.mubr.bf16.gmra.mrb[0].mxu0 %v2419
      %v2666 = vpop.f32.mrb[0].mxu0
      %v2667 = vadd.f32 %v2506, %v2666
      %v2668 = vpop.f32.mrb[0].mxu0
      %v2669 = vpop.f32.mrb[0].mxu0
      %v2670 = vadd.f32 %v2509, %v2669
      %v2671 = vpop.f32.mrb[0].mxu0
      %2672 = vmatprep.mubr.bf16.mxu0 0
      %2673 = vmatmul.mubr.bf16.gmra.mrb[0].mxu0 %v2422
      %v2674 = vpop.f32.mrb[0].mxu0
      %v2675 = vadd.f32 %v2514, %v2674
      %v2676 = vpop.f32.mrb[0].mxu0
      %v2677 = vpop.f32.mrb[0].mxu0
      %v2678 = vadd.f32 %v2517, %v2677
      %v2679 = vpop.f32.mrb[0].mxu0
      %2680 = vmatprep.mubr.bf16.mxu0 0
      %2681 = vmatmul.mubr.bf16.gmra.mrb[0].mxu0 %v2425
      %v2682 = vpop.f32.mrb[0].mxu0
      %v2683 = vadd.f32 %v2522, %v2682
      %v2684 = vpop.f32.mrb[0].mxu0
      %v2685 = vpop.f32.mrb[0].mxu0
      %v2686 = vadd.f32 %v2525, %v2685
      %v2687 = vpop.f32.mrb[0].mxu0
      %2688 = vmatprep.mubr.bf16.mxu0 0
      %2689 = vmatmul.mubr.bf16.gmra.mrb[0].mxu0 %v2428
      %v2690 = vpop.f32.mrb[0].mxu0
      %v2691 = vadd.f32 %v2530, %v2690
      %v2692 = vpop.f32.mrb[0].mxu0
      %v2693 = vpop.f32.mrb[0].mxu0
      %v2694 = vadd.f32 %v2533, %v2693
      %v2695 = vpop.f32.mrb[0].mxu0
      %2696 = vmatprep.mubr.bf16.mxu0 0
      %2697 = vmatmul.mubr.bf16.gmra.mrb[0].mxu0 %v2431
      %v2698 = vpop.f32.mrb[0].mxu0
      %v2699 = vadd.f32 %v2538, %v2698
      %v2700 = vpop.f32.mrb[0].mxu0
      %v2701 = vpop.f32.mrb[0].mxu0
      %v2702 = vadd.f32 %v2541, %v2701
      %v2703 = vpop.f32.mrb[0].mxu0
      %2704 = vmatprep.mubr.bf16.mxu0 0
      %2705 = vmatmul.mubr.bf16.gmra.mrb[0].mxu0 %v2434
      %v2706 = vpop.f32.mrb[0].mxu0
      %v2707 = vadd.f32 %v2546, %v2706
      %v2708 = vpop.f32.mrb[0].mxu0
      %v2709 = vpop.f32.mrb[0].mxu0
      %v2710 = vadd.f32 %v2549, %v2709
      %v2711 = vpop.f32.mrb[0].mxu0
      %2712 = vmatprep.mubr.bf16.mxu0 0
      %2713 = vmatmul.mubr.bf16.gmra.mrb[0].mxu0 %v2437
      %v2714 = vpop.f32.mrb[0].mxu0
      %v2715 = vadd.f32 %v2554, %v2714
      %v2716 = vpop.f32.mrb[0].mxu0
      %v2717 = vpop.f32.mrb[0].mxu0
      %v2718 = vadd.f32 %v2557, %v2717
      %v2719 = vpop.f32.mrb[0].mxu0
      %2720 = vmatprep.mubr.bf16.mxu0 0
      %2721 = vmatmul.mubr.bf16.gmra.mrb[0].mxu0 %v2440
      %v2722 = vpop.f32.mrb[0].mxu0
      %v2723 = vadd.f32 %v2562, %v2722
      %v2724 = vpop.f32.mrb[0].mxu0
      %v2725 = vpop.f32.mrb[0].mxu0
      %v2726 = vadd.f32 %v2565, %v2725
      %v2727 = vpop.f32.mrb[0].mxu0
      %2728 = vmatprep.mubr.bf16.mxu0 0
      %2729 = vmatmul.mubr.bf16.gmra.mrb[0].mxu0 %v2443
      %v2730 = vpop.f32.mrb[0].mxu0
      %v2731 = vadd.f32 %v2570, %v2730
      %v2732 = vpop.f32.mrb[0].mxu0
      %v2733 = vpop.f32.mrb[0].mxu0
      %v2734 = vadd.f32 %v2573, %v2733
      %v2735 = vpop.f32.mrb[0].mxu0
      %2736 = vmatprep.mubr.bf16.mxu0 0
      %2737 = vmatmul.mubr.bf16.gmra.mrb[0].mxu0 %v2446
      %v2738 = vpop.f32.mrb[0].mxu0
      %v2739 = vadd.f32 %v2578, %v2738
      %v2740 = vpop.f32.mrb[0].mxu0
      %v2741 = vpop.f32.mrb[0].mxu0
      %v2742 = vadd.f32 %v2581, %v2741
      %v2743 = vpop.f32.mrb[0].mxu0
      %2744 = vmatprep.mubr.bf16.mxu0 0
      %2745 = vmatmul.mubr.bf16.gmra.mrb[0].mxu0 %v2449
      %v2746 = vpop.f32.mrb[0].mxu0
      %v2747 = vadd.f32 %v2586, %v2746
      %v2748 = vpop.f32.mrb[0].mxu0
      %v2749 = vpop.f32.mrb[0].mxu0
      %v2750 = vadd.f32 %v2589, %v2749
      %v2751 = vpop.f32.mrb[0].mxu0
      %2752 = vmatprep.mubr.bf16.mxu0 0
      %2753 = vmatmul.mubr.bf16.gmra.mrb[0].mxu0 %v2452
      %v2754 = vpop.f32.mrb[0].mxu0
      %v2755 = vadd.f32 %v2594, %v2754
      %v2756 = vpop.f32.mrb[0].mxu0
      %v2757 = vpop.f32.mrb[0].mxu0
      %v2758 = vadd.f32 %v2597, %v2757
      %v2759 = vpop.f32.mrb[0].mxu0
      %2760 = vmatprep.mubr.bf16.mxu0 0
      %2761 = vmatmul.mubr.bf16.gmra.mrb[0].mxu0 %v2455
      %v2762 = vpop.f32.mrb[0].mxu0
      %v2763 = vadd.f32 %v2602, %v2762
      %v2764 = vpop.f32.mrb[0].mxu0
      %v2765 = vpop.f32.mrb[0].mxu0
      %v2766 = vadd.f32 %v2605, %v2765
      %v2767 = vpop.f32.mrb[0].mxu0
      %2768 = vmatprep.mubr.bf16.mxu0 0
      %2769 = vmatmul.mubr.bf16.gmra.mrb[0].mxu0 %v2458
      %v2770 = vpop.f32.mrb[0].mxu0
      %v2771 = vadd.f32 %v2610, %v2770
      %v2772 = vpop.f32.mrb[0].mxu0
      %v2773 = vpop.f32.mrb[0].mxu0
      %v2774 = vadd.f32 %v2613, %v2773
      %v2775 = vpop.f32.mrb[0].mxu0
      %2776 = vmatprep.mubr.bf16.mxu0 0
      %2777 = vmatmul.mubr.bf16.gmra.mrb[0].mxu0 %v2461
      %v2778 = vpop.f32.mrb[0].mxu0
      %v2779 = vadd.f32 %v2618, %v2778
      %v2780 = vpop.f32.mrb[0].mxu0
      %v2781 = vpop.f32.mrb[0].mxu0
      %v2782 = vadd.f32 %v2621, %v2781
      %v2783 = vpop.f32.mrb[0].mxu0
      %2784 = vdwg.mxu0
      %v2785 = vld [vmem:[%s3] sm:$0xff]
      %v2786 = vld [vmem:[%s3 + $0x8] sm:$0xff]
      %v2787 = vld [vmem:[%s3 + $0x10] sm:$0xff]
      %v2788 = vld [vmem:[%s3 + $0x18] sm:$0xff]
      %v2789 = vld [vmem:[%s3 + $0x20] sm:$0xff]
      %v2790 = vld [vmem:[%s3 + $0x28] sm:$0xff]
      %v2791 = vld [vmem:[%s3 + $0x30] sm:$0xff]
      %v2792 = vld [vmem:[%s3 + $0x38] sm:$0xff]
      %v2793 = vld [vmem:[%s4] sm:$0x1]
      %v2795 = vlaneseq
      %v2796 = vshrl.u32 %v2795, 7
      %v2797 = vsub.s32 0, %v2796
      %v2798 = vrot.slane %v2793, %v2797
      %v2801 = vsel %vm2054, %v2659, 0
      %v2804 = vsel %vm2054, %v2662, 0
      %v2807 = vsel %vm2054, %v2667, 0
      %v2810 = vsel %vm2054, %v2670, 0
      %v2813 = vsel %vm2054, %v2675, 0
      %v2816 = vsel %vm2054, %v2678, 0
      %v2819 = vsel %vm2054, %v2683, 0
      %v2822 = vsel %vm2054, %v2686, 0
      %v2825 = vsel %vm2054, %v2691, 0
      %v2828 = vsel %vm2054, %v2694, 0
      %v2831 = vsel %vm2054, %v2699, 0
      %v2834 = vsel %vm2054, %v2702, 0
      %v2837 = vsel %vm2054, %v2707, 0
      %v2840 = vsel %vm2054, %v2710, 0
      %v2843 = vsel %vm2054, %v2715, 0
      %v2846 = vsel %vm2054, %v2718, 0
      %v2849 = vsel %vm2054, %v2723, 0
      %v2852 = vsel %vm2054, %v2726, 0
      %v2855 = vsel %vm2054, %v2731, 0
      %v2858 = vsel %vm2054, %v2734, 0
      %v2861 = vsel %vm2054, %v2739, 0
      %v2864 = vsel %vm2054, %v2742, 0
      %v2867 = vsel %vm2054, %v2747, 0
      %v2870 = vsel %vm2054, %v2750, 0
      %v2873 = vsel %vm2054, %v2755, 0
      %v2876 = vsel %vm2054, %v2758, 0
      %v2879 = vsel %vm2054, %v2763, 0
      %v2882 = vsel %vm2054, %v2766, 0
      %v2885 = vsel %vm2054, %v2771, 0
      %v2888 = vsel %vm2054, %v2774, 0
      %v2891 = vsel %vm2054, %v2779, 0
      %v2894 = vsel %vm2054, %v2782, 0
      %2896 = vmatprep.subr.mxu0 0.0
      %2897 = vmatpush1.msra.mxu0 %v2785
      %2898 = vmatprep.subr.mxu0 0.0
      %2899 = vmatpush1.msra.mxu0 %v2786
      %2900 = vmatprep.subr.mxu0 0.0
      %2901 = vmatpush1.msra.mxu0 %v2787
      %2902 = vmatprep.subr.mxu0 0.0
      %2903 = vmatpush1.msra.mxu0 %v2788
      %2904 = vmatprep.subr.mxu0 0.0
      %2905 = vmatpush1.msra.mxu0 %v2789
      %2906 = vmatprep.subr.mxu0 0.0
      %2907 = vmatpush1.msra.mxu0 %v2790
      %2908 = vmatprep.subr.mxu0 0.0
      %2909 = vmatpush1.msra.mxu0 %v2791
      %2910 = vmatprep.subr.mxu0 0.0
      %2911 = vmatpush1.msra.mxu0 %v2792
      %2912 = vmatprep.subr.mxu0 0.0
      %2913 = vmatpush1.msra.mxu0 0.0
      %2914 = vmatprep.subr.mxu0 0.0
      %2915 = vmatpush1.msra.mxu0 0.0
      %2916 = vmatprep.subr.mxu0 0.0
      %2917 = vmatpush1.msra.mxu0 0.0
      %2918 = vmatprep.subr.mxu0 0.0
      %2919 = vmatpush1.msra.mxu0 0.0
      %2920 = vmatprep.subr.mxu0 0.0
      %2921 = vmatpush1.msra.mxu0 0.0
      %2922 = vmatprep.subr.mxu0 0.0
      %2923 = vmatpush1.msra.mxu0 0.0
      %2924 = vmatprep.subr.mxu0 0.0
      %2925 = vmatpush1.msra.mxu0 0.0
      %2926 = vmatprep.subr.mxu0 0.0
      %2927 = vmatpush1.msra.mxu0 0.0
      %2928 = vmatprep.subr.mxu0 0.0
      %2929 = vmatpush1.msra.mxu0 0.0
      %2930 = vmatprep.subr.mxu0 0.0
      %2931 = vmatpush1.msra.mxu0 0.0
      %2932 = vmatprep.subr.mxu0 0.0
      %2933 = vmatpush1.msra.mxu0 0.0
      %2934 = vmatprep.subr.mxu0 0.0
      %2935 = vmatpush1.msra.mxu0 0.0
      %2936 = vmatprep.subr.mxu0 0.0
      %2937 = vmatpush1.msra.mxu0 0.0
      %2938 = vmatprep.subr.mxu0 0.0
      %2939 = vmatpush1.msra.mxu0 0.0
      %2940 = vmatprep.subr.mxu0 0.0
      %2941 = vmatpush1.msra.mxu0 0.0
      %2942 = vmatprep.subr.mxu0 0.0
      %2943 = vmatpush1.msra.mxu0 0.0
      %2944 = vmatprep.subr.mxu0 0.0
      %2945 = vmatpush1.msra.mxu0 0.0
      %2946 = vmatprep.subr.mxu0 0.0
      %2947 = vmatpush1.msra.mxu0 0.0
      %2948 = vmatprep.subr.mxu0 0.0
      %2949 = vmatpush1.msra.mxu0 0.0
      %2950 = vmatprep.subr.mxu0 0.0
      %2951 = vmatpush1.msra.mxu0 0.0
      %2952 = vmatprep.subr.mxu0 0.0
      %2953 = vmatpush1.msra.mxu0 0.0
      %2954 = vmatprep.subr.mxu0 0.0
      %2955 = vmatpush1.msra.mxu0 0.0
      %2956 = vmatprep.subr.mxu0 0.0
      %2957 = vmatpush1.msra.mxu0 0.0
      %2958 = vmatprep.subr.mxu0 0.0
      %2959 = vmatpush1.msra.mxu0 0.0
      %2960 = vmatprep.mubr.f32.mxu0 0.0
      %2961 = vmatmul.mubr.f32.gmra.mrb[0].mxu0 %v2801
      %v2962 = vpop.f32.mrb[0].mxu0
      %v2963 = vadd.f32 %v2798, %v2962
      %v2964 = vpop.f32.mrb[0].mxu0
      %2965 = vmatprep.mubr.f32.mxu0 0.0
      %2966 = vmatmul.mubr.f32.gmra.mrb[0].mxu0 %v2804
      %v2967 = vpop.f32.mrb[0].mxu0
      %v2968 = vadd.f32 %v2798, %v2967
      %v2969 = vpop.f32.mrb[0].mxu0
      %2970 = vmatprep.mubr.f32.mxu0 0.0
      %2971 = vmatmul.mubr.f32.gmra.mrb[0].mxu0 %v2807
      %v2972 = vpop.f32.mrb[0].mxu0
      %v2973 = vadd.f32 %v2798, %v2972
      %v2974 = vpop.f32.mrb[0].mxu0
      %2975 = vmatprep.mubr.f32.mxu0 0.0
      %2976 = vmatmul.mubr.f32.gmra.mrb[0].mxu0 %v2810
      %v2977 = vpop.f32.mrb[0].mxu0
      %v2978 = vadd.f32 %v2798, %v2977
      %v2979 = vpop.f32.mrb[0].mxu0
      %2980 = vmatprep.mubr.f32.mxu0 0.0
      %2981 = vmatmul.mubr.f32.gmra.mrb[0].mxu0 %v2813
      %v2982 = vpop.f32.mrb[0].mxu0
      %v2983 = vadd.f32 %v2798, %v2982
      %v2984 = vpop.f32.mrb[0].mxu0
      %2985 = vmatprep.mubr.f32.mxu0 0.0
      %2986 = vmatmul.mubr.f32.gmra.mrb[0].mxu0 %v2816
      %v2987 = vpop.f32.mrb[0].mxu0
      %v2988 = vadd.f32 %v2798, %v2987
      %v2989 = vpop.f32.mrb[0].mxu0
      %2990 = vmatprep.mubr.f32.mxu0 0.0
      %2991 = vmatmul.mubr.f32.gmra.mrb[0].mxu0 %v2819
      %v2992 = vpop.f32.mrb[0].mxu0
      %v2993 = vadd.f32 %v2798, %v2992
      %v2994 = vpop.f32.mrb[0].mxu0
      %2995 = vmatprep.mubr.f32.mxu0 0.0
      %2996 = vmatmul.mubr.f32.gmra.mrb[0].mxu0 %v2822
      %v2997 = vpop.f32.mrb[0].mxu0
      %v2998 = vadd.f32 %v2798, %v2997
      %v2999 = vpop.f32.mrb[0].mxu0
      %3000 = vmatprep.mubr.f32.mxu0 0.0
      %3001 = vmatmul.mubr.f32.gmra.mrb[0].mxu0 %v2825
      %v3002 = vpop.f32.mrb[0].mxu0
      %v3003 = vadd.f32 %v2798, %v3002
      %v3004 = vpop.f32.mrb[0].mxu0
      %3005 = vmatprep.mubr.f32.mxu0 0.0
      %3006 = vmatmul.mubr.f32.gmra.mrb[0].mxu0 %v2828
      %v3007 = vpop.f32.mrb[0].mxu0
      %v3008 = vadd.f32 %v2798, %v3007
      %v3009 = vpop.f32.mrb[0].mxu0
      %3010 = vmatprep.mubr.f32.mxu0 0.0
      %3011 = vmatmul.mubr.f32.gmra.mrb[0].mxu0 %v2831
      %v3012 = vpop.f32.mrb[0].mxu0
      %v3013 = vadd.f32 %v2798, %v3012
      %v3014 = vpop.f32.mrb[0].mxu0
      %3015 = vmatprep.mubr.f32.mxu0 0.0
      %3016 = vmatmul.mubr.f32.gmra.mrb[0].mxu0 %v2834
      %v3017 = vpop.f32.mrb[0].mxu0
      %v3018 = vadd.f32 %v2798, %v3017
      %v3019 = vpop.f32.mrb[0].mxu0
      %3020 = vmatprep.mubr.f32.mxu0 0.0
      %3021 = vmatmul.mubr.f32.gmra.mrb[0].mxu0 %v2837
      %v3022 = vpop.f32.mrb[0].mxu0
      %v3023 = vadd.f32 %v2798, %v3022
      %v3024 = vpop.f32.mrb[0].mxu0
      %3025 = vmatprep.mubr.f32.mxu0 0.0
      %3026 = vmatmul.mubr.f32.gmra.mrb[0].mxu0 %v2840
      %v3027 = vpop.f32.mrb[0].mxu0
      %v3028 = vadd.f32 %v2798, %v3027
      %v3029 = vpop.f32.mrb[0].mxu0
      %3030 = vmatprep.mubr.f32.mxu0 0.0
      %3031 = vmatmul.mubr.f32.gmra.mrb[0].mxu0 %v2843
      %v3032 = vpop.f32.mrb[0].mxu0
      %v3033 = vadd.f32 %v2798, %v3032
      %v3034 = vpop.f32.mrb[0].mxu0
      %3035 = vmatprep.mubr.f32.mxu0 0.0
      %3036 = vmatmul.mubr.f32.gmra.mrb[0].mxu0 %v2846
      %v3037 = vpop.f32.mrb[0].mxu0
      %v3038 = vadd.f32 %v2798, %v3037
      %v3039 = vpop.f32.mrb[0].mxu0
      %3040 = vmatprep.mubr.f32.mxu0 0.0
      %3041 = vmatmul.mubr.f32.gmra.mrb[0].mxu0 %v2849
      %v3042 = vpop.f32.mrb[0].mxu0
      %v3043 = vadd.f32 %v2798, %v3042
      %v3044 = vpop.f32.mrb[0].mxu0
      %3045 = vmatprep.mubr.f32.mxu0 0.0
      %3046 = vmatmul.mubr.f32.gmra.mrb[0].mxu0 %v2852
      %v3047 = vpop.f32.mrb[0].mxu0
      %v3048 = vadd.f32 %v2798, %v3047
      %v3049 = vpop.f32.mrb[0].mxu0
      %3050 = vmatprep.mubr.f32.mxu0 0.0
      %3051 = vmatmul.mubr.f32.gmra.mrb[0].mxu0 %v2855
      %v3052 = vpop.f32.mrb[0].mxu0
      %v3053 = vadd.f32 %v2798, %v3052
      %v3054 = vpop.f32.mrb[0].mxu0
      %3055 = vmatprep.mubr.f32.mxu0 0.0
      %3056 = vmatmul.mubr.f32.gmra.mrb[0].mxu0 %v2858
      %v3057 = vpop.f32.mrb[0].mxu0
      %v3058 = vadd.f32 %v2798, %v3057
      %v3059 = vpop.f32.mrb[0].mxu0
      %3060 = vmatprep.mubr.f32.mxu0 0.0
      %3061 = vmatmul.mubr.f32.gmra.mrb[0].mxu0 %v2861
      %v3062 = vpop.f32.mrb[0].mxu0
      %v3063 = vadd.f32 %v2798, %v3062
      %v3064 = vpop.f32.mrb[0].mxu0
      %3065 = vmatprep.mubr.f32.mxu0 0.0
      %3066 = vmatmul.mubr.f32.gmra.mrb[0].mxu0 %v2864
      %v3067 = vpop.f32.mrb[0].mxu0
      %v3068 = vadd.f32 %v2798, %v3067
      %v3069 = vpop.f32.mrb[0].mxu0
      %3070 = vmatprep.mubr.f32.mxu0 0.0
      %3071 = vmatmul.mubr.f32.gmra.mrb[0].mxu0 %v2867
      %v3072 = vpop.f32.mrb[0].mxu0
      %v3073 = vadd.f32 %v2798, %v3072
      %v3074 = vpop.f32.mrb[0].mxu0
      %3075 = vmatprep.mubr.f32.mxu0 0.0
      %3076 = vmatmul.mubr.f32.gmra.mrb[0].mxu0 %v2870
      %v3077 = vpop.f32.mrb[0].mxu0
      %v3078 = vadd.f32 %v2798, %v3077
      %v3079 = vpop.f32.mrb[0].mxu0
      %3080 = vmatprep.mubr.f32.mxu0 0.0
      %3081 = vmatmul.mubr.f32.gmra.mrb[0].mxu0 %v2873
      %v3082 = vpop.f32.mrb[0].mxu0
      %v3083 = vadd.f32 %v2798, %v3082
      %v3084 = vpop.f32.mrb[0].mxu0
      %3085 = vmatprep.mubr.f32.mxu0 0.0
      %3086 = vmatmul.mubr.f32.gmra.mrb[0].mxu0 %v2876
      %v3087 = vpop.f32.mrb[0].mxu0
      %v3088 = vadd.f32 %v2798, %v3087
      %v3089 = vpop.f32.mrb[0].mxu0
      %3090 = vmatprep.mubr.f32.mxu0 0.0
      %3091 = vmatmul.mubr.f32.gmra.mrb[0].mxu0 %v2879
      %v3092 = vpop.f32.mrb[0].mxu0
      %v3093 = vadd.f32 %v2798, %v3092
      %v3094 = vpop.f32.mrb[0].mxu0
      %3095 = vmatprep.mubr.f32.mxu0 0.0
      %3096 = vmatmul.mubr.f32.gmra.mrb[0].mxu0 %v2882
      %v3097 = vpop.f32.mrb[0].mxu0
      %v3098 = vadd.f32 %v2798, %v3097
      %v3099 = vpop.f32.mrb[0].mxu0
      %3100 = vmatprep.mubr.f32.mxu0 0.0
      %3101 = vmatmul.mubr.f32.gmra.mrb[0].mxu0 %v2885
      %v3102 = vpop.f32.mrb[0].mxu0
      %v3103 = vadd.f32 %v2798, %v3102
      %v3104 = vpop.f32.mrb[0].mxu0
      %3105 = vmatprep.mubr.f32.mxu0 0.0
      %3106 = vmatmul.mubr.f32.gmra.mrb[0].mxu0 %v2888
      %v3107 = vpop.f32.mrb[0].mxu0
      %v3108 = vadd.f32 %v2798, %v3107
      %v3109 = vpop.f32.mrb[0].mxu0
      %3110 = vmatprep.mubr.f32.mxu0 0.0
      %3111 = vmatmul.mubr.f32.gmra.mrb[0].mxu0 %v2891
      %v3112 = vpop.f32.mrb[0].mxu0
      %v3113 = vadd.f32 %v2798, %v3112
      %v3114 = vpop.f32.mrb[0].mxu0
      %3115 = vmatprep.mubr.f32.mxu0 0.0
      %3116 = vmatmul.mubr.f32.gmra.mrb[0].mxu0 %v2894
      %v3117 = vpop.f32.mrb[0].mxu0
      %v3118 = vadd.f32 %v2798, %v3117
      %v3119 = vpop.f32.mrb[0].mxu0
      %3120 = vdwg.mxu0
      %vm3121 = vcmask 162816
      %3122 = vst.msk [vmem:[%s224] sm:$0xff] %vm3121, %v2963
      %3123 = vst.msk [vmem:[%s224 + $0x8] sm:$0xff] %vm3121, %v2968
      %3124 = vst.msk [vmem:[%s224 + $0x10] sm:$0xff] %vm3121, %v2973
      %3125 = vst.msk [vmem:[%s224 + $0x18] sm:$0xff] %vm3121, %v2978
      %3126 = vst.msk [vmem:[%s224 + $0x20] sm:$0xff] %vm3121, %v2983
      %3127 = vst.msk [vmem:[%s224 + $0x28] sm:$0xff] %vm3121, %v2988
      %3128 = vst.msk [vmem:[%s224 + $0x30] sm:$0xff] %vm3121, %v2993
      %3129 = vst.msk [vmem:[%s224 + $0x38] sm:$0xff] %vm3121, %v2998
      %3130 = vst.msk [vmem:[%s224 + $0x40] sm:$0xff] %vm3121, %v3003
      %3131 = vst.msk [vmem:[%s224 + $0x48] sm:$0xff] %vm3121, %v3008
      %3132 = vst.msk [vmem:[%s224 + $0x50] sm:$0xff] %vm3121, %v3013
      %3133 = vst.msk [vmem:[%s224 + $0x58] sm:$0xff] %vm3121, %v3018
      %3134 = vst.msk [vmem:[%s224 + $0x60] sm:$0xff] %vm3121, %v3023
      %3135 = vst.msk [vmem:[%s224 + $0x68] sm:$0xff] %vm3121, %v3028
      %3136 = vst.msk [vmem:[%s224 + $0x70] sm:$0xff] %vm3121, %v3033
      %3137 = vst.msk [vmem:[%s224 + $0x78] sm:$0xff] %vm3121, %v3038
      %3138 = vst.msk [vmem:[%s224 + $0x80] sm:$0xff] %vm3121, %v3043
      %3139 = vst.msk [vmem:[%s224 + $0x88] sm:$0xff] %vm3121, %v3048
      %3140 = vst.msk [vmem:[%s224 + $0x90] sm:$0xff] %vm3121, %v3053
      %3141 = vst.msk [vmem:[%s224 + $0x98] sm:$0xff] %vm3121, %v3058
      %3142 = vst.msk [vmem:[%s224 + $0xa0] sm:$0xff] %vm3121, %v3063
      %3143 = vst.msk [vmem:[%s224 + $0xa8] sm:$0xff] %vm3121, %v3068
      %3144 = vst.msk [vmem:[%s224 + $0xb0] sm:$0xff] %vm3121, %v3073
      %3145 = vst.msk [vmem:[%s224 + $0xb8] sm:$0xff] %vm3121, %v3078
      %3146 = vst.msk [vmem:[%s224 + $0xc0] sm:$0xff] %vm3121, %v3083
      %3147 = vst.msk [vmem:[%s224 + $0xc8] sm:$0xff] %vm3121, %v3088
      %3148 = vst.msk [vmem:[%s224 + $0xd0] sm:$0xff] %vm3121, %v3093
      %3149 = vst.msk [vmem:[%s224 + $0xd8] sm:$0xff] %vm3121, %v3098
      %3150 = vst.msk [vmem:[%s224 + $0xe0] sm:$0xff] %vm3121, %v3103
      %3151 = vst.msk [vmem:[%s224 + $0xe8] sm:$0xff] %vm3121, %v3108
      %3152 = vst.msk [vmem:[%s224 + $0xf0] sm:$0xff] %vm3121, %v3113
      %3153 = vst.msk [vmem:[%s224 + $0xf8] sm:$0xff] %vm3121, %v3118
      %p3154 = scmp.lt.s32.totalorder %s16, 1
      %s3155 = scalar_select %p3154, %s16, 1
      %s3156 = smul.addr %s3155, 32
      %s3157 = smul.addr %s3156, 8
      %s3158 = scalar_lea.vmem %s5, %s3157
      // Predicated region
      $region41: #{segd_forward.3} parent=39 // pred_check
        %p3159 = pneg %p144
      $region42: #{segd_forward.3} parent=39 // pred_check_branch
        %3161 = sbr.rel (%p3159) target = $region44
      $region43: #{segd_forward.3} parent=39 // pred_region
        _
      $region44: #{segd_forward.3} parent=39 // pred_fallthru
        _
    $region40: #{segd_forward.3} parent=5 // pred_fallthru
      _
    %p3162 = scmp.le.s32.totalorder 2, %s11
    // Predicated region
    $region45: #{segd_forward.3} parent=5 // pred_check
      %p3163 = pneg %p3162
    $region46: #{segd_forward.3} parent=5 // pred_check_branch
      %3165 = sbr.rel (%p3163) target = $region48
    $region47: #{segd_forward.3} parent=5 // pred_region
      %s3166 = ssub.s32 %s11, 2
      // Predicated region
      $region49: #{segd_forward.3} parent=47 // pred_check
        %p3167 = pneg %p150
      $region50: #{segd_forward.3} parent=47 // pred_check_branch
        %3169 = sbr.rel (%p3167) target = $region52
      $region51: #{segd_forward.3} parent=47 // pred_region
        %p3170 = scmp.lt.s32.totalorder %s17, 1
        %s3171 = scalar_select %p3170, %s17, 1
        %s3172 = smul.addr %s3171, 32
        %s3173 = smul.addr %s3172, 8
        %s3174 = scalar_lea.vmem %s5, %s3173
      $region52: #{segd_forward.3} parent=47 // pred_fallthru
        _
    $region48: #{segd_forward.3} parent=5 // pred_fallthru
      _
  $region6: #{segd_forward.3} parent=0 // loop_footer
    %s15 = sadd.s32 1, %s11
  $region7: #{segd_forward.3} parent=0 // loop_footer_branch
    %10 = sbr.rel target = $region3
  $region8: #{segd_forward.3} parent=0 // loop_exit
    _

</llo_original>
